<compile_context>
chip_gen: v5e
topology: v5e:2x2
jax: 0.10.0
libtpu: 0.0.40
codegen_flags: <defaults>
</compile_context>

<pallas_src>
import jax
import jax.numpy as jnp
from jax import lax
from jax.experimental import pallas as pl
from jax.experimental.pallas import tpu as pltpu


# ------------------------------- helpers ----------------------------------- #
def _round_up(x, m):
    return ((x + m - 1) // m) * m


def _pick_tile_m(m, pref=512):
    """Row-tile size: multiple of 8, at most `pref`; single tile if it fits."""
    mp = _round_up(max(m, 1), 8)
    return mp if mp <= pref else pref


_COMPILER_PARAMS = pltpu.CompilerParams(
    dimension_semantics=("parallel",),          # shard row tiles across cores
    vmem_limit_bytes=32 * 1024 * 1024,          # headroom under v7x's 64 MiB
)


# ----------------------------- Pallas kernels ------------------------------ #
def _conv_pool_kernel(a0_ref, a1_ref, a2_ref, a3_ref, w_ref, b_ref, o_ref):
    """out = max over the 4 pool-window corners of relu(a_corner @ w + b)."""
    w = w_ref[...]
    b = b_ref[...]

    def corner(a_ref):
        acc = jnp.dot(a_ref[...], w, preferred_element_type=jnp.float32)
        return jnp.maximum(acc + b, 0.0)

    o = jnp.maximum(jnp.maximum(corner(a0_ref), corner(a1_ref)),
                    jnp.maximum(corner(a2_ref), corner(a3_ref)))
    o_ref[...] = o.astype(o_ref.dtype)


def _mlp_kernel(x_ref, w1_ref, b1_ref, w2_ref, b2_ref, o_ref):
    """out = relu(x @ w1 + b1) @ w2 + b2   (fc1 activation never leaves VMEM)."""
    h = jnp.dot(x_ref[...], w1_ref[...], preferred_element_type=jnp.float32)
    h = jnp.maximum(h + b1_ref[...], 0.0)
    o = jnp.dot(h, w2_ref[...], preferred_element_type=jnp.float32) + b2_ref[...]
    o_ref[...] = o.astype(o_ref.dtype)


# ------------------------------ thin wrappers ------------------------------ #
def conv3x3_relu_pool_pallas(x, w, b):
    """Fused Conv2d(k=3, s=1, p=1) + ReLU + MaxPool2d(2).  x: (B,Cin,H,W)."""
    B, Cin, H, W = x.shape
    Cout = w.shape[0]
    Ho, Wo = H // 2, W // 2
    K = Cin * 9
    Np = _round_up(Cout, 128)                  # lane-dense output channels

    # Cheap XLA glue: per-pool-corner im2col (tiny tensors for this model).
    # NOTE: gather kept outside the kernel by design; compute stays in Pallas.
    xp = jnp.pad(x, ((0, 0), (0, 0), (1, 1), (1, 1)))
    # Patch features ordered (ci, ky, kx) to match torch weight.reshape(Cout,-1)
    patches = jnp.stack(
        [xp[:, :, ky:ky + H, kx:kx + W] for ky in range(3) for kx in range(3)],
        axis=2)                                            # (B, Cin, 9, H, W)
    feat = patches.transpose(0, 3, 4, 1, 2)                # (B, H, W, Cin, 9)
    corners = [feat[:, cy::2, cx::2].reshape(B * Ho * Wo, K)
               for cy in (0, 1) for cx in (0, 1)]          # rows = (b, yo, xo)

    M = B * Ho * Wo
    TM = _pick_tile_m(M)
    Mp = _round_up(M, TM)
    corners = [jnp.pad(c, ((0, Mp - M), (0, 0))) for c in corners]

    w2 = jnp.pad(w.reshape(Cout, K).T, ((0, 0), (0, Np - Cout)))   # (K, Np)
    b2 = jnp.pad(b, (0, Np - Cout)).reshape(1, Np)

    flops = 2 * 4 * Mp * K * Np
    bytes_accessed = 4 * (4 * Mp * K + K * Np + Np + Mp * Np)

    out = pl.pallas_call(
        _conv_pool_kernel,
        out_shape=jax.ShapeDtypeStruct((Mp, Np), x.dtype),
        grid=(Mp // TM,),
        in_specs=[pl.BlockSpec((TM, K), lambda i: (i, 0))] * 4
                 + [pl.BlockSpec((K, Np), lambda i: (0, 0)),
                    pl.BlockSpec((1, Np), lambda i: (0, 0))],
        out_specs=pl.BlockSpec((TM, Np), lambda i: (i, 0)),
        compiler_params=_COMPILER_PARAMS,
        cost_estimate=pl.CostEstimate(flops=flops, transcendentals=0,
                                      bytes_accessed=bytes_accessed),
    )(*corners, w2, b2)

    out = out[:M, :Cout].reshape(B, Ho, Wo, Cout)          # drop pad, NHWC
    return out.transpose(0, 3, 1, 2)                       # back to NCHW


def mlp_pallas(x, w1, b1, w2, b2):
    """Fused relu(x @ w1 + b1) @ w2 + b2 with lane-dense (128-padded) outputs."""
    B, K1 = x.shape
    H1 = w1.shape[1]
    N2 = w2.shape[1]
    H1p = _round_up(H1, 128)                   # 400 -> 512
    N2p = _round_up(N2, 128)                   # 10  -> 128

    TM = _pick_tile_m(B)
    Mp = _round_up(B, TM)

    xq = jnp.pad(x, ((0, Mp - B), (0, 0)))
    w1p = jnp.pad(w1, ((0, 0), (0, H1p - H1)))
    b1p = jnp.pad(b1, (0, H1p - H1)).reshape(1, H1p)
    w2p = jnp.pad(w2, ((0, H1p - H1), (0, N2p - N2)))      # zero rows => no leak
    b2p = jnp.pad(b2, (0, N2p - N2)).reshape(1, N2p)

    flops = 2 * Mp * (K1 * H1p + H1p * N2p)
    bytes_accessed = 4 * (Mp * K1 + K1 * H1p + H1p + H1p * N2p + N2p + Mp * N2p)

    out = pl.pallas_call(
        _mlp_kernel,
        out_shape=jax.ShapeDtypeStruct((Mp, N2p), x.dtype),
        grid=(Mp // TM,),
        in_specs=[pl.BlockSpec((TM, K1), lambda i: (i, 0)),
                  pl.BlockSpec((K1, H1p), lambda i: (0, 0)),
                  pl.BlockSpec((1, H1p), lambda i: (0, 0)),
                  pl.BlockSpec((H1p, N2p), lambda i: (0, 0)),
                  pl.BlockSpec((1, N2p), lambda i: (0, 0))],
        out_specs=pl.BlockSpec((TM, N2p), lambda i: (i, 0)),
        compiler_params=_COMPILER_PARAMS,
        cost_estimate=pl.CostEstimate(flops=flops, transcendentals=0,
                                      bytes_accessed=bytes_accessed),
    )(xq, w1p, b1p, w2p, b2p)
    return out[:B, :N2]


# ------------------------------ model wiring ------------------------------- #
def init_params(key):
    ks = jax.random.split(key, 8)

    def u(k, shape, fan_in):
        bound = 1.0 / float(fan_in) ** 0.5
        return jax.random.uniform(k, shape, jnp.float32, -bound, bound)

    return {
        "conv1_w": u(ks[0], (4, 1, 3, 3), 1 * 9),
        "conv1_b": u(ks[1], (4,), 1 * 9),
        "conv2_w": u(ks[2], (16, 4, 3, 3), 4 * 9),
        "conv2_b": u(ks[3], (16,), 4 * 9),
        "fc1_w":   u(ks[4], (16 * 7 * 7, 400), 16 * 7 * 7),
        "fc1_b":   u(ks[5], (400,), 16 * 7 * 7),
        "fc2_w":   u(ks[6], (400, 10), 400),
        "fc2_b":   u(ks[7], (10,), 400),
    }


def cnn_mnist1_forward(params, x):
    # x: (B, 1, 28, 28) float32, NCHW (matches torch CNN_MNIST1)
    x = conv3x3_relu_pool_pallas(x, params["conv1_w"], params["conv1_b"])  # (B,4,14,14)
    x = conv3x3_relu_pool_pallas(x, params["conv2_w"], params["conv2_b"])  # (B,16,7,7)
    x = x.reshape(x.shape[0], -1)        # torch .view(B, -1): C-major flatten
    return mlp_pallas(x, params["fc1_w"], params["fc1_b"],
                      params["fc2_w"], params["fc2_b"])                    # (B,10)


# ------------------------------ reference (JAX) ----------------------------- #
def _reference_forward(params, x):
    hi = lax.Precision.HIGHEST

    def conv(x, w, b):
        y = lax.conv_general_dilated(
            x, w, window_strides=(1, 1), padding=((1, 1), (1, 1)),
            dimension_numbers=("NCHW", "OIHW", "NCHW"), precision=hi)
        return jnp.maximum(y + b[None, :, None, None], 0.0)

    def pool(x):
        B, C, H, W = x.shape
        return jnp.max(x.reshape(B, C, H // 2, 2, W // 2, 2), axis=(3, 5))

    x = pool(conv(x, params["conv1_w"], params["conv1_b"]))
    x = pool(conv(x, params["conv2_w"], params["conv2_b"]))
    x = x.reshape(x.shape[0], -1)
    x = jnp.maximum(jnp.dot(x, params["fc1_w"], precision=hi) + params["fc1_b"], 0.0)
    return jnp.dot(x, params["fc2_w"], precision=hi) + params["fc2_b"]


if __name__ == "__main__":
    key = jax.random.PRNGKey(0)
    k_params, k_x = jax.random.split(key)
    params = init_params(k_params)
    x = jax.random.normal(k_x, (2, 1, 28, 28), dtype=jnp.float32)

    fwd = jax.jit(cnn_mnist1_forward)
    out = jax.block_until_ready(fwd(params, x))
    assert out.shape == (2, 10) and out.dtype == jnp.float32

    ref = jax.block_until_ready(jax.jit(_reference_forward)(params, x))
    err = float(jnp.max(jnp.abs(out - ref)))
    assert jnp.allclose(out, ref, rtol=1e-3, atol=1e-3), f"mismatch vs reference, max abs err={err}"

    print("KERNEL_OK")
</pallas_src>

<mosaic_0001>
module attributes {stable_mosaic.version = 11 : i64} {
  func.func @_conv_pool_kernel(%arg0: i32, %arg1: memref<392x9xf32, #tpu.memory_space<vmem>>, %arg2: memref<392x9xf32, #tpu.memory_space<vmem>>, %arg3: memref<392x9xf32, #tpu.memory_space<vmem>>, %arg4: memref<392x9xf32, #tpu.memory_space<vmem>>, %arg5: memref<9x128xf32, #tpu.memory_space<vmem>>, %arg6: memref<1x128xf32, #tpu.memory_space<vmem>>, %arg7: memref<392x128xf32, #tpu.memory_space<vmem>>) attributes {dimension_semantics = [#tpu.dimension_semantics<parallel>], iteration_bounds = array<i64: 1>, scalar_prefetch = 0 : i64, scratch_operands = 0 : i64, tpu.core_type = #tpu.core_type<tc>, window_params = [{transform_indices = @transform_0, window_bounds = array<i64: 392, 9>}, {transform_indices = @transform_1, window_bounds = array<i64: 392, 9>}, {transform_indices = @transform_2, window_bounds = array<i64: 392, 9>}, {transform_indices = @transform_3, window_bounds = array<i64: 392, 9>}, {pipeline_mode = #tpu.pipeline_mode<synchronous>, transform_indices = @transform_4, window_bounds = array<i64: 9, 128>}, {pipeline_mode = #tpu.pipeline_mode<synchronous>, transform_indices = @transform_5, window_bounds = array<i64: 1, 128>}, {transform_indices = @transform_6, window_bounds = array<i64: 392, 128>}]} {
    %c0 = arith.constant 0 : index
    %c0_0 = arith.constant 0 : index
    %0 = vector.load %arg5[%c0, %c0_0] : memref<9x128xf32, #tpu.memory_space<vmem>>, vector<9x128xf32>
    %c0_1 = arith.constant 0 : index
    %c0_2 = arith.constant 0 : index
    %1 = vector.load %arg6[%c0_1, %c0_2] : memref<1x128xf32, #tpu.memory_space<vmem>>, vector<1x128xf32>
    %c0_3 = arith.constant 0 : index
    %c0_4 = arith.constant 0 : index
    %2 = vector.load %arg1[%c0_3, %c0_4] : memref<392x9xf32, #tpu.memory_space<vmem>>, vector<392x9xf32>
    %cst = arith.constant dense<0.000000e+00> : vector<392x128xf32>
    %3 = tpu.matmul %2, %0, %cst {dimension_numbers = #tpu.dot_dimension_numbers<[1], [0], [0], [1], [0, 0, 1, 1], [], []>} : vector<392x9xf32>, vector<9x128xf32>, vector<392x128xf32> -> vector<392x128xf32>
    %4 = vector.broadcast %1 : vector<1x128xf32> to vector<392x128xf32>
    %5 = arith.addf %3, %4 : vector<392x128xf32>
    %cst_5 = arith.constant 0.000000e+00 : f32
    %6 = vector.broadcast %cst_5 : f32 to vector<392x128xf32>
    %7 = arith.maximumf %5, %6 : vector<392x128xf32>
    %c0_6 = arith.constant 0 : index
    %c0_7 = arith.constant 0 : index
    %8 = vector.load %arg2[%c0_6, %c0_7] : memref<392x9xf32, #tpu.memory_space<vmem>>, vector<392x9xf32>
    %cst_8 = arith.constant dense<0.000000e+00> : vector<392x128xf32>
    %9 = tpu.matmul %8, %0, %cst_8 {dimension_numbers = #tpu.dot_dimension_numbers<[1], [0], [0], [1], [0, 0, 1, 1], [], []>} : vector<392x9xf32>, vector<9x128xf32>, vector<392x128xf32> -> vector<392x128xf32>
    %10 = vector.broadcast %1 : vector<1x128xf32> to vector<392x128xf32>
    %11 = arith.addf %9, %10 : vector<392x128xf32>
    %cst_9 = arith.constant 0.000000e+00 : f32
    %12 = vector.broadcast %cst_9 : f32 to vector<392x128xf32>
    %13 = arith.maximumf %11, %12 : vector<392x128xf32>
    %14 = arith.maximumf %7, %13 : vector<392x128xf32>
    %c0_10 = arith.constant 0 : index
    %c0_11 = arith.constant 0 : index
    %15 = vector.load %arg3[%c0_10, %c0_11] : memref<392x9xf32, #tpu.memory_space<vmem>>, vector<392x9xf32>
    %cst_12 = arith.constant dense<0.000000e+00> : vector<392x128xf32>
    %16 = tpu.matmul %15, %0, %cst_12 {dimension_numbers = #tpu.dot_dimension_numbers<[1], [0], [0], [1], [0, 0, 1, 1], [], []>} : vector<392x9xf32>, vector<9x128xf32>, vector<392x128xf32> -> vector<392x128xf32>
    %17 = vector.broadcast %1 : vector<1x128xf32> to vector<392x128xf32>
    %18 = arith.addf %16, %17 : vector<392x128xf32>
    %cst_13 = arith.constant 0.000000e+00 : f32
    %19 = vector.broadcast %cst_13 : f32 to vector<392x128xf32>
    %20 = arith.maximumf %18, %19 : vector<392x128xf32>
    %c0_14 = arith.constant 0 : index
    %c0_15 = arith.constant 0 : index
    %21 = vector.load %arg4[%c0_14, %c0_15] : memref<392x9xf32, #tpu.memory_space<vmem>>, vector<392x9xf32>
    %cst_16 = arith.constant dense<0.000000e+00> : vector<392x128xf32>
    %22 = tpu.matmul %21, %0, %cst_16 {dimension_numbers = #tpu.dot_dimension_numbers<[1], [0], [0], [1], [0, 0, 1, 1], [], []>} : vector<392x9xf32>, vector<9x128xf32>, vector<392x128xf32> -> vector<392x128xf32>
    %23 = vector.broadcast %1 : vector<1x128xf32> to vector<392x128xf32>
    %24 = arith.addf %22, %23 : vector<392x128xf32>
    %cst_17 = arith.constant 0.000000e+00 : f32
    %25 = vector.broadcast %cst_17 : f32 to vector<392x128xf32>
    %26 = arith.maximumf %24, %25 : vector<392x128xf32>
    %27 = arith.maximumf %20, %26 : vector<392x128xf32>
    %28 = arith.maximumf %14, %27 : vector<392x128xf32>
    %c0_18 = arith.constant 0 : index
    %c0_19 = arith.constant 0 : index
    %29 = vector.load %arg7[%c0_18, %c0_19] : memref<392x128xf32, #tpu.memory_space<vmem>>, vector<392x128xf32>
    tpu.vector_store %arg7[%c0_18, %c0_19], %28 {strides = array<i32>} : memref<392x128xf32, #tpu.memory_space<vmem>>, vector<392x128xf32>,
    return
  }
  func.func @transform_0(%arg0: i32) -> (i32, i32) {
    %c0_i32 = arith.constant 0 : i32
    %c0_i32_0 = arith.constant 0 : i32
    return %arg0, %c0_i32 : i32, i32
  }
  func.func @transform_1(%arg0: i32) -> (i32, i32) {
    %c0_i32 = arith.constant 0 : i32
    %c0_i32_0 = arith.constant 0 : i32
    return %arg0, %c0_i32 : i32, i32
  }
  func.func @transform_2(%arg0: i32) -> (i32, i32) {
    %c0_i32 = arith.constant 0 : i32
    %c0_i32_0 = arith.constant 0 : i32
    return %arg0, %c0_i32 : i32, i32
  }
  func.func @transform_3(%arg0: i32) -> (i32, i32) {
    %c0_i32 = arith.constant 0 : i32
    %c0_i32_0 = arith.constant 0 : i32
    return %arg0, %c0_i32 : i32, i32
  }
  func.func @transform_4(%arg0: i32) -> (i32, i32) {
    %c0_i32 = arith.constant 0 : i32
    %c0_i32_0 = arith.constant 0 : i32
    %c0_i32_1 = arith.constant 0 : i32
    return %c0_i32, %c0_i32_0 : i32, i32
  }
  func.func @transform_5(%arg0: i32) -> (i32, i32) {
    %c0_i32 = arith.constant 0 : i32
    %c0_i32_0 = arith.constant 0 : i32
    %c0_i32_1 = arith.constant 0 : i32
    return %c0_i32, %c0_i32_0 : i32, i32
  }
  func.func @transform_6(%arg0: i32) -> (i32, i32) {
    %c0_i32 = arith.constant 0 : i32
    %c0_i32_0 = arith.constant 0 : i32
    return %arg0, %c0_i32 : i32, i32
  }
}

module attributes {stable_mosaic.version = 11 : i64} {
  func.func @_conv_pool_kernel(%arg0: i32, %arg1: memref<104x36xf32, #tpu.memory_space<vmem>>, %arg2: memref<104x36xf32, #tpu.memory_space<vmem>>, %arg3: memref<104x36xf32, #tpu.memory_space<vmem>>, %arg4: memref<104x36xf32, #tpu.memory_space<vmem>>, %arg5: memref<36x128xf32, #tpu.memory_space<vmem>>, %arg6: memref<1x128xf32, #tpu.memory_space<vmem>>, %arg7: memref<104x128xf32, #tpu.memory_space<vmem>>) attributes {dimension_semantics = [#tpu.dimension_semantics<parallel>], iteration_bounds = array<i64: 1>, scalar_prefetch = 0 : i64, scratch_operands = 0 : i64, tpu.core_type = #tpu.core_type<tc>, window_params = [{transform_indices = @transform_0, window_bounds = array<i64: 104, 36>}, {transform_indices = @transform_1, window_bounds = array<i64: 104, 36>}, {transform_indices = @transform_2, window_bounds = array<i64: 104, 36>}, {transform_indices = @transform_3, window_bounds = array<i64: 104, 36>}, {pipeline_mode = #tpu.pipeline_mode<synchronous>, transform_indices = @transform_4, window_bounds = array<i64: 36, 128>}, {pipeline_mode = #tpu.pipeline_mode<synchronous>, transform_indices = @transform_5, window_bounds = array<i64: 1, 128>}, {transform_indices = @transform_6, window_bounds = array<i64: 104, 128>}]} {
    %c0 = arith.constant 0 : index
    %c0_0 = arith.constant 0 : index
    %0 = vector.load %arg5[%c0, %c0_0] : memref<36x128xf32, #tpu.memory_space<vmem>>, vector<36x128xf32>
    %c0_1 = arith.constant 0 : index
    %c0_2 = arith.constant 0 : index
    %1 = vector.load %arg6[%c0_1, %c0_2] : memref<1x128xf32, #tpu.memory_space<vmem>>, vector<1x128xf32>
    %c0_3 = arith.constant 0 : index
    %c0_4 = arith.constant 0 : index
    %2 = vector.load %arg1[%c0_3, %c0_4] : memref<104x36xf32, #tpu.memory_space<vmem>>, vector<104x36xf32>
    %cst = arith.constant dense<0.000000e+00> : vector<104x128xf32>
    %3 = tpu.matmul %2, %0, %cst {dimension_numbers = #tpu.dot_dimension_numbers<[1], [0], [0], [1], [0, 0, 1, 1], [], []>} : vector<104x36xf32>, vector<36x128xf32>, vector<104x128xf32> -> vector<104x128xf32>
    %4 = vector.broadcast %1 : vector<1x128xf32> to vector<104x128xf32>
    %5 = arith.addf %3, %4 : vector<104x128xf32>
    %cst_5 = arith.constant 0.000000e+00 : f32
    %6 = vector.broadcast %cst_5 : f32 to vector<104x128xf32>
    %7 = arith.maximumf %5, %6 : vector<104x128xf32>
    %c0_6 = arith.constant 0 : index
    %c0_7 = arith.constant 0 : index
    %8 = vector.load %arg2[%c0_6, %c0_7] : memref<104x36xf32, #tpu.memory_space<vmem>>, vector<104x36xf32>
    %cst_8 = arith.constant dense<0.000000e+00> : vector<104x128xf32>
    %9 = tpu.matmul %8, %0, %cst_8 {dimension_numbers = #tpu.dot_dimension_numbers<[1], [0], [0], [1], [0, 0, 1, 1], [], []>} : vector<104x36xf32>, vector<36x128xf32>, vector<104x128xf32> -> vector<104x128xf32>
    %10 = vector.broadcast %1 : vector<1x128xf32> to vector<104x128xf32>
    %11 = arith.addf %9, %10 : vector<104x128xf32>
    %cst_9 = arith.constant 0.000000e+00 : f32
    %12 = vector.broadcast %cst_9 : f32 to vector<104x128xf32>
    %13 = arith.maximumf %11, %12 : vector<104x128xf32>
    %14 = arith.maximumf %7, %13 : vector<104x128xf32>
    %c0_10 = arith.constant 0 : index
    %c0_11 = arith.constant 0 : index
    %15 = vector.load %arg3[%c0_10, %c0_11] : memref<104x36xf32, #tpu.memory_space<vmem>>, vector<104x36xf32>
    %cst_12 = arith.constant dense<0.000000e+00> : vector<104x128xf32>
    %16 = tpu.matmul %15, %0, %cst_12 {dimension_numbers = #tpu.dot_dimension_numbers<[1], [0], [0], [1], [0, 0, 1, 1], [], []>} : vector<104x36xf32>, vector<36x128xf32>, vector<104x128xf32> -> vector<104x128xf32>
    %17 = vector.broadcast %1 : vector<1x128xf32> to vector<104x128xf32>
    %18 = arith.addf %16, %17 : vector<104x128xf32>
    %cst_13 = arith.constant 0.000000e+00 : f32
    %19 = vector.broadcast %cst_13 : f32 to vector<104x128xf32>
    %20 = arith.maximumf %18, %19 : vector<104x128xf32>
    %c0_14 = arith.constant 0 : index
    %c0_15 = arith.constant 0 : index
    %21 = vector.load %arg4[%c0_14, %c0_15] : memref<104x36xf32, #tpu.memory_space<vmem>>, vector<104x36xf32>
    %cst_16 = arith.constant dense<0.000000e+00> : vector<104x128xf32>
    %22 = tpu.matmul %21, %0, %cst_16 {dimension_numbers = #tpu.dot_dimension_numbers<[1], [0], [0], [1], [0, 0, 1, 1], [], []>} : vector<104x36xf32>, vector<36x128xf32>, vector<104x128xf32> -> vector<104x128xf32>
    %23 = vector.broadcast %1 : vector<1x128xf32> to vector<104x128xf32>
    %24 = arith.addf %22, %23 : vector<104x128xf32>
    %cst_17 = arith.constant 0.000000e+00 : f32
    %25 = vector.broadcast %cst_17 : f32 to vector<104x128xf32>
    %26 = arith.maximumf %24, %25 : vector<104x128xf32>
    %27 = arith.maximumf %20, %26 : vector<104x128xf32>
    %28 = arith.maximumf %14, %27 : vector<104x128xf32>
    %c0_18 = arith.constant 0 : index
    %c0_19 = arith.constant 0 : index
    %29 = vector.load %arg7[%c0_18, %c0_19] : memref<104x128xf32, #tpu.memory_space<vmem>>, vector<104x128xf32>
    tpu.vector_store %arg7[%c0_18, %c0_19], %28 {strides = array<i32>} : memref<104x128xf32, #tpu.memory_space<vmem>>, vector<104x128xf32>,
    return
  }
  func.func @transform_0(%arg0: i32) -> (i32, i32) {
    %c0_i32 = arith.constant 0 : i32
    %c0_i32_0 = arith.constant 0 : i32
    return %arg0, %c0_i32 : i32, i32
  }
  func.func @transform_1(%arg0: i32) -> (i32, i32) {
    %c0_i32 = arith.constant 0 : i32
    %c0_i32_0 = arith.constant 0 : i32
    return %arg0, %c0_i32 : i32, i32
  }
  func.func @transform_2(%arg0: i32) -> (i32, i32) {
    %c0_i32 = arith.constant 0 : i32
    %c0_i32_0 = arith.constant 0 : i32
    return %arg0, %c0_i32 : i32, i32
  }
  func.func @transform_3(%arg0: i32) -> (i32, i32) {
    %c0_i32 = arith.constant 0 : i32
    %c0_i32_0 = arith.constant 0 : i32
    return %arg0, %c0_i32 : i32, i32
  }
  func.func @transform_4(%arg0: i32) -> (i32, i32) {
    %c0_i32 = arith.constant 0 : i32
    %c0_i32_0 = arith.constant 0 : i32
    %c0_i32_1 = arith.constant 0 : i32
    return %c0_i32, %c0_i32_0 : i32, i32
  }
  func.func @transform_5(%arg0: i32) -> (i32, i32) {
    %c0_i32 = arith.constant 0 : i32
    %c0_i32_0 = arith.constant 0 : i32
    %c0_i32_1 = arith.constant 0 : i32
    return %c0_i32, %c0_i32_0 : i32, i32
  }
  func.func @transform_6(%arg0: i32) -> (i32, i32) {
    %c0_i32 = arith.constant 0 : i32
    %c0_i32_0 = arith.constant 0 : i32
    return %arg0, %c0_i32 : i32, i32
  }
}

module attributes {stable_mosaic.version = 11 : i64} {
  func.func @_mlp_kernel(%arg0: i32, %arg1: memref<8x784xf32, #tpu.memory_space<vmem>>, %arg2: memref<784x512xf32, #tpu.memory_space<vmem>>, %arg3: memref<1x512xf32, #tpu.memory_space<vmem>>, %arg4: memref<512x128xf32, #tpu.memory_space<vmem>>, %arg5: memref<1x128xf32, #tpu.memory_space<vmem>>, %arg6: memref<8x128xf32, #tpu.memory_space<vmem>>) attributes {dimension_semantics = [#tpu.dimension_semantics<parallel>], iteration_bounds = array<i64: 1>, scalar_prefetch = 0 : i64, scratch_operands = 0 : i64, tpu.core_type = #tpu.core_type<tc>, window_params = [{transform_indices = @transform_0, window_bounds = array<i64: 8, 784>}, {pipeline_mode = #tpu.pipeline_mode<synchronous>, transform_indices = @transform_1, window_bounds = array<i64: 784, 512>}, {pipeline_mode = #tpu.pipeline_mode<synchronous>, transform_indices = @transform_2, window_bounds = array<i64: 1, 512>}, {pipeline_mode = #tpu.pipeline_mode<synchronous>, transform_indices = @transform_3, window_bounds = array<i64: 512, 128>}, {pipeline_mode = #tpu.pipeline_mode<synchronous>, transform_indices = @transform_4, window_bounds = array<i64: 1, 128>}, {transform_indices = @transform_5, window_bounds = array<i64: 8, 128>}]} {
    %c0 = arith.constant 0 : index
    %c0_0 = arith.constant 0 : index
    %0 = vector.load %arg1[%c0, %c0_0] : memref<8x784xf32, #tpu.memory_space<vmem>>, vector<8x784xf32>
    %c0_1 = arith.constant 0 : index
    %c0_2 = arith.constant 0 : index
    %1 = vector.load %arg2[%c0_1, %c0_2] : memref<784x512xf32, #tpu.memory_space<vmem>>, vector<784x512xf32>
    %cst = arith.constant dense<0.000000e+00> : vector<8x512xf32>
    %2 = tpu.matmul %0, %1, %cst {dimension_numbers = #tpu.dot_dimension_numbers<[1], [0], [0], [1], [0, 0, 1, 1], [], []>} : vector<8x784xf32>, vector<784x512xf32>, vector<8x512xf32> -> vector<8x512xf32>
    %c0_3 = arith.constant 0 : index
    %c0_4 = arith.constant 0 : index
    %3 = vector.load %arg3[%c0_3, %c0_4] : memref<1x512xf32, #tpu.memory_space<vmem>>, vector<1x512xf32>
    %4 = vector.broadcast %3 : vector<1x512xf32> to vector<8x512xf32>
    %5 = arith.addf %2, %4 : vector<8x512xf32>
    %cst_5 = arith.constant 0.000000e+00 : f32
    %6 = vector.broadcast %cst_5 : f32 to vector<8x512xf32>
    %7 = arith.maximumf %5, %6 : vector<8x512xf32>
    %c0_6 = arith.constant 0 : index
    %c0_7 = arith.constant 0 : index
    %8 = vector.load %arg4[%c0_6, %c0_7] : memref<512x128xf32, #tpu.memory_space<vmem>>, vector<512x128xf32>
    %cst_8 = arith.constant dense<0.000000e+00> : vector<8x128xf32>
    %9 = tpu.matmul %7, %8, %cst_8 {dimension_numbers = #tpu.dot_dimension_numbers<[1], [0], [0], [1], [0, 0, 1, 1], [], []>} : vector<8x512xf32>, vector<512x128xf32>, vector<8x128xf32> -> vector<8x128xf32>
    %c0_9 = arith.constant 0 : index
    %c0_10 = arith.constant 0 : index
    %10 = vector.load %arg5[%c0_9, %c0_10] : memref<1x128xf32, #tpu.memory_space<vmem>>, vector<1x128xf32>
    %11 = vector.broadcast %10 : vector<1x128xf32> to vector<8x128xf32>
    %12 = arith.addf %9, %11 : vector<8x128xf32>
    %c0_11 = arith.constant 0 : index
    %c0_12 = arith.constant 0 : index
    %13 = vector.load %arg6[%c0_11, %c0_12] : memref<8x128xf32, #tpu.memory_space<vmem>>, vector<8x128xf32>
    tpu.vector_store %arg6[%c0_11, %c0_12], %12 {strides = array<i32>} : memref<8x128xf32, #tpu.memory_space<vmem>>, vector<8x128xf32>,
    return
  }
  func.func @transform_0(%arg0: i32) -> (i32, i32) {
    %c0_i32 = arith.constant 0 : i32
    %c0_i32_0 = arith.constant 0 : i32
    return %arg0, %c0_i32 : i32, i32
  }
  func.func @transform_1(%arg0: i32) -> (i32, i32) {
    %c0_i32 = arith.constant 0 : i32
    %c0_i32_0 = arith.constant 0 : i32
    %c0_i32_1 = arith.constant 0 : i32
    return %c0_i32, %c0_i32_0 : i32, i32
  }
  func.func @transform_2(%arg0: i32) -> (i32, i32) {
    %c0_i32 = arith.constant 0 : i32
    %c0_i32_0 = arith.constant 0 : i32
    %c0_i32_1 = arith.constant 0 : i32
    return %c0_i32, %c0_i32_0 : i32, i32
  }
  func.func @transform_3(%arg0: i32) -> (i32, i32) {
    %c0_i32 = arith.constant 0 : i32
    %c0_i32_0 = arith.constant 0 : i32
    %c0_i32_1 = arith.constant 0 : i32
    return %c0_i32, %c0_i32_0 : i32, i32
  }
  func.func @transform_4(%arg0: i32) -> (i32, i32) {
    %c0_i32 = arith.constant 0 : i32
    %c0_i32_0 = arith.constant 0 : i32
    %c0_i32_1 = arith.constant 0 : i32
    return %c0_i32, %c0_i32_0 : i32, i32
  }
  func.func @transform_5(%arg0: i32) -> (i32, i32) {
    %c0_i32 = arith.constant 0 : i32
    %c0_i32_0 = arith.constant 0 : i32
    return %arg0, %c0_i32 : i32, i32
  }
}

</mosaic_0001>

<llo_original>
// kernel: cnn_mnist1_forward.3
$region0: #{cnn_mnist1_forward.3}
  #allocation0 [shape = 'u32[]', space=smem, size = 0x4, offset = 0x4, fixed_abs, tag = 'smem constant byte address 0x4 - core index']
  #allocation1 [shape = 'u32[72,128]{1,0:T(1,128)}', space=vmem, size = 0x9000, scoped, tag = 'internal scratch']
  %s0 = inlined_call_operand.vmem [shape: f32[392,9], index: 0, kind: input, shape index: {}]
  %s1 = inlined_call_operand.vmem [shape: f32[392,9], index: 1, kind: input, shape index: {}]
  %s2 = inlined_call_operand.vmem [shape: f32[392,9], index: 2, kind: input, shape index: {}]
  %s3 = inlined_call_operand.vmem [shape: f32[392,9], index: 3, kind: input, shape index: {}]
  %s4 = inlined_call_operand.vmem [shape: f32[9,128], index: 4, kind: input, shape index: {}]
  %s5 = inlined_call_operand.vmem [shape: f32[1,128], index: 5, kind: input, shape index: {}]
  %s6 = inlined_call_operand.vmem [shape: f32[392,128], index: 6, kind: output, shape index: {}]
  %s7 = sld [smem:[#allocation0]]
  $region34: #{cnn_mnist1_forward.3} parent=0
    _
  %s9 = ssub.s32 1, %s7
  %s10 = scalar_select 0, %s9, %s7
  // Predicated region
  $region2: #{cnn_mnist1_forward.3} parent=0 // pred_check
    _
  $region3: #{cnn_mnist1_forward.3} parent=0 // pred_check_branch
    %12 = sbr.rel (0) target = $region5
  $region4: #{cnn_mnist1_forward.3} parent=0 // pred_region
    _
  $region5: #{cnn_mnist1_forward.3} parent=0 // pred_fallthru
    _
  // Predicated region
  $region6: #{cnn_mnist1_forward.3} parent=0 // pred_check
    _
  $region7: #{cnn_mnist1_forward.3} parent=0 // pred_check_branch
    %14 = sbr.rel (0) target = $region9
  $region8: #{cnn_mnist1_forward.3} parent=0 // pred_region
    _
  $region9: #{cnn_mnist1_forward.3} parent=0 // pred_fallthru
    _
  // Predicated region
  $region10: #{cnn_mnist1_forward.3} parent=0 // pred_check
    _
  $region11: #{cnn_mnist1_forward.3} parent=0 // pred_check_branch
    %16 = sbr.rel (0) target = $region13
  $region12: #{cnn_mnist1_forward.3} parent=0 // pred_region
    _
  $region13: #{cnn_mnist1_forward.3} parent=0 // pred_fallthru
    _
  // Predicated region
  $region14: #{cnn_mnist1_forward.3} parent=0 // pred_check
    _
  $region15: #{cnn_mnist1_forward.3} parent=0 // pred_check_branch
    %18 = sbr.rel (0) target = $region17
  $region16: #{cnn_mnist1_forward.3} parent=0 // pred_region
    _
  $region17: #{cnn_mnist1_forward.3} parent=0 // pred_fallthru
    _
  // Predicated region
  $region18: #{cnn_mnist1_forward.3} parent=0 // pred_check
    _
  $region19: #{cnn_mnist1_forward.3} parent=0 // pred_check_branch
    %20 = sbr.rel (0) target = $region21
  $region20: #{cnn_mnist1_forward.3} parent=0 // pred_region
    _
  $region21: #{cnn_mnist1_forward.3} parent=0 // pred_fallthru
    _
  // Predicated region
  $region22: #{cnn_mnist1_forward.3} parent=0 // pred_check
    _
  $region23: #{cnn_mnist1_forward.3} parent=0 // pred_check_branch
    %22 = sbr.rel (0) target = $region25
  $region24: #{cnn_mnist1_forward.3} parent=0 // pred_region
    _
  $region25: #{cnn_mnist1_forward.3} parent=0 // pred_fallthru
    _
  %v23 = vld [vmem:[%s4] sm:$0xff]
  %v24 = vld [vmem:[%s4 + $0x8] sm:$0x1]
  %v25 = vld [vmem:[%s5] sm:$0x1]
  %v26 = vld [vmem:[%s0] sm:$0xff]
  %v27 = vld [vmem:[%s0 + $0x8] sm:$0xff]
  %v28 = vld [vmem:[%s0 + $0x10] sm:$0xff]
  %v29 = vld [vmem:[%s0 + $0x18] sm:$0xff]
  %v30 = vld [vmem:[%s0 + $0x20] sm:$0xff]
  %v31 = vld [vmem:[%s0 + $0x28] sm:$0xff]
  %v32 = vld [vmem:[%s0 + $0x30] sm:$0xff]
  %v33 = vld [vmem:[%s0 + $0x38] sm:$0xff]
  %v34 = vld [vmem:[%s0 + $0x40] sm:$0xff]
  %v35 = vld [vmem:[%s0 + $0x48] sm:$0xff]
  %v36 = vld [vmem:[%s0 + $0x50] sm:$0xff]
  %v37 = vld [vmem:[%s0 + $0x58] sm:$0xff]
  %v38 = vld [vmem:[%s0 + $0x60] sm:$0xff]
  %v39 = vld [vmem:[%s0 + $0x68] sm:$0xff]
  %v40 = vld [vmem:[%s0 + $0x70] sm:$0xff]
  %v41 = vld [vmem:[%s0 + $0x78] sm:$0xff]
  %v42 = vld [vmem:[%s0 + $0x80] sm:$0xff]
  %v43 = vld [vmem:[%s0 + $0x88] sm:$0xff]
  %v44 = vld [vmem:[%s0 + $0x90] sm:$0xff]
  %v45 = vld [vmem:[%s0 + $0x98] sm:$0xff]
  %v46 = vld [vmem:[%s0 + $0xa0] sm:$0xff]
  %v47 = vld [vmem:[%s0 + $0xa8] sm:$0xff]
  %v48 = vld [vmem:[%s0 + $0xb0] sm:$0xff]
  %v49 = vld [vmem:[%s0 + $0xb8] sm:$0xff]
  %v50 = vld [vmem:[%s0 + $0xc0] sm:$0xff]
  %v51 = vld [vmem:[%s0 + $0xc8] sm:$0xff]
  %v52 = vld [vmem:[%s0 + $0xd0] sm:$0xff]
  %v53 = vld [vmem:[%s0 + $0xd8] sm:$0xff]
  %v54 = vld [vmem:[%s0 + $0xe0] sm:$0xff]
  %v55 = vld [vmem:[%s0 + $0xe8] sm:$0xff]
  %v56 = vld [vmem:[%s0 + $0xf0] sm:$0xff]
  %v57 = vld [vmem:[%s0 + $0xf8] sm:$0xff]
  %v58 = vld [vmem:[%s0 + $0x100] sm:$0xff]
  %v59 = vld [vmem:[%s0 + $0x108] sm:$0xff]
  %v60 = vld [vmem:[%s0 + $0x110] sm:$0xff]
  %v61 = vld [vmem:[%s0 + $0x118] sm:$0xff]
  %v62 = vld [vmem:[%s0 + $0x120] sm:$0xff]
  %v63 = vld [vmem:[%s0 + $0x128] sm:$0xff]
  %v64 = vld [vmem:[%s0 + $0x130] sm:$0xff]
  %v65 = vld [vmem:[%s0 + $0x138] sm:$0xff]
  %v66 = vld [vmem:[%s0 + $0x140] sm:$0xff]
  %v67 = vld [vmem:[%s0 + $0x148] sm:$0xff]
  %v68 = vld [vmem:[%s0 + $0x150] sm:$0xff]
  %v69 = vld [vmem:[%s0 + $0x158] sm:$0xff]
  %v70 = vld [vmem:[%s0 + $0x160] sm:$0xff]
  %v71 = vld [vmem:[%s0 + $0x168] sm:$0xff]
  %v72 = vld [vmem:[%s0 + $0x170] sm:$0xff]
  %v73 = vld [vmem:[%s0 + $0x178] sm:$0xff]
  %v74 = vld [vmem:[%s0 + $0x180] sm:$0xff]
  %v76 = vperm.slane %v25, 0
  %vm78 = vcmask 72704
  %v80 = vsel %vm78, %v26, 0
  %v83 = vsel %vm78, %v27, 0
  %v86 = vsel %vm78, %v28, 0
  %v89 = vsel %vm78, %v29, 0
  %v92 = vsel %vm78, %v30, 0
  %v95 = vsel %vm78, %v31, 0
  %v98 = vsel %vm78, %v32, 0
  %v101 = vsel %vm78, %v33, 0
  %v104 = vsel %vm78, %v34, 0
  %v107 = vsel %vm78, %v35, 0
  %v110 = vsel %vm78, %v36, 0
  %v113 = vsel %vm78, %v37, 0
  %v116 = vsel %vm78, %v38, 0
  %v119 = vsel %vm78, %v39, 0
  %v122 = vsel %vm78, %v40, 0
  %v125 = vsel %vm78, %v41, 0
  %v128 = vsel %vm78, %v42, 0
  %v131 = vsel %vm78, %v43, 0
  %v134 = vsel %vm78, %v44, 0
  %v137 = vsel %vm78, %v45, 0
  %v140 = vsel %vm78, %v46, 0
  %v143 = vsel %vm78, %v47, 0
  %v146 = vsel %vm78, %v48, 0
  %v149 = vsel %vm78, %v49, 0
  %v152 = vsel %vm78, %v50, 0
  %v155 = vsel %vm78, %v51, 0
  %v158 = vsel %vm78, %v52, 0
  %v161 = vsel %vm78, %v53, 0
  %v164 = vsel %vm78, %v54, 0
  %v167 = vsel %vm78, %v55, 0
  %v170 = vsel %vm78, %v56, 0
  %v173 = vsel %vm78, %v57, 0
  %v176 = vsel %vm78, %v58, 0
  %v179 = vsel %vm78, %v59, 0
  %v182 = vsel %vm78, %v60, 0
  %v185 = vsel %vm78, %v61, 0
  %v188 = vsel %vm78, %v62, 0
  %v191 = vsel %vm78, %v63, 0
  %v194 = vsel %vm78, %v64, 0
  %v197 = vsel %vm78, %v65, 0
  %v200 = vsel %vm78, %v66, 0
  %v203 = vsel %vm78, %v67, 0
  %v206 = vsel %vm78, %v68, 0
  %v209 = vsel %vm78, %v69, 0
  %v212 = vsel %vm78, %v70, 0
  %v215 = vsel %vm78, %v71, 0
  %v218 = vsel %vm78, %v72, 0
  %v221 = vsel %vm78, %v73, 0
  %v224 = vsel %vm78, %v74, 0
  %vm226 = vcmask 1040384
  %v228 = vsel %vm226, %v24, 0
  %230 = vmatpush.msra.mxu0 0.0
  %231 = vmatpush.msra.mxu0 0.0
  %232 = vmatpush.msra.mxu0 0.0
  %233 = vmatpush.msra.mxu0 0.0
  %234 = vmatpush.msra.mxu0 0.0
  %235 = vmatpush.msra.mxu0 0.0
  %236 = vmatpush.msra.mxu0 0.0
  %237 = vmatpush.msra.mxu0 0.0
  %238 = vmatpush.msra.mxu0 0.0
  %239 = vmatpush.msra.mxu0 0.0
  %240 = vmatpush.msra.mxu0 0.0
  %241 = vmatpush.msra.mxu0 0.0
  %242 = vmatpush.msra.mxu0 0.0
  %243 = vmatpush.msra.mxu0 0.0
  %244 = vmatpush.msra.mxu0 %v228
  %245 = vmatpush.msra.mxu0 %v23
  %246 = vmatmul.f32.gmra.mxu0 %v80
  %v247 = vpop.f32.mrf.mxu0
  %v248 = vadd.f32 %v76, %v247
  %249 = vmatmul.f32.gmra.mxu0 %v83
  %v250 = vpop.f32.mrf.mxu0
  %v251 = vadd.f32 %v76, %v250
  %252 = vmatmul.f32.gmra.mxu0 %v86
  %v253 = vpop.f32.mrf.mxu0
  %v254 = vadd.f32 %v76, %v253
  %255 = vmatmul.f32.gmra.mxu0 %v89
  %v256 = vpop.f32.mrf.mxu0
  %v257 = vadd.f32 %v76, %v256
  %258 = vmatmul.f32.gmra.mxu0 %v92
  %v259 = vpop.f32.mrf.mxu0
  %v260 = vadd.f32 %v76, %v259
  %261 = vmatmul.f32.gmra.mxu0 %v95
  %v262 = vpop.f32.mrf.mxu0
  %v263 = vadd.f32 %v76, %v262
  %264 = vmatmul.f32.gmra.mxu0 %v98
  %v265 = vpop.f32.mrf.mxu0
  %v266 = vadd.f32 %v76, %v265
  %267 = vmatmul.f32.gmra.mxu0 %v101
  %v268 = vpop.f32.mrf.mxu0
  %v269 = vadd.f32 %v76, %v268
  %270 = vmatmul.f32.gmra.mxu0 %v104
  %v271 = vpop.f32.mrf.mxu0
  %v272 = vadd.f32 %v76, %v271
  %273 = vmatmul.f32.gmra.mxu0 %v107
  %v274 = vpop.f32.mrf.mxu0
  %v275 = vadd.f32 %v76, %v274
  %276 = vmatmul.f32.gmra.mxu0 %v110
  %v277 = vpop.f32.mrf.mxu0
  %v278 = vadd.f32 %v76, %v277
  %279 = vmatmul.f32.gmra.mxu0 %v113
  %v280 = vpop.f32.mrf.mxu0
  %v281 = vadd.f32 %v76, %v280
  %282 = vmatmul.f32.gmra.mxu0 %v116
  %v283 = vpop.f32.mrf.mxu0
  %v284 = vadd.f32 %v76, %v283
  %285 = vmatmul.f32.gmra.mxu0 %v119
  %v286 = vpop.f32.mrf.mxu0
  %v287 = vadd.f32 %v76, %v286
  %288 = vmatmul.f32.gmra.mxu0 %v122
  %v289 = vpop.f32.mrf.mxu0
  %v290 = vadd.f32 %v76, %v289
  %291 = vmatmul.f32.gmra.mxu0 %v125
  %v292 = vpop.f32.mrf.mxu0
  %v293 = vadd.f32 %v76, %v292
  %294 = vmatmul.f32.gmra.mxu0 %v128
  %v295 = vpop.f32.mrf.mxu0
  %v296 = vadd.f32 %v76, %v295
  %297 = vmatmul.f32.gmra.mxu0 %v131
  %v298 = vpop.f32.mrf.mxu0
  %v299 = vadd.f32 %v76, %v298
  %300 = vmatmul.f32.gmra.mxu0 %v134
  %v301 = vpop.f32.mrf.mxu0
  %v302 = vadd.f32 %v76, %v301
  %303 = vmatmul.f32.gmra.mxu0 %v137
  %v304 = vpop.f32.mrf.mxu0
  %v305 = vadd.f32 %v76, %v304
  %306 = vmatmul.f32.gmra.mxu0 %v140
  %v307 = vpop.f32.mrf.mxu0
  %v308 = vadd.f32 %v76, %v307
  %309 = vmatmul.f32.gmra.mxu0 %v143
  %v310 = vpop.f32.mrf.mxu0
  %v311 = vadd.f32 %v76, %v310
  %312 = vmatmul.f32.gmra.mxu0 %v146
  %v313 = vpop.f32.mrf.mxu0
  %v314 = vadd.f32 %v76, %v313
  %315 = vmatmul.f32.gmra.mxu0 %v149
  %v316 = vpop.f32.mrf.mxu0
  %v317 = vadd.f32 %v76, %v316
  %318 = vmatmul.f32.gmra.mxu0 %v152
  %v319 = vpop.f32.mrf.mxu0
  %v320 = vadd.f32 %v76, %v319
  %321 = vmatmul.f32.gmra.mxu0 %v155
  %v322 = vpop.f32.mrf.mxu0
  %v323 = vadd.f32 %v76, %v322
  %324 = vmatmul.f32.gmra.mxu0 %v158
  %v325 = vpop.f32.mrf.mxu0
  %v326 = vadd.f32 %v76, %v325
  %327 = vmatmul.f32.gmra.mxu0 %v161
  %v328 = vpop.f32.mrf.mxu0
  %v329 = vadd.f32 %v76, %v328
  %330 = vmatmul.f32.gmra.mxu0 %v164
  %v331 = vpop.f32.mrf.mxu0
  %v332 = vadd.f32 %v76, %v331
  %333 = vmatmul.f32.gmra.mxu0 %v167
  %v334 = vpop.f32.mrf.mxu0
  %v335 = vadd.f32 %v76, %v334
  %336 = vmatmul.f32.gmra.mxu0 %v170
  %v337 = vpop.f32.mrf.mxu0
  %v338 = vadd.f32 %v76, %v337
  %339 = vmatmul.f32.gmra.mxu0 %v173
  %v340 = vpop.f32.mrf.mxu0
  %v341 = vadd.f32 %v76, %v340
  %342 = vmatmul.f32.gmra.mxu0 %v176
  %v343 = vpop.f32.mrf.mxu0
  %v344 = vadd.f32 %v76, %v343
  %345 = vmatmul.f32.gmra.mxu0 %v179
  %v346 = vpop.f32.mrf.mxu0
  %v347 = vadd.f32 %v76, %v346
  %348 = vmatmul.f32.gmra.mxu0 %v182
  %v349 = vpop.f32.mrf.mxu0
  %v350 = vadd.f32 %v76, %v349
  %351 = vmatmul.f32.gmra.mxu0 %v185
  %v352 = vpop.f32.mrf.mxu0
  %v353 = vadd.f32 %v76, %v352
  %354 = vmatmul.f32.gmra.mxu0 %v188
  %v355 = vpop.f32.mrf.mxu0
  %v356 = vadd.f32 %v76, %v355
  %357 = vmatmul.f32.gmra.mxu0 %v191
  %v358 = vpop.f32.mrf.mxu0
  %v359 = vadd.f32 %v76, %v358
  %360 = vmatmul.f32.gmra.mxu0 %v194
  %v361 = vpop.f32.mrf.mxu0
  %v362 = vadd.f32 %v76, %v361
  %363 = vmatmul.f32.gmra.mxu0 %v197
  %v364 = vpop.f32.mrf.mxu0
  %v365 = vadd.f32 %v76, %v364
  %366 = vmatmul.f32.gmra.mxu0 %v200
  %v367 = vpop.f32.mrf.mxu0
  %v368 = vadd.f32 %v76, %v367
  %369 = vmatmul.f32.gmra.mxu0 %v203
  %v370 = vpop.f32.mrf.mxu0
  %v371 = vadd.f32 %v76, %v370
  %372 = vmatmul.f32.gmra.mxu0 %v206
  %v373 = vpop.f32.mrf.mxu0
  %v374 = vadd.f32 %v76, %v373
  %375 = vmatmul.f32.gmra.mxu0 %v209
  %v376 = vpop.f32.mrf.mxu0
  %v377 = vadd.f32 %v76, %v376
  %378 = vmatmul.f32.gmra.mxu0 %v212
  %v379 = vpop.f32.mrf.mxu0
  %v380 = vadd.f32 %v76, %v379
  %381 = vmatmul.f32.gmra.mxu0 %v215
  %v382 = vpop.f32.mrf.mxu0
  %v383 = vadd.f32 %v76, %v382
  %384 = vmatmul.f32.gmra.mxu0 %v218
  %v385 = vpop.f32.mrf.mxu0
  %v386 = vadd.f32 %v76, %v385
  %387 = vmatmul.f32.gmra.mxu0 %v221
  %v388 = vpop.f32.mrf.mxu0
  %v389 = vadd.f32 %v76, %v388
  %390 = vmatmul.f32.gmra.mxu0 %v224
  %v391 = vpop.f32.mrf.mxu0
  %v392 = vadd.f32 %v76, %v391
  %393 = vdwg.mxu0
  %v394 = vmax.f32 %v248, 0.0
  %v395 = vmax.f32 %v251, 0.0
  %v396 = vmax.f32 %v254, 0.0
  %v397 = vmax.f32 %v257, 0.0
  %v398 = vmax.f32 %v260, 0.0
  %v399 = vmax.f32 %v263, 0.0
  %v400 = vmax.f32 %v266, 0.0
  %v401 = vmax.f32 %v269, 0.0
  %v402 = vmax.f32 %v272, 0.0
  %v403 = vmax.f32 %v275, 0.0
  %v404 = vmax.f32 %v278, 0.0
  %v405 = vmax.f32 %v281, 0.0
  %v406 = vmax.f32 %v284, 0.0
  %v407 = vmax.f32 %v287, 0.0
  %v408 = vmax.f32 %v290, 0.0
  %v409 = vmax.f32 %v293, 0.0
  %v410 = vmax.f32 %v296, 0.0
  %v411 = vmax.f32 %v299, 0.0
  %v412 = vmax.f32 %v302, 0.0
  %v413 = vmax.f32 %v305, 0.0
  %v414 = vmax.f32 %v308, 0.0
  %v415 = vmax.f32 %v311, 0.0
  %v416 = vmax.f32 %v314, 0.0
  %v417 = vmax.f32 %v317, 0.0
  %v418 = vmax.f32 %v320, 0.0
  %v419 = vmax.f32 %v323, 0.0
  %v420 = vmax.f32 %v326, 0.0
  %v421 = vmax.f32 %v329, 0.0
  %v422 = vmax.f32 %v332, 0.0
  %v423 = vmax.f32 %v335, 0.0
  %v424 = vmax.f32 %v338, 0.0
  %v425 = vmax.f32 %v341, 0.0
  %v426 = vmax.f32 %v344, 0.0
  %v427 = vmax.f32 %v347, 0.0
  %v428 = vmax.f32 %v350, 0.0
  %v429 = vmax.f32 %v353, 0.0
  %v430 = vmax.f32 %v356, 0.0
  %v431 = vmax.f32 %v359, 0.0
  %v432 = vmax.f32 %v362, 0.0
  %v433 = vmax.f32 %v365, 0.0
  %v434 = vmax.f32 %v368, 0.0
  %v435 = vmax.f32 %v371, 0.0
  %v436 = vmax.f32 %v374, 0.0
  %v437 = vmax.f32 %v377, 0.0
  %v438 = vmax.f32 %v380, 0.0
  %v439 = vmax.f32 %v383, 0.0
  %v440 = vmax.f32 %v386, 0.0
  %v441 = vmax.f32 %v389, 0.0
  %v442 = vmax.f32 %v392, 0.0
  %v443 = vld [vmem:[%s1] sm:$0xff]
  %v444 = vld [vmem:[%s1 + $0x8] sm:$0xff]
  %v445 = vld [vmem:[%s1 + $0x10] sm:$0xff]
  %v446 = vld [vmem:[%s1 + $0x18] sm:$0xff]
  %v447 = vld [vmem:[%s1 + $0x20] sm:$0xff]
  %v448 = vld [vmem:[%s1 + $0x28] sm:$0xff]
  %v449 = vld [vmem:[%s1 + $0x30] sm:$0xff]
  %v450 = vld [vmem:[%s1 + $0x38] sm:$0xff]
  %v451 = vld [vmem:[%s1 + $0x40] sm:$0xff]
  %v452 = vld [vmem:[%s1 + $0x48] sm:$0xff]
  %v453 = vld [vmem:[%s1 + $0x50] sm:$0xff]
  %v454 = vld [vmem:[%s1 + $0x58] sm:$0xff]
  %v455 = vld [vmem:[%s1 + $0x60] sm:$0xff]
  %v456 = vld [vmem:[%s1 + $0x68] sm:$0xff]
  %v457 = vld [vmem:[%s1 + $0x70] sm:$0xff]
  %v458 = vld [vmem:[%s1 + $0x78] sm:$0xff]
  %v459 = vld [vmem:[%s1 + $0x80] sm:$0xff]
  %v460 = vld [vmem:[%s1 + $0x88] sm:$0xff]
  %v461 = vld [vmem:[%s1 + $0x90] sm:$0xff]
  %v462 = vld [vmem:[%s1 + $0x98] sm:$0xff]
  %v463 = vld [vmem:[%s1 + $0xa0] sm:$0xff]
  %v464 = vld [vmem:[%s1 + $0xa8] sm:$0xff]
  %v465 = vld [vmem:[%s1 + $0xb0] sm:$0xff]
  %v466 = vld [vmem:[%s1 + $0xb8] sm:$0xff]
  %v467 = vld [vmem:[%s1 + $0xc0] sm:$0xff]
  %v468 = vld [vmem:[%s1 + $0xc8] sm:$0xff]
  %v469 = vld [vmem:[%s1 + $0xd0] sm:$0xff]
  %v470 = vld [vmem:[%s1 + $0xd8] sm:$0xff]
  %v471 = vld [vmem:[%s1 + $0xe0] sm:$0xff]
  %v472 = vld [vmem:[%s1 + $0xe8] sm:$0xff]
  %v473 = vld [vmem:[%s1 + $0xf0] sm:$0xff]
  %v474 = vld [vmem:[%s1 + $0xf8] sm:$0xff]
  %v475 = vld [vmem:[%s1 + $0x100] sm:$0xff]
  %v476 = vld [vmem:[%s1 + $0x108] sm:$0xff]
  %v477 = vld [vmem:[%s1 + $0x110] sm:$0xff]
  %v478 = vld [vmem:[%s1 + $0x118] sm:$0xff]
  %v479 = vld [vmem:[%s1 + $0x120] sm:$0xff]
  %v480 = vld [vmem:[%s1 + $0x128] sm:$0xff]
  %v481 = vld [vmem:[%s1 + $0x130] sm:$0xff]
  %v482 = vld [vmem:[%s1 + $0x138] sm:$0xff]
  %v483 = vld [vmem:[%s1 + $0x140] sm:$0xff]
  %v484 = vld [vmem:[%s1 + $0x148] sm:$0xff]
  %v485 = vld [vmem:[%s1 + $0x150] sm:$0xff]
  %v486 = vld [vmem:[%s1 + $0x158] sm:$0xff]
  %v487 = vld [vmem:[%s1 + $0x160] sm:$0xff]
  %v488 = vld [vmem:[%s1 + $0x168] sm:$0xff]
  %v489 = vld [vmem:[%s1 + $0x170] sm:$0xff]
  %v490 = vld [vmem:[%s1 + $0x178] sm:$0xff]
  %v491 = vld [vmem:[%s1 + $0x180] sm:$0xff]
  %v493 = vsel %vm78, %v443, 0
  %v496 = vsel %vm78, %v444, 0
  %v499 = vsel %vm78, %v445, 0
  %v502 = vsel %vm78, %v446, 0
  %v505 = vsel %vm78, %v447, 0
  %v508 = vsel %vm78, %v448, 0
  %v511 = vsel %vm78, %v449, 0
  %v514 = vsel %vm78, %v450, 0
  %v517 = vsel %vm78, %v451, 0
  %v520 = vsel %vm78, %v452, 0
  %v523 = vsel %vm78, %v453, 0
  %v526 = vsel %vm78, %v454, 0
  %v529 = vsel %vm78, %v455, 0
  %v532 = vsel %vm78, %v456, 0
  %v535 = vsel %vm78, %v457, 0
  %v538 = vsel %vm78, %v458, 0
  %v541 = vsel %vm78, %v459, 0
  %v544 = vsel %vm78, %v460, 0
  %v547 = vsel %vm78, %v461, 0
  %v550 = vsel %vm78, %v462, 0
  %v553 = vsel %vm78, %v463, 0
  %v556 = vsel %vm78, %v464, 0
  %v559 = vsel %vm78, %v465, 0
  %v562 = vsel %vm78, %v466, 0
  %v565 = vsel %vm78, %v467, 0
  %v568 = vsel %vm78, %v468, 0
  %v571 = vsel %vm78, %v469, 0
  %v574 = vsel %vm78, %v470, 0
  %v577 = vsel %vm78, %v471, 0
  %v580 = vsel %vm78, %v472, 0
  %v583 = vsel %vm78, %v473, 0
  %v586 = vsel %vm78, %v474, 0
  %v589 = vsel %vm78, %v475, 0
  %v592 = vsel %vm78, %v476, 0
  %v595 = vsel %vm78, %v477, 0
  %v598 = vsel %vm78, %v478, 0
  %v601 = vsel %vm78, %v479, 0
  %v604 = vsel %vm78, %v480, 0
  %v607 = vsel %vm78, %v481, 0
  %v610 = vsel %vm78, %v482, 0
  %v613 = vsel %vm78, %v483, 0
  %v616 = vsel %vm78, %v484, 0
  %v619 = vsel %vm78, %v485, 0
  %v622 = vsel %vm78, %v486, 0
  %v625 = vsel %vm78, %v487, 0
  %v628 = vsel %vm78, %v488, 0
  %v631 = vsel %vm78, %v489, 0
  %v634 = vsel %vm78, %v490, 0
  %v637 = vsel %vm78, %v491, 0
  %639 = vmatpush.msra.mxu0 0.0
  %640 = vmatpush.msra.mxu0 0.0
  %641 = vmatpush.msra.mxu0 0.0
  %642 = vmatpush.msra.mxu0 0.0
  %643 = vmatpush.msra.mxu0 0.0
  %644 = vmatpush.msra.mxu0 0.0
  %645 = vmatpush.msra.mxu0 0.0
  %646 = vmatpush.msra.mxu0 0.0
  %647 = vmatpush.msra.mxu0 0.0
  %648 = vmatpush.msra.mxu0 0.0
  %649 = vmatpush.msra.mxu0 0.0
  %650 = vmatpush.msra.mxu0 0.0
  %651 = vmatpush.msra.mxu0 0.0
  %652 = vmatpush.msra.mxu0 0.0
  %653 = vmatpush.msra.mxu0 %v228
  %654 = vmatpush.msra.mxu0 %v23
  %655 = vmatmul.f32.gmra.mxu0 %v493
  %v656 = vpop.f32.mrf.mxu0
  %v657 = vadd.f32 %v76, %v656
  %658 = vmatmul.f32.gmra.mxu0 %v496
  %v659 = vpop.f32.mrf.mxu0
  %v660 = vadd.f32 %v76, %v659
  %661 = vmatmul.f32.gmra.mxu0 %v499
  %v662 = vpop.f32.mrf.mxu0
  %v663 = vadd.f32 %v76, %v662
  %664 = vmatmul.f32.gmra.mxu0 %v502
  %v665 = vpop.f32.mrf.mxu0
  %v666 = vadd.f32 %v76, %v665
  %667 = vmatmul.f32.gmra.mxu0 %v505
  %v668 = vpop.f32.mrf.mxu0
  %v669 = vadd.f32 %v76, %v668
  %670 = vmatmul.f32.gmra.mxu0 %v508
  %v671 = vpop.f32.mrf.mxu0
  %v672 = vadd.f32 %v76, %v671
  %673 = vmatmul.f32.gmra.mxu0 %v511
  %v674 = vpop.f32.mrf.mxu0
  %v675 = vadd.f32 %v76, %v674
  %676 = vmatmul.f32.gmra.mxu0 %v514
  %v677 = vpop.f32.mrf.mxu0
  %v678 = vadd.f32 %v76, %v677
  %679 = vmatmul.f32.gmra.mxu0 %v517
  %v680 = vpop.f32.mrf.mxu0
  %v681 = vadd.f32 %v76, %v680
  %682 = vmatmul.f32.gmra.mxu0 %v520
  %v683 = vpop.f32.mrf.mxu0
  %v684 = vadd.f32 %v76, %v683
  %685 = vmatmul.f32.gmra.mxu0 %v523
  %v686 = vpop.f32.mrf.mxu0
  %v687 = vadd.f32 %v76, %v686
  %688 = vmatmul.f32.gmra.mxu0 %v526
  %v689 = vpop.f32.mrf.mxu0
  %v690 = vadd.f32 %v76, %v689
  %691 = vmatmul.f32.gmra.mxu0 %v529
  %v692 = vpop.f32.mrf.mxu0
  %v693 = vadd.f32 %v76, %v692
  %694 = vmatmul.f32.gmra.mxu0 %v532
  %v695 = vpop.f32.mrf.mxu0
  %v696 = vadd.f32 %v76, %v695
  %697 = vmatmul.f32.gmra.mxu0 %v535
  %v698 = vpop.f32.mrf.mxu0
  %v699 = vadd.f32 %v76, %v698
  %700 = vmatmul.f32.gmra.mxu0 %v538
  %v701 = vpop.f32.mrf.mxu0
  %v702 = vadd.f32 %v76, %v701
  %703 = vmatmul.f32.gmra.mxu0 %v541
  %v704 = vpop.f32.mrf.mxu0
  %v705 = vadd.f32 %v76, %v704
  %706 = vmatmul.f32.gmra.mxu0 %v544
  %v707 = vpop.f32.mrf.mxu0
  %v708 = vadd.f32 %v76, %v707
  %709 = vmatmul.f32.gmra.mxu0 %v547
  %v710 = vpop.f32.mrf.mxu0
  %v711 = vadd.f32 %v76, %v710
  %712 = vmatmul.f32.gmra.mxu0 %v550
  %v713 = vpop.f32.mrf.mxu0
  %v714 = vadd.f32 %v76, %v713
  %715 = vmatmul.f32.gmra.mxu0 %v553
  %v716 = vpop.f32.mrf.mxu0
  %v717 = vadd.f32 %v76, %v716
  %718 = vmatmul.f32.gmra.mxu0 %v556
  %v719 = vpop.f32.mrf.mxu0
  %v720 = vadd.f32 %v76, %v719
  %721 = vmatmul.f32.gmra.mxu0 %v559
  %v722 = vpop.f32.mrf.mxu0
  %v723 = vadd.f32 %v76, %v722
  %724 = vmatmul.f32.gmra.mxu0 %v562
  %v725 = vpop.f32.mrf.mxu0
  %v726 = vadd.f32 %v76, %v725
  %727 = vmatmul.f32.gmra.mxu0 %v565
  %v728 = vpop.f32.mrf.mxu0
  %v729 = vadd.f32 %v76, %v728
  %730 = vmatmul.f32.gmra.mxu0 %v568
  %v731 = vpop.f32.mrf.mxu0
  %v732 = vadd.f32 %v76, %v731
  %733 = vmatmul.f32.gmra.mxu0 %v571
  %v734 = vpop.f32.mrf.mxu0
  %v735 = vadd.f32 %v76, %v734
  %736 = vmatmul.f32.gmra.mxu0 %v574
  %v737 = vpop.f32.mrf.mxu0
  %v738 = vadd.f32 %v76, %v737
  %739 = vmatmul.f32.gmra.mxu0 %v577
  %v740 = vpop.f32.mrf.mxu0
  %v741 = vadd.f32 %v76, %v740
  %742 = vmatmul.f32.gmra.mxu0 %v580
  %v743 = vpop.f32.mrf.mxu0
  %v744 = vadd.f32 %v76, %v743
  %745 = vmatmul.f32.gmra.mxu0 %v583
  %v746 = vpop.f32.mrf.mxu0
  %v747 = vadd.f32 %v76, %v746
  %748 = vmatmul.f32.gmra.mxu0 %v586
  %v749 = vpop.f32.mrf.mxu0
  %v750 = vadd.f32 %v76, %v749
  %751 = vmatmul.f32.gmra.mxu0 %v589
  %v752 = vpop.f32.mrf.mxu0
  %v753 = vadd.f32 %v76, %v752
  %754 = vmatmul.f32.gmra.mxu0 %v592
  %v755 = vpop.f32.mrf.mxu0
  %v756 = vadd.f32 %v76, %v755
  %757 = vmatmul.f32.gmra.mxu0 %v595
  %v758 = vpop.f32.mrf.mxu0
  %v759 = vadd.f32 %v76, %v758
  %760 = vmatmul.f32.gmra.mxu0 %v598
  %v761 = vpop.f32.mrf.mxu0
  %v762 = vadd.f32 %v76, %v761
  %763 = vmatmul.f32.gmra.mxu0 %v601
  %v764 = vpop.f32.mrf.mxu0
  %v765 = vadd.f32 %v76, %v764
  %766 = vmatmul.f32.gmra.mxu0 %v604
  %v767 = vpop.f32.mrf.mxu0
  %v768 = vadd.f32 %v76, %v767
  %769 = vmatmul.f32.gmra.mxu0 %v607
  %v770 = vpop.f32.mrf.mxu0
  %v771 = vadd.f32 %v76, %v770
  %772 = vmatmul.f32.gmra.mxu0 %v610
  %v773 = vpop.f32.mrf.mxu0
  %v774 = vadd.f32 %v76, %v773
  %775 = vmatmul.f32.gmra.mxu0 %v613
  %v776 = vpop.f32.mrf.mxu0
  %v777 = vadd.f32 %v76, %v776
  %778 = vmatmul.f32.gmra.mxu0 %v616
  %v779 = vpop.f32.mrf.mxu0
  %v780 = vadd.f32 %v76, %v779
  %781 = vmatmul.f32.gmra.mxu0 %v619
  %v782 = vpop.f32.mrf.mxu0
  %v783 = vadd.f32 %v76, %v782
  %784 = vmatmul.f32.gmra.mxu0 %v622
  %v785 = vpop.f32.mrf.mxu0
  %v786 = vadd.f32 %v76, %v785
  %787 = vmatmul.f32.gmra.mxu0 %v625
  %v788 = vpop.f32.mrf.mxu0
  %v789 = vadd.f32 %v76, %v788
  %790 = vmatmul.f32.gmra.mxu0 %v628
  %v791 = vpop.f32.mrf.mxu0
  %v792 = vadd.f32 %v76, %v791
  %793 = vmatmul.f32.gmra.mxu0 %v631
  %v794 = vpop.f32.mrf.mxu0
  %v795 = vadd.f32 %v76, %v794
  %796 = vmatmul.f32.gmra.mxu0 %v634
  %v797 = vpop.f32.mrf.mxu0
  %v798 = vadd.f32 %v76, %v797
  %799 = vmatmul.f32.gmra.mxu0 %v637
  %v800 = vpop.f32.mrf.mxu0
  %v801 = vadd.f32 %v76, %v800
  %802 = vdwg.mxu0
  %v803 = vmax.f32 %v657, 0.0
  %v804 = vmax.f32 %v660, 0.0
  %v805 = vmax.f32 %v663, 0.0
  %v806 = vmax.f32 %v666, 0.0
  %v807 = vmax.f32 %v669, 0.0
  %v808 = vmax.f32 %v672, 0.0
  %v809 = vmax.f32 %v675, 0.0
  %v810 = vmax.f32 %v678, 0.0
  %v811 = vmax.f32 %v681, 0.0
  %v812 = vmax.f32 %v684, 0.0
  %v813 = vmax.f32 %v687, 0.0
  %v814 = vmax.f32 %v690, 0.0
  %v815 = vmax.f32 %v693, 0.0
  %v816 = vmax.f32 %v696, 0.0
  %v817 = vmax.f32 %v699, 0.0
  %v818 = vmax.f32 %v702, 0.0
  %v819 = vmax.f32 %v705, 0.0
  %v820 = vmax.f32 %v708, 0.0
  %v821 = vmax.f32 %v711, 0.0
  %v822 = vmax.f32 %v714, 0.0
  %v823 = vmax.f32 %v717, 0.0
  %v824 = vmax.f32 %v720, 0.0
  %v825 = vmax.f32 %v723, 0.0
  %v826 = vmax.f32 %v726, 0.0
  %v827 = vmax.f32 %v729, 0.0
  %v828 = vmax.f32 %v732, 0.0
  %v829 = vmax.f32 %v735, 0.0
  %v830 = vmax.f32 %v738, 0.0
  %v831 = vmax.f32 %v741, 0.0
  %v832 = vmax.f32 %v744, 0.0
  %v833 = vmax.f32 %v747, 0.0
  %v834 = vmax.f32 %v750, 0.0
  %v835 = vmax.f32 %v753, 0.0
  %v836 = vmax.f32 %v756, 0.0
  %v837 = vmax.f32 %v759, 0.0
  %v838 = vmax.f32 %v762, 0.0
  %v839 = vmax.f32 %v765, 0.0
  %v840 = vmax.f32 %v768, 0.0
  %v841 = vmax.f32 %v771, 0.0
  %v842 = vmax.f32 %v774, 0.0
  %v843 = vmax.f32 %v777, 0.0
  %v844 = vmax.f32 %v780, 0.0
  %v845 = vmax.f32 %v783, 0.0
  %v846 = vmax.f32 %v786, 0.0
  %v847 = vmax.f32 %v789, 0.0
  %v848 = vmax.f32 %v792, 0.0
  %v849 = vmax.f32 %v795, 0.0
  %v850 = vmax.f32 %v798, 0.0
  %v851 = vmax.f32 %v801, 0.0
  %v852 = vmax.f32 %v394, %v803
  %v853 = vmax.f32 %v395, %v804
  %v854 = vmax.f32 %v396, %v805
  %v855 = vmax.f32 %v397, %v806
  %v856 = vmax.f32 %v398, %v807
  %v857 = vmax.f32 %v399, %v808
  %v858 = vmax.f32 %v400, %v809
  %v859 = vmax.f32 %v401, %v810
  %v860 = vmax.f32 %v402, %v811
  %v861 = vmax.f32 %v403, %v812
  %v862 = vmax.f32 %v404, %v813
  %v863 = vmax.f32 %v405, %v814
  %v864 = vmax.f32 %v406, %v815
  %v865 = vmax.f32 %v407, %v816
  %v866 = vmax.f32 %v408, %v817
  %v867 = vmax.f32 %v409, %v818
  %v868 = vmax.f32 %v410, %v819
  %v869 = vmax.f32 %v411, %v820
  %v870 = vmax.f32 %v412, %v821
  %v871 = vmax.f32 %v413, %v822
  %v872 = vmax.f32 %v414, %v823
  %v873 = vmax.f32 %v415, %v824
  %v874 = vmax.f32 %v416, %v825
  %v875 = vmax.f32 %v417, %v826
  %v876 = vmax.f32 %v418, %v827
  %v877 = vmax.f32 %v419, %v828
  %v878 = vmax.f32 %v420, %v829
  %v879 = vmax.f32 %v421, %v830
  %v880 = vmax.f32 %v422, %v831
  %v881 = vmax.f32 %v423, %v832
  %v882 = vmax.f32 %v424, %v833
  %v883 = vmax.f32 %v425, %v834
  %v884 = vmax.f32 %v426, %v835
  %v885 = vmax.f32 %v427, %v836
  %v886 = vmax.f32 %v428, %v837
  %v887 = vmax.f32 %v429, %v838
  %v888 = vmax.f32 %v430, %v839
  %v889 = vmax.f32 %v431, %v840
  %v890 = vmax.f32 %v432, %v841
  %v891 = vmax.f32 %v433, %v842
  %v892 = vmax.f32 %v434, %v843
  %v893 = vmax.f32 %v435, %v844
  %v894 = vmax.f32 %v436, %v845
  %v895 = vmax.f32 %v437, %v846
  %v896 = vmax.f32 %v438, %v847
  %v897 = vmax.f32 %v439, %v848
  %v898 = vmax.f32 %v440, %v849
  %v899 = vmax.f32 %v441, %v850
  %v900 = vmax.f32 %v442, %v851
  %v901 = vld [vmem:[%s2] sm:$0xff]
  %v902 = vld [vmem:[%s2 + $0x8] sm:$0xff]
  %v903 = vld [vmem:[%s2 + $0x10] sm:$0xff]
  %v904 = vld [vmem:[%s2 + $0x18] sm:$0xff]
  %v905 = vld [vmem:[%s2 + $0x20] sm:$0xff]
  %v906 = vld [vmem:[%s2 + $0x28] sm:$0xff]
  %v907 = vld [vmem:[%s2 + $0x30] sm:$0xff]
  %v908 = vld [vmem:[%s2 + $0x38] sm:$0xff]
  %v909 = vld [vmem:[%s2 + $0x40] sm:$0xff]
  %v910 = vld [vmem:[%s2 + $0x48] sm:$0xff]
  %v911 = vld [vmem:[%s2 + $0x50] sm:$0xff]
  %v912 = vld [vmem:[%s2 + $0x58] sm:$0xff]
  %v913 = vld [vmem:[%s2 + $0x60] sm:$0xff]
  %v914 = vld [vmem:[%s2 + $0x68] sm:$0xff]
  %v915 = vld [vmem:[%s2 + $0x70] sm:$0xff]
  %v916 = vld [vmem:[%s2 + $0x78] sm:$0xff]
  %v917 = vld [vmem:[%s2 + $0x80] sm:$0xff]
  %v918 = vld [vmem:[%s2 + $0x88] sm:$0xff]
  %v919 = vld [vmem:[%s2 + $0x90] sm:$0xff]
  %v920 = vld [vmem:[%s2 + $0x98] sm:$0xff]
  %v921 = vld [vmem:[%s2 + $0xa0] sm:$0xff]
  %v922 = vld [vmem:[%s2 + $0xa8] sm:$0xff]
  %v923 = vld [vmem:[%s2 + $0xb0] sm:$0xff]
  %v924 = vld [vmem:[%s2 + $0xb8] sm:$0xff]
  %v925 = vld [vmem:[%s2 + $0xc0] sm:$0xff]
  %v926 = vld [vmem:[%s2 + $0xc8] sm:$0xff]
  %v927 = vld [vmem:[%s2 + $0xd0] sm:$0xff]
  %v928 = vld [vmem:[%s2 + $0xd8] sm:$0xff]
  %v929 = vld [vmem:[%s2 + $0xe0] sm:$0xff]
  %v930 = vld [vmem:[%s2 + $0xe8] sm:$0xff]
  %v931 = vld [vmem:[%s2 + $0xf0] sm:$0xff]
  %v932 = vld [vmem:[%s2 + $0xf8] sm:$0xff]
  %v933 = vld [vmem:[%s2 + $0x100] sm:$0xff]
  %v934 = vld [vmem:[%s2 + $0x108] sm:$0xff]
  %v935 = vld [vmem:[%s2 + $0x110] sm:$0xff]
  %v936 = vld [vmem:[%s2 + $0x118] sm:$0xff]
  %v937 = vld [vmem:[%s2 + $0x120] sm:$0xff]
  %v938 = vld [vmem:[%s2 + $0x128] sm:$0xff]
  %v939 = vld [vmem:[%s2 + $0x130] sm:$0xff]
  %v940 = vld [vmem:[%s2 + $0x138] sm:$0xff]
  %v941 = vld [vmem:[%s2 + $0x140] sm:$0xff]
  %v942 = vld [vmem:[%s2 + $0x148] sm:$0xff]
  %v943 = vld [vmem:[%s2 + $0x150] sm:$0xff]
  %v944 = vld [vmem:[%s2 + $0x158] sm:$0xff]
  %v945 = vld [vmem:[%s2 + $0x160] sm:$0xff]
  %v946 = vld [vmem:[%s2 + $0x168] sm:$0xff]
  %v947 = vld [vmem:[%s2 + $0x170] sm:$0xff]
  %v948 = vld [vmem:[%s2 + $0x178] sm:$0xff]
  %v949 = vld [vmem:[%s2 + $0x180] sm:$0xff]
  %v951 = vsel %vm78, %v901, 0
  %v954 = vsel %vm78, %v902, 0
  %v957 = vsel %vm78, %v903, 0
  %v960 = vsel %vm78, %v904, 0
  %v963 = vsel %vm78, %v905, 0
  %v966 = vsel %vm78, %v906, 0
  %v969 = vsel %vm78, %v907, 0
  %v972 = vsel %vm78, %v908, 0
  %v975 = vsel %vm78, %v909, 0
  %v978 = vsel %vm78, %v910, 0
  %v981 = vsel %vm78, %v911, 0
  %v984 = vsel %vm78, %v912, 0
  %v987 = vsel %vm78, %v913, 0
  %v990 = vsel %vm78, %v914, 0
  %v993 = vsel %vm78, %v915, 0
  %v996 = vsel %vm78, %v916, 0
  %v999 = vsel %vm78, %v917, 0
  %v1002 = vsel %vm78, %v918, 0
  %v1005 = vsel %vm78, %v919, 0
  %v1008 = vsel %vm78, %v920, 0
  %v1011 = vsel %vm78, %v921, 0
  %v1014 = vsel %vm78, %v922, 0
  %v1017 = vsel %vm78, %v923, 0
  %v1020 = vsel %vm78, %v924, 0
  %v1023 = vsel %vm78, %v925, 0
  %v1026 = vsel %vm78, %v926, 0
  %v1029 = vsel %vm78, %v927, 0
  %v1032 = vsel %vm78, %v928, 0
  %v1035 = vsel %vm78, %v929, 0
  %v1038 = vsel %vm78, %v930, 0
  %v1041 = vsel %vm78, %v931, 0
  %v1044 = vsel %vm78, %v932, 0
  %v1047 = vsel %vm78, %v933, 0
  %v1050 = vsel %vm78, %v934, 0
  %v1053 = vsel %vm78, %v935, 0
  %v1056 = vsel %vm78, %v936, 0
  %v1059 = vsel %vm78, %v937, 0
  %v1062 = vsel %vm78, %v938, 0
  %v1065 = vsel %vm78, %v939, 0
  %v1068 = vsel %vm78, %v940, 0
  %v1071 = vsel %vm78, %v941, 0
  %v1074 = vsel %vm78, %v942, 0
  %v1077 = vsel %vm78, %v943, 0
  %v1080 = vsel %vm78, %v944, 0
  %v1083 = vsel %vm78, %v945, 0
  %v1086 = vsel %vm78, %v946, 0
  %v1089 = vsel %vm78, %v947, 0
  %v1092 = vsel %vm78, %v948, 0
  %v1095 = vsel %vm78, %v949, 0
  %1097 = vmatpush.msra.mxu0 0.0
  %1098 = vmatpush.msra.mxu0 0.0
  %1099 = vmatpush.msra.mxu0 0.0
  %1100 = vmatpush.msra.mxu0 0.0
  %1101 = vmatpush.msra.mxu0 0.0
  %1102 = vmatpush.msra.mxu0 0.0
  %1103 = vmatpush.msra.mxu0 0.0
  %1104 = vmatpush.msra.mxu0 0.0
  %1105 = vmatpush.msra.mxu0 0.0
  %1106 = vmatpush.msra.mxu0 0.0
  %1107 = vmatpush.msra.mxu0 0.0
  %1108 = vmatpush.msra.mxu0 0.0
  %1109 = vmatpush.msra.mxu0 0.0
  %1110 = vmatpush.msra.mxu0 0.0
  %1111 = vmatpush.msra.mxu0 %v228
  %1112 = vmatpush.msra.mxu0 %v23
  %1113 = vmatmul.f32.gmra.mxu0 %v951
  %v1114 = vpop.f32.mrf.mxu0
  %v1115 = vadd.f32 %v76, %v1114
  %1116 = vmatmul.f32.gmra.mxu0 %v954
  %v1117 = vpop.f32.mrf.mxu0
  %v1118 = vadd.f32 %v76, %v1117
  %1119 = vmatmul.f32.gmra.mxu0 %v957
  %v1120 = vpop.f32.mrf.mxu0
  %v1121 = vadd.f32 %v76, %v1120
  %1122 = vmatmul.f32.gmra.mxu0 %v960
  %v1123 = vpop.f32.mrf.mxu0
  %v1124 = vadd.f32 %v76, %v1123
  %1125 = vmatmul.f32.gmra.mxu0 %v963
  %v1126 = vpop.f32.mrf.mxu0
  %v1127 = vadd.f32 %v76, %v1126
  %1128 = vmatmul.f32.gmra.mxu0 %v966
  %v1129 = vpop.f32.mrf.mxu0
  %v1130 = vadd.f32 %v76, %v1129
  %1131 = vmatmul.f32.gmra.mxu0 %v969
  %v1132 = vpop.f32.mrf.mxu0
  %v1133 = vadd.f32 %v76, %v1132
  %1134 = vmatmul.f32.gmra.mxu0 %v972
  %v1135 = vpop.f32.mrf.mxu0
  %v1136 = vadd.f32 %v76, %v1135
  %1137 = vmatmul.f32.gmra.mxu0 %v975
  %v1138 = vpop.f32.mrf.mxu0
  %v1139 = vadd.f32 %v76, %v1138
  %1140 = vmatmul.f32.gmra.mxu0 %v978
  %v1141 = vpop.f32.mrf.mxu0
  %v1142 = vadd.f32 %v76, %v1141
  %1143 = vmatmul.f32.gmra.mxu0 %v981
  %v1144 = vpop.f32.mrf.mxu0
  %v1145 = vadd.f32 %v76, %v1144
  %1146 = vmatmul.f32.gmra.mxu0 %v984
  %v1147 = vpop.f32.mrf.mxu0
  %v1148 = vadd.f32 %v76, %v1147
  %1149 = vmatmul.f32.gmra.mxu0 %v987
  %v1150 = vpop.f32.mrf.mxu0
  %v1151 = vadd.f32 %v76, %v1150
  %1152 = vmatmul.f32.gmra.mxu0 %v990
  %v1153 = vpop.f32.mrf.mxu0
  %v1154 = vadd.f32 %v76, %v1153
  %1155 = vmatmul.f32.gmra.mxu0 %v993
  %v1156 = vpop.f32.mrf.mxu0
  %v1157 = vadd.f32 %v76, %v1156
  %1158 = vmatmul.f32.gmra.mxu0 %v996
  %v1159 = vpop.f32.mrf.mxu0
  %v1160 = vadd.f32 %v76, %v1159
  %1161 = vmatmul.f32.gmra.mxu0 %v999
  %v1162 = vpop.f32.mrf.mxu0
  %v1163 = vadd.f32 %v76, %v1162
  %1164 = vmatmul.f32.gmra.mxu0 %v1002
  %v1165 = vpop.f32.mrf.mxu0
  %v1166 = vadd.f32 %v76, %v1165
  %1167 = vmatmul.f32.gmra.mxu0 %v1005
  %v1168 = vpop.f32.mrf.mxu0
  %v1169 = vadd.f32 %v76, %v1168
  %1170 = vmatmul.f32.gmra.mxu0 %v1008
  %v1171 = vpop.f32.mrf.mxu0
  %v1172 = vadd.f32 %v76, %v1171
  %1173 = vmatmul.f32.gmra.mxu0 %v1011
  %v1174 = vpop.f32.mrf.mxu0
  %v1175 = vadd.f32 %v76, %v1174
  %1176 = vmatmul.f32.gmra.mxu0 %v1014
  %v1177 = vpop.f32.mrf.mxu0
  %v1178 = vadd.f32 %v76, %v1177
  %1179 = vmatmul.f32.gmra.mxu0 %v1017
  %v1180 = vpop.f32.mrf.mxu0
  %v1181 = vadd.f32 %v76, %v1180
  %1182 = vmatmul.f32.gmra.mxu0 %v1020
  %v1183 = vpop.f32.mrf.mxu0
  %v1184 = vadd.f32 %v76, %v1183
  %1185 = vmatmul.f32.gmra.mxu0 %v1023
  %v1186 = vpop.f32.mrf.mxu0
  %v1187 = vadd.f32 %v76, %v1186
  %1188 = vmatmul.f32.gmra.mxu0 %v1026
  %v1189 = vpop.f32.mrf.mxu0
  %v1190 = vadd.f32 %v76, %v1189
  %1191 = vmatmul.f32.gmra.mxu0 %v1029
  %v1192 = vpop.f32.mrf.mxu0
  %v1193 = vadd.f32 %v76, %v1192
  %1194 = vmatmul.f32.gmra.mxu0 %v1032
  %v1195 = vpop.f32.mrf.mxu0
  %v1196 = vadd.f32 %v76, %v1195
  %1197 = vmatmul.f32.gmra.mxu0 %v1035
  %v1198 = vpop.f32.mrf.mxu0
  %v1199 = vadd.f32 %v76, %v1198
  %1200 = vmatmul.f32.gmra.mxu0 %v1038
  %v1201 = vpop.f32.mrf.mxu0
  %v1202 = vadd.f32 %v76, %v1201
  %1203 = vmatmul.f32.gmra.mxu0 %v1041
  %v1204 = vpop.f32.mrf.mxu0
  %v1205 = vadd.f32 %v76, %v1204
  %1206 = vmatmul.f32.gmra.mxu0 %v1044
  %v1207 = vpop.f32.mrf.mxu0
  %v1208 = vadd.f32 %v76, %v1207
  %1209 = vmatmul.f32.gmra.mxu0 %v1047
  %v1210 = vpop.f32.mrf.mxu0
  %v1211 = vadd.f32 %v76, %v1210
  %1212 = vmatmul.f32.gmra.mxu0 %v1050
  %v1213 = vpop.f32.mrf.mxu0
  %v1214 = vadd.f32 %v76, %v1213
  %1215 = vmatmul.f32.gmra.mxu0 %v1053
  %v1216 = vpop.f32.mrf.mxu0
  %v1217 = vadd.f32 %v76, %v1216
  %1218 = vmatmul.f32.gmra.mxu0 %v1056
  %v1219 = vpop.f32.mrf.mxu0
  %v1220 = vadd.f32 %v76, %v1219
  %1221 = vmatmul.f32.gmra.mxu0 %v1059
  %v1222 = vpop.f32.mrf.mxu0
  %v1223 = vadd.f32 %v76, %v1222
  %1224 = vmatmul.f32.gmra.mxu0 %v1062
  %v1225 = vpop.f32.mrf.mxu0
  %v1226 = vadd.f32 %v76, %v1225
  %1227 = vmatmul.f32.gmra.mxu0 %v1065
  %v1228 = vpop.f32.mrf.mxu0
  %v1229 = vadd.f32 %v76, %v1228
  %1230 = vmatmul.f32.gmra.mxu0 %v1068
  %v1231 = vpop.f32.mrf.mxu0
  %v1232 = vadd.f32 %v76, %v1231
  %1233 = vmatmul.f32.gmra.mxu0 %v1071
  %v1234 = vpop.f32.mrf.mxu0
  %v1235 = vadd.f32 %v76, %v1234
  %1236 = vmatmul.f32.gmra.mxu0 %v1074
  %v1237 = vpop.f32.mrf.mxu0
  %v1238 = vadd.f32 %v76, %v1237
  %1239 = vmatmul.f32.gmra.mxu0 %v1077
  %v1240 = vpop.f32.mrf.mxu0
  %v1241 = vadd.f32 %v76, %v1240
  %1242 = vmatmul.f32.gmra.mxu0 %v1080
  %v1243 = vpop.f32.mrf.mxu0
  %v1244 = vadd.f32 %v76, %v1243
  %1245 = vmatmul.f32.gmra.mxu0 %v1083
  %v1246 = vpop.f32.mrf.mxu0
  %v1247 = vadd.f32 %v76, %v1246
  %1248 = vmatmul.f32.gmra.mxu0 %v1086
  %v1249 = vpop.f32.mrf.mxu0
  %v1250 = vadd.f32 %v76, %v1249
  %1251 = vmatmul.f32.gmra.mxu0 %v1089
  %v1252 = vpop.f32.mrf.mxu0
  %v1253 = vadd.f32 %v76, %v1252
  %1254 = vmatmul.f32.gmra.mxu0 %v1092
  %v1255 = vpop.f32.mrf.mxu0
  %v1256 = vadd.f32 %v76, %v1255
  %1257 = vmatmul.f32.gmra.mxu0 %v1095
  %v1258 = vpop.f32.mrf.mxu0
  %v1259 = vadd.f32 %v76, %v1258
  %1260 = vdwg.mxu0
  %v1261 = vmax.f32 %v1115, 0.0
  %v1262 = vmax.f32 %v1118, 0.0
  %v1263 = vmax.f32 %v1121, 0.0
  %v1264 = vmax.f32 %v1124, 0.0
  %v1265 = vmax.f32 %v1127, 0.0
  %v1266 = vmax.f32 %v1130, 0.0
  %v1267 = vmax.f32 %v1133, 0.0
  %v1268 = vmax.f32 %v1136, 0.0
  %v1269 = vmax.f32 %v1139, 0.0
  %v1270 = vmax.f32 %v1142, 0.0
  %v1271 = vmax.f32 %v1145, 0.0
  %v1272 = vmax.f32 %v1148, 0.0
  %v1273 = vmax.f32 %v1151, 0.0
  %v1274 = vmax.f32 %v1154, 0.0
  %v1275 = vmax.f32 %v1157, 0.0
  %v1276 = vmax.f32 %v1160, 0.0
  %v1277 = vmax.f32 %v1163, 0.0
  %v1278 = vmax.f32 %v1166, 0.0
  %v1279 = vmax.f32 %v1169, 0.0
  %v1280 = vmax.f32 %v1172, 0.0
  %v1281 = vmax.f32 %v1175, 0.0
  %v1282 = vmax.f32 %v1178, 0.0
  %v1283 = vmax.f32 %v1181, 0.0
  %v1284 = vmax.f32 %v1184, 0.0
  %v1285 = vmax.f32 %v1187, 0.0
  %v1286 = vmax.f32 %v1190, 0.0
  %v1287 = vmax.f32 %v1193, 0.0
  %v1288 = vmax.f32 %v1196, 0.0
  %v1289 = vmax.f32 %v1199, 0.0
  %v1290 = vmax.f32 %v1202, 0.0
  %v1291 = vmax.f32 %v1205, 0.0
  %v1292 = vmax.f32 %v1208, 0.0
  %v1293 = vmax.f32 %v1211, 0.0
  %v1294 = vmax.f32 %v1214, 0.0
  %v1295 = vmax.f32 %v1217, 0.0
  %v1296 = vmax.f32 %v1220, 0.0
  %v1297 = vmax.f32 %v1223, 0.0
  %v1298 = vmax.f32 %v1226, 0.0
  %v1299 = vmax.f32 %v1229, 0.0
  %v1300 = vmax.f32 %v1232, 0.0
  %v1301 = vmax.f32 %v1235, 0.0
  %v1302 = vmax.f32 %v1238, 0.0
  %v1303 = vmax.f32 %v1241, 0.0
  %v1304 = vmax.f32 %v1244, 0.0
  %v1305 = vmax.f32 %v1247, 0.0
  %v1306 = vmax.f32 %v1250, 0.0
  %v1307 = vmax.f32 %v1253, 0.0
  %v1308 = vmax.f32 %v1256, 0.0
  %v1309 = vmax.f32 %v1259, 0.0
  %v1310 = vld [vmem:[%s3] sm:$0xff]
  %v1311 = vld [vmem:[%s3 + $0x8] sm:$0xff]
  %v1312 = vld [vmem:[%s3 + $0x10] sm:$0xff]
  %v1313 = vld [vmem:[%s3 + $0x18] sm:$0xff]
  %v1314 = vld [vmem:[%s3 + $0x20] sm:$0xff]
  %v1315 = vld [vmem:[%s3 + $0x28] sm:$0xff]
  %v1316 = vld [vmem:[%s3 + $0x30] sm:$0xff]
  %v1317 = vld [vmem:[%s3 + $0x38] sm:$0xff]
  %v1318 = vld [vmem:[%s3 + $0x40] sm:$0xff]
  %v1319 = vld [vmem:[%s3 + $0x48] sm:$0xff]
  %v1320 = vld [vmem:[%s3 + $0x50] sm:$0xff]
  %v1321 = vld [vmem:[%s3 + $0x58] sm:$0xff]
  %v1322 = vld [vmem:[%s3 + $0x60] sm:$0xff]
  %v1323 = vld [vmem:[%s3 + $0x68] sm:$0xff]
  %v1324 = vld [vmem:[%s3 + $0x70] sm:$0xff]
  %v1325 = vld [vmem:[%s3 + $0x78] sm:$0xff]
  %v1326 = vld [vmem:[%s3 + $0x80] sm:$0xff]
  %v1327 = vld [vmem:[%s3 + $0x88] sm:$0xff]
  %v1328 = vld [vmem:[%s3 + $0x90] sm:$0xff]
  %v1329 = vld [vmem:[%s3 + $0x98] sm:$0xff]
  %v1330 = vld [vmem:[%s3 + $0xa0] sm:$0xff]
  %v1331 = vld [vmem:[%s3 + $0xa8] sm:$0xff]
  %v1332 = vld [vmem:[%s3 + $0xb0] sm:$0xff]
  %v1333 = vld [vmem:[%s3 + $0xb8] sm:$0xff]
  %v1334 = vld [vmem:[%s3 + $0xc0] sm:$0xff]
  %v1335 = vld [vmem:[%s3 + $0xc8] sm:$0xff]
  %v1336 = vld [vmem:[%s3 + $0xd0] sm:$0xff]
  %v1337 = vld [vmem:[%s3 + $0xd8] sm:$0xff]
  %v1338 = vld [vmem:[%s3 + $0xe0] sm:$0xff]
  %v1339 = vld [vmem:[%s3 + $0xe8] sm:$0xff]
  %v1340 = vld [vmem:[%s3 + $0xf0] sm:$0xff]
  %v1341 = vld [vmem:[%s3 + $0xf8] sm:$0xff]
  %v1342 = vld [vmem:[%s3 + $0x100] sm:$0xff]
  %v1343 = vld [vmem:[%s3 + $0x108] sm:$0xff]
  %v1344 = vld [vmem:[%s3 + $0x110] sm:$0xff]
  %v1345 = vld [vmem:[%s3 + $0x118] sm:$0xff]
  %v1346 = vld [vmem:[%s3 + $0x120] sm:$0xff]
  %v1347 = vld [vmem:[%s3 + $0x128] sm:$0xff]
  %v1348 = vld [vmem:[%s3 + $0x130] sm:$0xff]
  %v1349 = vld [vmem:[%s3 + $0x138] sm:$0xff]
  %v1350 = vld [vmem:[%s3 + $0x140] sm:$0xff]
  %v1351 = vld [vmem:[%s3 + $0x148] sm:$0xff]
  %v1352 = vld [vmem:[%s3 + $0x150] sm:$0xff]
  %v1353 = vld [vmem:[%s3 + $0x158] sm:$0xff]
  %v1354 = vld [vmem:[%s3 + $0x160] sm:$0xff]
  %v1355 = vld [vmem:[%s3 + $0x168] sm:$0xff]
  %v1356 = vld [vmem:[%s3 + $0x170] sm:$0xff]
  %v1357 = vld [vmem:[%s3 + $0x178] sm:$0xff]
  %v1358 = vld [vmem:[%s3 + $0x180] sm:$0xff]
  %v1360 = vsel %vm78, %v1310, 0
  %v1363 = vsel %vm78, %v1311, 0
  %v1366 = vsel %vm78, %v1312, 0
  %v1369 = vsel %vm78, %v1313, 0
  %v1372 = vsel %vm78, %v1314, 0
  %v1375 = vsel %vm78, %v1315, 0
  %v1378 = vsel %vm78, %v1316, 0
  %v1381 = vsel %vm78, %v1317, 0
  %v1384 = vsel %vm78, %v1318, 0
  %v1387 = vsel %vm78, %v1319, 0
  %v1390 = vsel %vm78, %v1320, 0
  %v1393 = vsel %vm78, %v1321, 0
  %v1396 = vsel %vm78, %v1322, 0
  %v1399 = vsel %vm78, %v1323, 0
  %v1402 = vsel %vm78, %v1324, 0
  %v1405 = vsel %vm78, %v1325, 0
  %v1408 = vsel %vm78, %v1326, 0
  %v1411 = vsel %vm78, %v1327, 0
  %v1414 = vsel %vm78, %v1328, 0
  %v1417 = vsel %vm78, %v1329, 0
  %v1420 = vsel %vm78, %v1330, 0
  %v1423 = vsel %vm78, %v1331, 0
  %v1426 = vsel %vm78, %v1332, 0
  %v1429 = vsel %vm78, %v1333, 0
  %v1432 = vsel %vm78, %v1334, 0
  %v1435 = vsel %vm78, %v1335, 0
  %v1438 = vsel %vm78, %v1336, 0
  %v1441 = vsel %vm78, %v1337, 0
  %v1444 = vsel %vm78, %v1338, 0
  %v1447 = vsel %vm78, %v1339, 0
  %v1450 = vsel %vm78, %v1340, 0
  %v1453 = vsel %vm78, %v1341, 0
  %v1456 = vsel %vm78, %v1342, 0
  %v1459 = vsel %vm78, %v1343, 0
  %v1462 = vsel %vm78, %v1344, 0
  %v1465 = vsel %vm78, %v1345, 0
  %v1468 = vsel %vm78, %v1346, 0
  %v1471 = vsel %vm78, %v1347, 0
  %v1474 = vsel %vm78, %v1348, 0
  %v1477 = vsel %vm78, %v1349, 0
  %v1480 = vsel %vm78, %v1350, 0
  %v1483 = vsel %vm78, %v1351, 0
  %v1486 = vsel %vm78, %v1352, 0
  %v1489 = vsel %vm78, %v1353, 0
  %v1492 = vsel %vm78, %v1354, 0
  %v1495 = vsel %vm78, %v1355, 0
  %v1498 = vsel %vm78, %v1356, 0
  %v1501 = vsel %vm78, %v1357, 0
  %v1504 = vsel %vm78, %v1358, 0
  %1506 = vmatpush.msra.mxu0 0.0
  %1507 = vmatpush.msra.mxu0 0.0
  %1508 = vmatpush.msra.mxu0 0.0
  %1509 = vmatpush.msra.mxu0 0.0
  %1510 = vmatpush.msra.mxu0 0.0
  %1511 = vmatpush.msra.mxu0 0.0
  %1512 = vmatpush.msra.mxu0 0.0
  %1513 = vmatpush.msra.mxu0 0.0
  %1514 = vmatpush.msra.mxu0 0.0
  %1515 = vmatpush.msra.mxu0 0.0
  %1516 = vmatpush.msra.mxu0 0.0
  %1517 = vmatpush.msra.mxu0 0.0
  %1518 = vmatpush.msra.mxu0 0.0
  %1519 = vmatpush.msra.mxu0 0.0
  %1520 = vmatpush.msra.mxu0 %v228
  %1521 = vmatpush.msra.mxu0 %v23
  %1522 = vmatmul.f32.gmra.mxu0 %v1360
  %v1523 = vpop.f32.mrf.mxu0
  %v1524 = vadd.f32 %v76, %v1523
  %1525 = vmatmul.f32.gmra.mxu0 %v1363
  %v1526 = vpop.f32.mrf.mxu0
  %v1527 = vadd.f32 %v76, %v1526
  %1528 = vmatmul.f32.gmra.mxu0 %v1366
  %v1529 = vpop.f32.mrf.mxu0
  %v1530 = vadd.f32 %v76, %v1529
  %1531 = vmatmul.f32.gmra.mxu0 %v1369
  %v1532 = vpop.f32.mrf.mxu0
  %v1533 = vadd.f32 %v76, %v1532
  %1534 = vmatmul.f32.gmra.mxu0 %v1372
  %v1535 = vpop.f32.mrf.mxu0
  %v1536 = vadd.f32 %v76, %v1535
  %1537 = vmatmul.f32.gmra.mxu0 %v1375
  %v1538 = vpop.f32.mrf.mxu0
  %v1539 = vadd.f32 %v76, %v1538
  %1540 = vmatmul.f32.gmra.mxu0 %v1378
  %v1541 = vpop.f32.mrf.mxu0
  %v1542 = vadd.f32 %v76, %v1541
  %1543 = vmatmul.f32.gmra.mxu0 %v1381
  %v1544 = vpop.f32.mrf.mxu0
  %v1545 = vadd.f32 %v76, %v1544
  %1546 = vmatmul.f32.gmra.mxu0 %v1384
  %v1547 = vpop.f32.mrf.mxu0
  %v1548 = vadd.f32 %v76, %v1547
  %1549 = vmatmul.f32.gmra.mxu0 %v1387
  %v1550 = vpop.f32.mrf.mxu0
  %v1551 = vadd.f32 %v76, %v1550
  %1552 = vmatmul.f32.gmra.mxu0 %v1390
  %v1553 = vpop.f32.mrf.mxu0
  %v1554 = vadd.f32 %v76, %v1553
  %1555 = vmatmul.f32.gmra.mxu0 %v1393
  %v1556 = vpop.f32.mrf.mxu0
  %v1557 = vadd.f32 %v76, %v1556
  %1558 = vmatmul.f32.gmra.mxu0 %v1396
  %v1559 = vpop.f32.mrf.mxu0
  %v1560 = vadd.f32 %v76, %v1559
  %1561 = vmatmul.f32.gmra.mxu0 %v1399
  %v1562 = vpop.f32.mrf.mxu0
  %v1563 = vadd.f32 %v76, %v1562
  %1564 = vmatmul.f32.gmra.mxu0 %v1402
  %v1565 = vpop.f32.mrf.mxu0
  %v1566 = vadd.f32 %v76, %v1565
  %1567 = vmatmul.f32.gmra.mxu0 %v1405
  %v1568 = vpop.f32.mrf.mxu0
  %v1569 = vadd.f32 %v76, %v1568
  %1570 = vmatmul.f32.gmra.mxu0 %v1408
  %v1571 = vpop.f32.mrf.mxu0
  %v1572 = vadd.f32 %v76, %v1571
  %1573 = vmatmul.f32.gmra.mxu0 %v1411
  %v1574 = vpop.f32.mrf.mxu0
  %v1575 = vadd.f32 %v76, %v1574
  %1576 = vmatmul.f32.gmra.mxu0 %v1414
  %v1577 = vpop.f32.mrf.mxu0
  %v1578 = vadd.f32 %v76, %v1577
  %1579 = vmatmul.f32.gmra.mxu0 %v1417
  %v1580 = vpop.f32.mrf.mxu0
  %v1581 = vadd.f32 %v76, %v1580
  %1582 = vmatmul.f32.gmra.mxu0 %v1420
  %v1583 = vpop.f32.mrf.mxu0
  %v1584 = vadd.f32 %v76, %v1583
  %1585 = vmatmul.f32.gmra.mxu0 %v1423
  %v1586 = vpop.f32.mrf.mxu0
  %v1587 = vadd.f32 %v76, %v1586
  %1588 = vmatmul.f32.gmra.mxu0 %v1426
  %v1589 = vpop.f32.mrf.mxu0
  %v1590 = vadd.f32 %v76, %v1589
  %1591 = vmatmul.f32.gmra.mxu0 %v1429
  %v1592 = vpop.f32.mrf.mxu0
  %v1593 = vadd.f32 %v76, %v1592
  %1594 = vmatmul.f32.gmra.mxu0 %v1432
  %v1595 = vpop.f32.mrf.mxu0
  %v1596 = vadd.f32 %v76, %v1595
  %1597 = vmatmul.f32.gmra.mxu0 %v1435
  %v1598 = vpop.f32.mrf.mxu0
  %v1599 = vadd.f32 %v76, %v1598
  %1600 = vmatmul.f32.gmra.mxu0 %v1438
  %v1601 = vpop.f32.mrf.mxu0
  %v1602 = vadd.f32 %v76, %v1601
  %1603 = vmatmul.f32.gmra.mxu0 %v1441
  %v1604 = vpop.f32.mrf.mxu0
  %v1605 = vadd.f32 %v76, %v1604
  %1606 = vmatmul.f32.gmra.mxu0 %v1444
  %v1607 = vpop.f32.mrf.mxu0
  %v1608 = vadd.f32 %v76, %v1607
  %1609 = vmatmul.f32.gmra.mxu0 %v1447
  %v1610 = vpop.f32.mrf.mxu0
  %v1611 = vadd.f32 %v76, %v1610
  %1612 = vmatmul.f32.gmra.mxu0 %v1450
  %v1613 = vpop.f32.mrf.mxu0
  %v1614 = vadd.f32 %v76, %v1613
  %1615 = vmatmul.f32.gmra.mxu0 %v1453
  %v1616 = vpop.f32.mrf.mxu0
  %v1617 = vadd.f32 %v76, %v1616
  %1618 = vmatmul.f32.gmra.mxu0 %v1456
  %v1619 = vpop.f32.mrf.mxu0
  %v1620 = vadd.f32 %v76, %v1619
  %1621 = vmatmul.f32.gmra.mxu0 %v1459
  %v1622 = vpop.f32.mrf.mxu0
  %v1623 = vadd.f32 %v76, %v1622
  %1624 = vmatmul.f32.gmra.mxu0 %v1462
  %v1625 = vpop.f32.mrf.mxu0
  %v1626 = vadd.f32 %v76, %v1625
  %1627 = vmatmul.f32.gmra.mxu0 %v1465
  %v1628 = vpop.f32.mrf.mxu0
  %v1629 = vadd.f32 %v76, %v1628
  %1630 = vmatmul.f32.gmra.mxu0 %v1468
  %v1631 = vpop.f32.mrf.mxu0
  %v1632 = vadd.f32 %v76, %v1631
  %1633 = vmatmul.f32.gmra.mxu0 %v1471
  %v1634 = vpop.f32.mrf.mxu0
  %v1635 = vadd.f32 %v76, %v1634
  %1636 = vmatmul.f32.gmra.mxu0 %v1474
  %v1637 = vpop.f32.mrf.mxu0
  %v1638 = vadd.f32 %v76, %v1637
  %1639 = vmatmul.f32.gmra.mxu0 %v1477
  %v1640 = vpop.f32.mrf.mxu0
  %v1641 = vadd.f32 %v76, %v1640
  %1642 = vmatmul.f32.gmra.mxu0 %v1480
  %v1643 = vpop.f32.mrf.mxu0
  %v1644 = vadd.f32 %v76, %v1643
  %1645 = vmatmul.f32.gmra.mxu0 %v1483
  %v1646 = vpop.f32.mrf.mxu0
  %v1647 = vadd.f32 %v76, %v1646
  %1648 = vmatmul.f32.gmra.mxu0 %v1486
  %v1649 = vpop.f32.mrf.mxu0
  %v1650 = vadd.f32 %v76, %v1649
  %1651 = vmatmul.f32.gmra.mxu0 %v1489
  %v1652 = vpop.f32.mrf.mxu0
  %v1653 = vadd.f32 %v76, %v1652
  %1654 = vmatmul.f32.gmra.mxu0 %v1492
  %v1655 = vpop.f32.mrf.mxu0
  %v1656 = vadd.f32 %v76, %v1655
  %1657 = vmatmul.f32.gmra.mxu0 %v1495
  %v1658 = vpop.f32.mrf.mxu0
  %v1659 = vadd.f32 %v76, %v1658
  %1660 = vmatmul.f32.gmra.mxu0 %v1498
  %v1661 = vpop.f32.mrf.mxu0
  %v1662 = vadd.f32 %v76, %v1661
  %1663 = vmatmul.f32.gmra.mxu0 %v1501
  %v1664 = vpop.f32.mrf.mxu0
  %v1665 = vadd.f32 %v76, %v1664
  %1666 = vmatmul.f32.gmra.mxu0 %v1504
  %v1667 = vpop.f32.mrf.mxu0
  %v1668 = vadd.f32 %v76, %v1667
  %1669 = vdwg.mxu0
  %v1670 = vmax.f32 %v1524, 0.0
  %v1671 = vmax.f32 %v1527, 0.0
  %v1672 = vmax.f32 %v1530, 0.0
  %v1673 = vmax.f32 %v1533, 0.0
  %v1674 = vmax.f32 %v1536, 0.0
  %v1675 = vmax.f32 %v1539, 0.0
  %v1676 = vmax.f32 %v1542, 0.0
  %v1677 = vmax.f32 %v1545, 0.0
  %v1678 = vmax.f32 %v1548, 0.0
  %v1679 = vmax.f32 %v1551, 0.0
  %v1680 = vmax.f32 %v1554, 0.0
  %v1681 = vmax.f32 %v1557, 0.0
  %v1682 = vmax.f32 %v1560, 0.0
  %v1683 = vmax.f32 %v1563, 0.0
  %v1684 = vmax.f32 %v1566, 0.0
  %v1685 = vmax.f32 %v1569, 0.0
  %v1686 = vmax.f32 %v1572, 0.0
  %v1687 = vmax.f32 %v1575, 0.0
  %v1688 = vmax.f32 %v1578, 0.0
  %v1689 = vmax.f32 %v1581, 0.0
  %v1690 = vmax.f32 %v1584, 0.0
  %v1691 = vmax.f32 %v1587, 0.0
  %v1692 = vmax.f32 %v1590, 0.0
  %v1693 = vmax.f32 %v1593, 0.0
  %v1694 = vmax.f32 %v1596, 0.0
  %v1695 = vmax.f32 %v1599, 0.0
  %v1696 = vmax.f32 %v1602, 0.0
  %v1697 = vmax.f32 %v1605, 0.0
  %v1698 = vmax.f32 %v1608, 0.0
  %v1699 = vmax.f32 %v1611, 0.0
  %v1700 = vmax.f32 %v1614, 0.0
  %v1701 = vmax.f32 %v1617, 0.0
  %v1702 = vmax.f32 %v1620, 0.0
  %v1703 = vmax.f32 %v1623, 0.0
  %v1704 = vmax.f32 %v1626, 0.0
  %v1705 = vmax.f32 %v1629, 0.0
  %v1706 = vmax.f32 %v1632, 0.0
  %v1707 = vmax.f32 %v1635, 0.0
  %v1708 = vmax.f32 %v1638, 0.0
  %v1709 = vmax.f32 %v1641, 0.0
  %v1710 = vmax.f32 %v1644, 0.0
  %v1711 = vmax.f32 %v1647, 0.0
  %v1712 = vmax.f32 %v1650, 0.0
  %v1713 = vmax.f32 %v1653, 0.0
  %v1714 = vmax.f32 %v1656, 0.0
  %v1715 = vmax.f32 %v1659, 0.0
  %v1716 = vmax.f32 %v1662, 0.0
  %v1717 = vmax.f32 %v1665, 0.0
  %v1718 = vmax.f32 %v1668, 0.0
  %v1719 = vmax.f32 %v1261, %v1670
  %v1720 = vmax.f32 %v1262, %v1671
  %v1721 = vmax.f32 %v1263, %v1672
  %v1722 = vmax.f32 %v1264, %v1673
  %v1723 = vmax.f32 %v1265, %v1674
  %v1724 = vmax.f32 %v1266, %v1675
  %v1725 = vmax.f32 %v1267, %v1676
  %v1726 = vmax.f32 %v1268, %v1677
  %v1727 = vmax.f32 %v1269, %v1678
  %v1728 = vmax.f32 %v1270, %v1679
  %v1729 = vmax.f32 %v1271, %v1680
  %v1730 = vmax.f32 %v1272, %v1681
  %v1731 = vmax.f32 %v1273, %v1682
  %v1732 = vmax.f32 %v1274, %v1683
  %v1733 = vmax.f32 %v1275, %v1684
  %v1734 = vmax.f32 %v1276, %v1685
  %v1735 = vmax.f32 %v1277, %v1686
  %v1736 = vmax.f32 %v1278, %v1687
  %v1737 = vmax.f32 %v1279, %v1688
  %v1738 = vmax.f32 %v1280, %v1689
  %v1739 = vmax.f32 %v1281, %v1690
  %v1740 = vmax.f32 %v1282, %v1691
  %v1741 = vmax.f32 %v1283, %v1692
  %v1742 = vmax.f32 %v1284, %v1693
  %v1743 = vmax.f32 %v1285, %v1694
  %v1744 = vmax.f32 %v1286, %v1695
  %v1745 = vmax.f32 %v1287, %v1696
  %v1746 = vmax.f32 %v1288, %v1697
  %v1747 = vmax.f32 %v1289, %v1698
  %v1748 = vmax.f32 %v1290, %v1699
  %v1749 = vmax.f32 %v1291, %v1700
  %v1750 = vmax.f32 %v1292, %v1701
  %v1751 = vmax.f32 %v1293, %v1702
  %v1752 = vmax.f32 %v1294, %v1703
  %v1753 = vmax.f32 %v1295, %v1704
  %v1754 = vmax.f32 %v1296, %v1705
  %v1755 = vmax.f32 %v1297, %v1706
  %v1756 = vmax.f32 %v1298, %v1707
  %v1757 = vmax.f32 %v1299, %v1708
  %v1758 = vmax.f32 %v1300, %v1709
  %v1759 = vmax.f32 %v1301, %v1710
  %v1760 = vmax.f32 %v1302, %v1711
  %v1761 = vmax.f32 %v1303, %v1712
  %v1762 = vmax.f32 %v1304, %v1713
  %v1763 = vmax.f32 %v1305, %v1714
  %v1764 = vmax.f32 %v1306, %v1715
  %v1765 = vmax.f32 %v1307, %v1716
  %v1766 = vmax.f32 %v1308, %v1717
  %v1767 = vmax.f32 %v1309, %v1718
  %v1768 = vmax.f32 %v852, %v1719
  %v1769 = vmax.f32 %v853, %v1720
  %v1770 = vmax.f32 %v854, %v1721
  %v1771 = vmax.f32 %v855, %v1722
  %v1772 = vmax.f32 %v856, %v1723
  %v1773 = vmax.f32 %v857, %v1724
  %v1774 = vmax.f32 %v858, %v1725
  %v1775 = vmax.f32 %v859, %v1726
  %v1776 = vmax.f32 %v860, %v1727
  %v1777 = vmax.f32 %v861, %v1728
  %v1778 = vmax.f32 %v862, %v1729
  %v1779 = vmax.f32 %v863, %v1730
  %v1780 = vmax.f32 %v864, %v1731
  %v1781 = vmax.f32 %v865, %v1732
  %v1782 = vmax.f32 %v866, %v1733
  %v1783 = vmax.f32 %v867, %v1734
  %v1784 = vmax.f32 %v868, %v1735
  %v1785 = vmax.f32 %v869, %v1736
  %v1786 = vmax.f32 %v870, %v1737
  %v1787 = vmax.f32 %v871, %v1738
  %v1788 = vmax.f32 %v872, %v1739
  %v1789 = vmax.f32 %v873, %v1740
  %v1790 = vmax.f32 %v874, %v1741
  %v1791 = vmax.f32 %v875, %v1742
  %v1792 = vmax.f32 %v876, %v1743
  %v1793 = vmax.f32 %v877, %v1744
  %v1794 = vmax.f32 %v878, %v1745
  %v1795 = vmax.f32 %v879, %v1746
  %v1796 = vmax.f32 %v880, %v1747
  %v1797 = vmax.f32 %v881, %v1748
  %v1798 = vmax.f32 %v882, %v1749
  %v1799 = vmax.f32 %v883, %v1750
  %v1800 = vmax.f32 %v884, %v1751
  %v1801 = vmax.f32 %v885, %v1752
  %v1802 = vmax.f32 %v886, %v1753
  %v1803 = vmax.f32 %v887, %v1754
  %v1804 = vmax.f32 %v888, %v1755
  %v1805 = vmax.f32 %v889, %v1756
  %v1806 = vmax.f32 %v890, %v1757
  %v1807 = vmax.f32 %v891, %v1758
  %v1808 = vmax.f32 %v892, %v1759
  %v1809 = vmax.f32 %v893, %v1760
  %v1810 = vmax.f32 %v894, %v1761
  %v1811 = vmax.f32 %v895, %v1762
  %v1812 = vmax.f32 %v896, %v1763
  %v1813 = vmax.f32 %v897, %v1764
  %v1814 = vmax.f32 %v898, %v1765
  %v1815 = vmax.f32 %v899, %v1766
  %v1816 = vmax.f32 %v900, %v1767
  %1817 = vst [vmem:[%s6] sm:$0xff] %v1768
  %1818 = vst [vmem:[%s6 + $0x8] sm:$0xff] %v1769
  %1819 = vst [vmem:[%s6 + $0x10] sm:$0xff] %v1770
  %1820 = vst [vmem:[%s6 + $0x18] sm:$0xff] %v1771
  %1821 = vst [vmem:[%s6 + $0x20] sm:$0xff] %v1772
  %1822 = vst [vmem:[%s6 + $0x28] sm:$0xff] %v1773
  %1823 = vst [vmem:[%s6 + $0x30] sm:$0xff] %v1774
  %1824 = vst [vmem:[%s6 + $0x38] sm:$0xff] %v1775
  %1825 = vst [vmem:[%s6 + $0x40] sm:$0xff] %v1776
  %1826 = vst [vmem:[%s6 + $0x48] sm:$0xff] %v1777
  %1827 = vst [vmem:[%s6 + $0x50] sm:$0xff] %v1778
  %1828 = vst [vmem:[%s6 + $0x58] sm:$0xff] %v1779
  %1829 = vst [vmem:[%s6 + $0x60] sm:$0xff] %v1780
  %1830 = vst [vmem:[%s6 + $0x68] sm:$0xff] %v1781
  %1831 = vst [vmem:[%s6 + $0x70] sm:$0xff] %v1782
  %1832 = vst [vmem:[%s6 + $0x78] sm:$0xff] %v1783
  %1833 = vst [vmem:[%s6 + $0x80] sm:$0xff] %v1784
  %1834 = vst [vmem:[%s6 + $0x88] sm:$0xff] %v1785
  %1835 = vst [vmem:[%s6 + $0x90] sm:$0xff] %v1786
  %1836 = vst [vmem:[%s6 + $0x98] sm:$0xff] %v1787
  %1837 = vst [vmem:[%s6 + $0xa0] sm:$0xff] %v1788
  %1838 = vst [vmem:[%s6 + $0xa8] sm:$0xff] %v1789
  %1839 = vst [vmem:[%s6 + $0xb0] sm:$0xff] %v1790
  %1840 = vst [vmem:[%s6 + $0xb8] sm:$0xff] %v1791
  %1841 = vst [vmem:[%s6 + $0xc0] sm:$0xff] %v1792
  %1842 = vst [vmem:[%s6 + $0xc8] sm:$0xff] %v1793
  %1843 = vst [vmem:[%s6 + $0xd0] sm:$0xff] %v1794
  %1844 = vst [vmem:[%s6 + $0xd8] sm:$0xff] %v1795
  %1845 = vst [vmem:[%s6 + $0xe0] sm:$0xff] %v1796
  %1846 = vst [vmem:[%s6 + $0xe8] sm:$0xff] %v1797
  %1847 = vst [vmem:[%s6 + $0xf0] sm:$0xff] %v1798
  %1848 = vst [vmem:[%s6 + $0xf8] sm:$0xff] %v1799
  %1849 = vst [vmem:[%s6 + $0x100] sm:$0xff] %v1800
  %1850 = vst [vmem:[%s6 + $0x108] sm:$0xff] %v1801
  %1851 = vst [vmem:[%s6 + $0x110] sm:$0xff] %v1802
  %1852 = vst [vmem:[%s6 + $0x118] sm:$0xff] %v1803
  %1853 = vst [vmem:[%s6 + $0x120] sm:$0xff] %v1804
  %1854 = vst [vmem:[%s6 + $0x128] sm:$0xff] %v1805
  %1855 = vst [vmem:[%s6 + $0x130] sm:$0xff] %v1806
  %1856 = vst [vmem:[%s6 + $0x138] sm:$0xff] %v1807
  %1857 = vst [vmem:[%s6 + $0x140] sm:$0xff] %v1808
  %1858 = vst [vmem:[%s6 + $0x148] sm:$0xff] %v1809
  %1859 = vst [vmem:[%s6 + $0x150] sm:$0xff] %v1810
  %1860 = vst [vmem:[%s6 + $0x158] sm:$0xff] %v1811
  %1861 = vst [vmem:[%s6 + $0x160] sm:$0xff] %v1812
  %1862 = vst [vmem:[%s6 + $0x168] sm:$0xff] %v1813
  %1863 = vst [vmem:[%s6 + $0x170] sm:$0xff] %v1814
  %1864 = vst [vmem:[%s6 + $0x178] sm:$0xff] %v1815
  %1865 = vst [vmem:[%s6 + $0x180] sm:$0xff] %v1816
  // Predicated region
  $region26: #{cnn_mnist1_forward.3} parent=0 // pred_check
    _
  $region27: #{cnn_mnist1_forward.3} parent=0 // pred_check_branch
    %1867 = sbr.rel (0) target = $region29
  $region28: #{cnn_mnist1_forward.3} parent=0 // pred_region
    _
  $region29: #{cnn_mnist1_forward.3} parent=0 // pred_fallthru
    _
  // Predicated region
  $region30: #{cnn_mnist1_forward.3} parent=0 // pred_check
    _
  $region31: #{cnn_mnist1_forward.3} parent=0 // pred_check_branch
    %1869 = sbr.rel (0) target = $region33
  $region32: #{cnn_mnist1_forward.3} parent=0 // pred_region
    _
  $region33: #{cnn_mnist1_forward.3} parent=0 // pred_fallthru
    _

// kernel: cnn_mnist1_forward.4
$region0: #{cnn_mnist1_forward.4}
  #allocation0 [shape = 'u32[]', space=smem, size = 0x4, offset = 0x4, fixed_abs, tag = 'smem constant byte address 0x4 - core index']
  #allocation1 [shape = 'u32[72,128]{1,0:T(1,128)}', space=vmem, size = 0x9000, scoped, tag = 'internal scratch']
  %s0 = inlined_call_operand.vmem [shape: f32[104,36], index: 0, kind: input, shape index: {}]
  %s1 = inlined_call_operand.vmem [shape: f32[104,36], index: 1, kind: input, shape index: {}]
  %s2 = inlined_call_operand.vmem [shape: f32[104,36], index: 2, kind: input, shape index: {}]
  %s3 = inlined_call_operand.vmem [shape: f32[104,36], index: 3, kind: input, shape index: {}]
  %s4 = inlined_call_operand.vmem [shape: f32[36,128], index: 4, kind: input, shape index: {}]
  %s5 = inlined_call_operand.vmem [shape: f32[1,128], index: 5, kind: input, shape index: {}]
  %s6 = inlined_call_operand.vmem [shape: f32[104,128], index: 6, kind: output, shape index: {}]
  %s7 = sld [smem:[#allocation0]]
  $region34: #{cnn_mnist1_forward.4} parent=0
    _
  %s9 = ssub.s32 1, %s7
  %s10 = scalar_select 0, %s9, %s7
  // Predicated region
  $region2: #{cnn_mnist1_forward.4} parent=0 // pred_check
    _
  $region3: #{cnn_mnist1_forward.4} parent=0 // pred_check_branch
    %12 = sbr.rel (0) target = $region5
  $region4: #{cnn_mnist1_forward.4} parent=0 // pred_region
    _
  $region5: #{cnn_mnist1_forward.4} parent=0 // pred_fallthru
    _
  // Predicated region
  $region6: #{cnn_mnist1_forward.4} parent=0 // pred_check
    _
  $region7: #{cnn_mnist1_forward.4} parent=0 // pred_check_branch
    %14 = sbr.rel (0) target = $region9
  $region8: #{cnn_mnist1_forward.4} parent=0 // pred_region
    _
  $region9: #{cnn_mnist1_forward.4} parent=0 // pred_fallthru
    _
  // Predicated region
  $region10: #{cnn_mnist1_forward.4} parent=0 // pred_check
    _
  $region11: #{cnn_mnist1_forward.4} parent=0 // pred_check_branch
    %16 = sbr.rel (0) target = $region13
  $region12: #{cnn_mnist1_forward.4} parent=0 // pred_region
    _
  $region13: #{cnn_mnist1_forward.4} parent=0 // pred_fallthru
    _
  // Predicated region
  $region14: #{cnn_mnist1_forward.4} parent=0 // pred_check
    _
  $region15: #{cnn_mnist1_forward.4} parent=0 // pred_check_branch
    %18 = sbr.rel (0) target = $region17
  $region16: #{cnn_mnist1_forward.4} parent=0 // pred_region
    _
  $region17: #{cnn_mnist1_forward.4} parent=0 // pred_fallthru
    _
  // Predicated region
  $region18: #{cnn_mnist1_forward.4} parent=0 // pred_check
    _
  $region19: #{cnn_mnist1_forward.4} parent=0 // pred_check_branch
    %20 = sbr.rel (0) target = $region21
  $region20: #{cnn_mnist1_forward.4} parent=0 // pred_region
    _
  $region21: #{cnn_mnist1_forward.4} parent=0 // pred_fallthru
    _
  // Predicated region
  $region22: #{cnn_mnist1_forward.4} parent=0 // pred_check
    _
  $region23: #{cnn_mnist1_forward.4} parent=0 // pred_check_branch
    %22 = sbr.rel (0) target = $region25
  $region24: #{cnn_mnist1_forward.4} parent=0 // pred_region
    _
  $region25: #{cnn_mnist1_forward.4} parent=0 // pred_fallthru
    _
  %v23 = vld [vmem:[%s4] sm:$0xff]
  %v24 = vld [vmem:[%s4 + $0x8] sm:$0xff]
  %v25 = vld [vmem:[%s4 + $0x10] sm:$0xff]
  %v26 = vld [vmem:[%s4 + $0x18] sm:$0xff]
  %v27 = vld [vmem:[%s4 + $0x20] sm:$0xf]
  %v28 = vld [vmem:[%s5] sm:$0x1]
  %v29 = vld [vmem:[%s0] sm:$0xff]
  %v30 = vld [vmem:[%s0 + $0x8] sm:$0xff]
  %v31 = vld [vmem:[%s0 + $0x10] sm:$0xff]
  %v32 = vld [vmem:[%s0 + $0x18] sm:$0xff]
  %v33 = vld [vmem:[%s0 + $0x20] sm:$0xff]
  %v34 = vld [vmem:[%s0 + $0x28] sm:$0xff]
  %v35 = vld [vmem:[%s0 + $0x30] sm:$0xff]
  %v36 = vld [vmem:[%s0 + $0x38] sm:$0xff]
  %v37 = vld [vmem:[%s0 + $0x40] sm:$0xff]
  %v38 = vld [vmem:[%s0 + $0x48] sm:$0xff]
  %v39 = vld [vmem:[%s0 + $0x50] sm:$0xff]
  %v40 = vld [vmem:[%s0 + $0x58] sm:$0xff]
  %v41 = vld [vmem:[%s0 + $0x60] sm:$0xff]
  %v43 = vperm.slane %v28, 0
  %vm45 = vcmask 293888
  %v47 = vsel %vm45, %v29, 0
  %v50 = vsel %vm45, %v30, 0
  %v53 = vsel %vm45, %v31, 0
  %v56 = vsel %vm45, %v32, 0
  %v59 = vsel %vm45, %v33, 0
  %v62 = vsel %vm45, %v34, 0
  %v65 = vsel %vm45, %v35, 0
  %v68 = vsel %vm45, %v36, 0
  %v71 = vsel %vm45, %v37, 0
  %v74 = vsel %vm45, %v38, 0
  %v77 = vsel %vm45, %v39, 0
  %v80 = vsel %vm45, %v40, 0
  %v83 = vsel %vm45, %v41, 0
  %vm85 = vcmask 1043456
  %v87 = vsel %vm85, %v27, 0
  %89 = vmatpush.msra.mxu0 0.0
  %90 = vmatpush.msra.mxu0 0.0
  %91 = vmatpush.msra.mxu0 0.0
  %92 = vmatpush.msra.mxu0 0.0
  %93 = vmatpush.msra.mxu0 0.0
  %94 = vmatpush.msra.mxu0 0.0
  %95 = vmatpush.msra.mxu0 0.0
  %96 = vmatpush.msra.mxu0 0.0
  %97 = vmatpush.msra.mxu0 0.0
  %98 = vmatpush.msra.mxu0 0.0
  %99 = vmatpush.msra.mxu0 0.0
  %100 = vmatpush.msra.mxu0 %v87
  %101 = vmatpush.msra.mxu0 %v26
  %102 = vmatpush.msra.mxu0 %v25
  %103 = vmatpush.msra.mxu0 %v24
  %104 = vmatpush.msra.mxu0 %v23
  %105 = vmatmul.f32.gmra.mxu0 %v47
  %v106 = vpop.f32.mrf.mxu0
  %v107 = vadd.f32 %v43, %v106
  %108 = vmatmul.f32.gmra.mxu0 %v50
  %v109 = vpop.f32.mrf.mxu0
  %v110 = vadd.f32 %v43, %v109
  %111 = vmatmul.f32.gmra.mxu0 %v53
  %v112 = vpop.f32.mrf.mxu0
  %v113 = vadd.f32 %v43, %v112
  %114 = vmatmul.f32.gmra.mxu0 %v56
  %v115 = vpop.f32.mrf.mxu0
  %v116 = vadd.f32 %v43, %v115
  %117 = vmatmul.f32.gmra.mxu0 %v59
  %v118 = vpop.f32.mrf.mxu0
  %v119 = vadd.f32 %v43, %v118
  %120 = vmatmul.f32.gmra.mxu0 %v62
  %v121 = vpop.f32.mrf.mxu0
  %v122 = vadd.f32 %v43, %v121
  %123 = vmatmul.f32.gmra.mxu0 %v65
  %v124 = vpop.f32.mrf.mxu0
  %v125 = vadd.f32 %v43, %v124
  %126 = vmatmul.f32.gmra.mxu0 %v68
  %v127 = vpop.f32.mrf.mxu0
  %v128 = vadd.f32 %v43, %v127
  %129 = vmatmul.f32.gmra.mxu0 %v71
  %v130 = vpop.f32.mrf.mxu0
  %v131 = vadd.f32 %v43, %v130
  %132 = vmatmul.f32.gmra.mxu0 %v74
  %v133 = vpop.f32.mrf.mxu0
  %v134 = vadd.f32 %v43, %v133
  %135 = vmatmul.f32.gmra.mxu0 %v77
  %v136 = vpop.f32.mrf.mxu0
  %v137 = vadd.f32 %v43, %v136
  %138 = vmatmul.f32.gmra.mxu0 %v80
  %v139 = vpop.f32.mrf.mxu0
  %v140 = vadd.f32 %v43, %v139
  %141 = vmatmul.f32.gmra.mxu0 %v83
  %v142 = vpop.f32.mrf.mxu0
  %v143 = vadd.f32 %v43, %v142
  %144 = vdwg.mxu0
  %v145 = vmax.f32 %v107, 0.0
  %v146 = vmax.f32 %v110, 0.0
  %v147 = vmax.f32 %v113, 0.0
  %v148 = vmax.f32 %v116, 0.0
  %v149 = vmax.f32 %v119, 0.0
  %v150 = vmax.f32 %v122, 0.0
  %v151 = vmax.f32 %v125, 0.0
  %v152 = vmax.f32 %v128, 0.0
  %v153 = vmax.f32 %v131, 0.0
  %v154 = vmax.f32 %v134, 0.0
  %v155 = vmax.f32 %v137, 0.0
  %v156 = vmax.f32 %v140, 0.0
  %v157 = vmax.f32 %v143, 0.0
  %v158 = vld [vmem:[%s1] sm:$0xff]
  %v159 = vld [vmem:[%s1 + $0x8] sm:$0xff]
  %v160 = vld [vmem:[%s1 + $0x10] sm:$0xff]
  %v161 = vld [vmem:[%s1 + $0x18] sm:$0xff]
  %v162 = vld [vmem:[%s1 + $0x20] sm:$0xff]
  %v163 = vld [vmem:[%s1 + $0x28] sm:$0xff]
  %v164 = vld [vmem:[%s1 + $0x30] sm:$0xff]
  %v165 = vld [vmem:[%s1 + $0x38] sm:$0xff]
  %v166 = vld [vmem:[%s1 + $0x40] sm:$0xff]
  %v167 = vld [vmem:[%s1 + $0x48] sm:$0xff]
  %v168 = vld [vmem:[%s1 + $0x50] sm:$0xff]
  %v169 = vld [vmem:[%s1 + $0x58] sm:$0xff]
  %v170 = vld [vmem:[%s1 + $0x60] sm:$0xff]
  %v172 = vsel %vm45, %v158, 0
  %v175 = vsel %vm45, %v159, 0
  %v178 = vsel %vm45, %v160, 0
  %v181 = vsel %vm45, %v161, 0
  %v184 = vsel %vm45, %v162, 0
  %v187 = vsel %vm45, %v163, 0
  %v190 = vsel %vm45, %v164, 0
  %v193 = vsel %vm45, %v165, 0
  %v196 = vsel %vm45, %v166, 0
  %v199 = vsel %vm45, %v167, 0
  %v202 = vsel %vm45, %v168, 0
  %v205 = vsel %vm45, %v169, 0
  %v208 = vsel %vm45, %v170, 0
  %210 = vmatpush.msra.mxu0 0.0
  %211 = vmatpush.msra.mxu0 0.0
  %212 = vmatpush.msra.mxu0 0.0
  %213 = vmatpush.msra.mxu0 0.0
  %214 = vmatpush.msra.mxu0 0.0
  %215 = vmatpush.msra.mxu0 0.0
  %216 = vmatpush.msra.mxu0 0.0
  %217 = vmatpush.msra.mxu0 0.0
  %218 = vmatpush.msra.mxu0 0.0
  %219 = vmatpush.msra.mxu0 0.0
  %220 = vmatpush.msra.mxu0 0.0
  %221 = vmatpush.msra.mxu0 %v87
  %222 = vmatpush.msra.mxu0 %v26
  %223 = vmatpush.msra.mxu0 %v25
  %224 = vmatpush.msra.mxu0 %v24
  %225 = vmatpush.msra.mxu0 %v23
  %226 = vmatmul.f32.gmra.mxu0 %v172
  %v227 = vpop.f32.mrf.mxu0
  %v228 = vadd.f32 %v43, %v227
  %229 = vmatmul.f32.gmra.mxu0 %v175
  %v230 = vpop.f32.mrf.mxu0
  %v231 = vadd.f32 %v43, %v230
  %232 = vmatmul.f32.gmra.mxu0 %v178
  %v233 = vpop.f32.mrf.mxu0
  %v234 = vadd.f32 %v43, %v233
  %235 = vmatmul.f32.gmra.mxu0 %v181
  %v236 = vpop.f32.mrf.mxu0
  %v237 = vadd.f32 %v43, %v236
  %238 = vmatmul.f32.gmra.mxu0 %v184
  %v239 = vpop.f32.mrf.mxu0
  %v240 = vadd.f32 %v43, %v239
  %241 = vmatmul.f32.gmra.mxu0 %v187
  %v242 = vpop.f32.mrf.mxu0
  %v243 = vadd.f32 %v43, %v242
  %244 = vmatmul.f32.gmra.mxu0 %v190
  %v245 = vpop.f32.mrf.mxu0
  %v246 = vadd.f32 %v43, %v245
  %247 = vmatmul.f32.gmra.mxu0 %v193
  %v248 = vpop.f32.mrf.mxu0
  %v249 = vadd.f32 %v43, %v248
  %250 = vmatmul.f32.gmra.mxu0 %v196
  %v251 = vpop.f32.mrf.mxu0
  %v252 = vadd.f32 %v43, %v251
  %253 = vmatmul.f32.gmra.mxu0 %v199
  %v254 = vpop.f32.mrf.mxu0
  %v255 = vadd.f32 %v43, %v254
  %256 = vmatmul.f32.gmra.mxu0 %v202
  %v257 = vpop.f32.mrf.mxu0
  %v258 = vadd.f32 %v43, %v257
  %259 = vmatmul.f32.gmra.mxu0 %v205
  %v260 = vpop.f32.mrf.mxu0
  %v261 = vadd.f32 %v43, %v260
  %262 = vmatmul.f32.gmra.mxu0 %v208
  %v263 = vpop.f32.mrf.mxu0
  %v264 = vadd.f32 %v43, %v263
  %265 = vdwg.mxu0
  %v266 = vmax.f32 %v228, 0.0
  %v267 = vmax.f32 %v231, 0.0
  %v268 = vmax.f32 %v234, 0.0
  %v269 = vmax.f32 %v237, 0.0
  %v270 = vmax.f32 %v240, 0.0
  %v271 = vmax.f32 %v243, 0.0
  %v272 = vmax.f32 %v246, 0.0
  %v273 = vmax.f32 %v249, 0.0
  %v274 = vmax.f32 %v252, 0.0
  %v275 = vmax.f32 %v255, 0.0
  %v276 = vmax.f32 %v258, 0.0
  %v277 = vmax.f32 %v261, 0.0
  %v278 = vmax.f32 %v264, 0.0
  %v279 = vmax.f32 %v145, %v266
  %v280 = vmax.f32 %v146, %v267
  %v281 = vmax.f32 %v147, %v268
  %v282 = vmax.f32 %v148, %v269
  %v283 = vmax.f32 %v149, %v270
  %v284 = vmax.f32 %v150, %v271
  %v285 = vmax.f32 %v151, %v272
  %v286 = vmax.f32 %v152, %v273
  %v287 = vmax.f32 %v153, %v274
  %v288 = vmax.f32 %v154, %v275
  %v289 = vmax.f32 %v155, %v276
  %v290 = vmax.f32 %v156, %v277
  %v291 = vmax.f32 %v157, %v278
  %v292 = vld [vmem:[%s2] sm:$0xff]
  %v293 = vld [vmem:[%s2 + $0x8] sm:$0xff]
  %v294 = vld [vmem:[%s2 + $0x10] sm:$0xff]
  %v295 = vld [vmem:[%s2 + $0x18] sm:$0xff]
  %v296 = vld [vmem:[%s2 + $0x20] sm:$0xff]
  %v297 = vld [vmem:[%s2 + $0x28] sm:$0xff]
  %v298 = vld [vmem:[%s2 + $0x30] sm:$0xff]
  %v299 = vld [vmem:[%s2 + $0x38] sm:$0xff]
  %v300 = vld [vmem:[%s2 + $0x40] sm:$0xff]
  %v301 = vld [vmem:[%s2 + $0x48] sm:$0xff]
  %v302 = vld [vmem:[%s2 + $0x50] sm:$0xff]
  %v303 = vld [vmem:[%s2 + $0x58] sm:$0xff]
  %v304 = vld [vmem:[%s2 + $0x60] sm:$0xff]
  %v306 = vsel %vm45, %v292, 0
  %v309 = vsel %vm45, %v293, 0
  %v312 = vsel %vm45, %v294, 0
  %v315 = vsel %vm45, %v295, 0
  %v318 = vsel %vm45, %v296, 0
  %v321 = vsel %vm45, %v297, 0
  %v324 = vsel %vm45, %v298, 0
  %v327 = vsel %vm45, %v299, 0
  %v330 = vsel %vm45, %v300, 0
  %v333 = vsel %vm45, %v301, 0
  %v336 = vsel %vm45, %v302, 0
  %v339 = vsel %vm45, %v303, 0
  %v342 = vsel %vm45, %v304, 0
  %344 = vmatpush.msra.mxu0 0.0
  %345 = vmatpush.msra.mxu0 0.0
  %346 = vmatpush.msra.mxu0 0.0
  %347 = vmatpush.msra.mxu0 0.0
  %348 = vmatpush.msra.mxu0 0.0
  %349 = vmatpush.msra.mxu0 0.0
  %350 = vmatpush.msra.mxu0 0.0
  %351 = vmatpush.msra.mxu0 0.0
  %352 = vmatpush.msra.mxu0 0.0
  %353 = vmatpush.msra.mxu0 0.0
  %354 = vmatpush.msra.mxu0 0.0
  %355 = vmatpush.msra.mxu0 %v87
  %356 = vmatpush.msra.mxu0 %v26
  %357 = vmatpush.msra.mxu0 %v25
  %358 = vmatpush.msra.mxu0 %v24
  %359 = vmatpush.msra.mxu0 %v23
  %360 = vmatmul.f32.gmra.mxu0 %v306
  %v361 = vpop.f32.mrf.mxu0
  %v362 = vadd.f32 %v43, %v361
  %363 = vmatmul.f32.gmra.mxu0 %v309
  %v364 = vpop.f32.mrf.mxu0
  %v365 = vadd.f32 %v43, %v364
  %366 = vmatmul.f32.gmra.mxu0 %v312
  %v367 = vpop.f32.mrf.mxu0
  %v368 = vadd.f32 %v43, %v367
  %369 = vmatmul.f32.gmra.mxu0 %v315
  %v370 = vpop.f32.mrf.mxu0
  %v371 = vadd.f32 %v43, %v370
  %372 = vmatmul.f32.gmra.mxu0 %v318
  %v373 = vpop.f32.mrf.mxu0
  %v374 = vadd.f32 %v43, %v373
  %375 = vmatmul.f32.gmra.mxu0 %v321
  %v376 = vpop.f32.mrf.mxu0
  %v377 = vadd.f32 %v43, %v376
  %378 = vmatmul.f32.gmra.mxu0 %v324
  %v379 = vpop.f32.mrf.mxu0
  %v380 = vadd.f32 %v43, %v379
  %381 = vmatmul.f32.gmra.mxu0 %v327
  %v382 = vpop.f32.mrf.mxu0
  %v383 = vadd.f32 %v43, %v382
  %384 = vmatmul.f32.gmra.mxu0 %v330
  %v385 = vpop.f32.mrf.mxu0
  %v386 = vadd.f32 %v43, %v385
  %387 = vmatmul.f32.gmra.mxu0 %v333
  %v388 = vpop.f32.mrf.mxu0
  %v389 = vadd.f32 %v43, %v388
  %390 = vmatmul.f32.gmra.mxu0 %v336
  %v391 = vpop.f32.mrf.mxu0
  %v392 = vadd.f32 %v43, %v391
  %393 = vmatmul.f32.gmra.mxu0 %v339
  %v394 = vpop.f32.mrf.mxu0
  %v395 = vadd.f32 %v43, %v394
  %396 = vmatmul.f32.gmra.mxu0 %v342
  %v397 = vpop.f32.mrf.mxu0
  %v398 = vadd.f32 %v43, %v397
  %399 = vdwg.mxu0
  %v400 = vmax.f32 %v362, 0.0
  %v401 = vmax.f32 %v365, 0.0
  %v402 = vmax.f32 %v368, 0.0
  %v403 = vmax.f32 %v371, 0.0
  %v404 = vmax.f32 %v374, 0.0
  %v405 = vmax.f32 %v377, 0.0
  %v406 = vmax.f32 %v380, 0.0
  %v407 = vmax.f32 %v383, 0.0
  %v408 = vmax.f32 %v386, 0.0
  %v409 = vmax.f32 %v389, 0.0
  %v410 = vmax.f32 %v392, 0.0
  %v411 = vmax.f32 %v395, 0.0
  %v412 = vmax.f32 %v398, 0.0
  %v413 = vld [vmem:[%s3] sm:$0xff]
  %v414 = vld [vmem:[%s3 + $0x8] sm:$0xff]
  %v415 = vld [vmem:[%s3 + $0x10] sm:$0xff]
  %v416 = vld [vmem:[%s3 + $0x18] sm:$0xff]
  %v417 = vld [vmem:[%s3 + $0x20] sm:$0xff]
  %v418 = vld [vmem:[%s3 + $0x28] sm:$0xff]
  %v419 = vld [vmem:[%s3 + $0x30] sm:$0xff]
  %v420 = vld [vmem:[%s3 + $0x38] sm:$0xff]
  %v421 = vld [vmem:[%s3 + $0x40] sm:$0xff]
  %v422 = vld [vmem:[%s3 + $0x48] sm:$0xff]
  %v423 = vld [vmem:[%s3 + $0x50] sm:$0xff]
  %v424 = vld [vmem:[%s3 + $0x58] sm:$0xff]
  %v425 = vld [vmem:[%s3 + $0x60] sm:$0xff]
  %v427 = vsel %vm45, %v413, 0
  %v430 = vsel %vm45, %v414, 0
  %v433 = vsel %vm45, %v415, 0
  %v436 = vsel %vm45, %v416, 0
  %v439 = vsel %vm45, %v417, 0
  %v442 = vsel %vm45, %v418, 0
  %v445 = vsel %vm45, %v419, 0
  %v448 = vsel %vm45, %v420, 0
  %v451 = vsel %vm45, %v421, 0
  %v454 = vsel %vm45, %v422, 0
  %v457 = vsel %vm45, %v423, 0
  %v460 = vsel %vm45, %v424, 0
  %v463 = vsel %vm45, %v425, 0
  %465 = vmatpush.msra.mxu0 0.0
  %466 = vmatpush.msra.mxu0 0.0
  %467 = vmatpush.msra.mxu0 0.0
  %468 = vmatpush.msra.mxu0 0.0
  %469 = vmatpush.msra.mxu0 0.0
  %470 = vmatpush.msra.mxu0 0.0
  %471 = vmatpush.msra.mxu0 0.0
  %472 = vmatpush.msra.mxu0 0.0
  %473 = vmatpush.msra.mxu0 0.0
  %474 = vmatpush.msra.mxu0 0.0
  %475 = vmatpush.msra.mxu0 0.0
  %476 = vmatpush.msra.mxu0 %v87
  %477 = vmatpush.msra.mxu0 %v26
  %478 = vmatpush.msra.mxu0 %v25
  %479 = vmatpush.msra.mxu0 %v24
  %480 = vmatpush.msra.mxu0 %v23
  %481 = vmatmul.f32.gmra.mxu0 %v427
  %v482 = vpop.f32.mrf.mxu0
  %v483 = vadd.f32 %v43, %v482
  %484 = vmatmul.f32.gmra.mxu0 %v430
  %v485 = vpop.f32.mrf.mxu0
  %v486 = vadd.f32 %v43, %v485
  %487 = vmatmul.f32.gmra.mxu0 %v433
  %v488 = vpop.f32.mrf.mxu0
  %v489 = vadd.f32 %v43, %v488
  %490 = vmatmul.f32.gmra.mxu0 %v436
  %v491 = vpop.f32.mrf.mxu0
  %v492 = vadd.f32 %v43, %v491
  %493 = vmatmul.f32.gmra.mxu0 %v439
  %v494 = vpop.f32.mrf.mxu0
  %v495 = vadd.f32 %v43, %v494
  %496 = vmatmul.f32.gmra.mxu0 %v442
  %v497 = vpop.f32.mrf.mxu0
  %v498 = vadd.f32 %v43, %v497
  %499 = vmatmul.f32.gmra.mxu0 %v445
  %v500 = vpop.f32.mrf.mxu0
  %v501 = vadd.f32 %v43, %v500
  %502 = vmatmul.f32.gmra.mxu0 %v448
  %v503 = vpop.f32.mrf.mxu0
  %v504 = vadd.f32 %v43, %v503
  %505 = vmatmul.f32.gmra.mxu0 %v451
  %v506 = vpop.f32.mrf.mxu0
  %v507 = vadd.f32 %v43, %v506
  %508 = vmatmul.f32.gmra.mxu0 %v454
  %v509 = vpop.f32.mrf.mxu0
  %v510 = vadd.f32 %v43, %v509
  %511 = vmatmul.f32.gmra.mxu0 %v457
  %v512 = vpop.f32.mrf.mxu0
  %v513 = vadd.f32 %v43, %v512
  %514 = vmatmul.f32.gmra.mxu0 %v460
  %v515 = vpop.f32.mrf.mxu0
  %v516 = vadd.f32 %v43, %v515
  %517 = vmatmul.f32.gmra.mxu0 %v463
  %v518 = vpop.f32.mrf.mxu0
  %v519 = vadd.f32 %v43, %v518
  %520 = vdwg.mxu0
  %v521 = vmax.f32 %v483, 0.0
  %v522 = vmax.f32 %v486, 0.0
  %v523 = vmax.f32 %v489, 0.0
  %v524 = vmax.f32 %v492, 0.0
  %v525 = vmax.f32 %v495, 0.0
  %v526 = vmax.f32 %v498, 0.0
  %v527 = vmax.f32 %v501, 0.0
  %v528 = vmax.f32 %v504, 0.0
  %v529 = vmax.f32 %v507, 0.0
  %v530 = vmax.f32 %v510, 0.0
  %v531 = vmax.f32 %v513, 0.0
  %v532 = vmax.f32 %v516, 0.0
  %v533 = vmax.f32 %v519, 0.0
  %v534 = vmax.f32 %v400, %v521
  %v535 = vmax.f32 %v401, %v522
  %v536 = vmax.f32 %v402, %v523
  %v537 = vmax.f32 %v403, %v524
  %v538 = vmax.f32 %v404, %v525
  %v539 = vmax.f32 %v405, %v526
  %v540 = vmax.f32 %v406, %v527
  %v541 = vmax.f32 %v407, %v528
  %v542 = vmax.f32 %v408, %v529
  %v543 = vmax.f32 %v409, %v530
  %v544 = vmax.f32 %v410, %v531
  %v545 = vmax.f32 %v411, %v532
  %v546 = vmax.f32 %v412, %v533
  %v547 = vmax.f32 %v279, %v534
  %v548 = vmax.f32 %v280, %v535
  %v549 = vmax.f32 %v281, %v536
  %v550 = vmax.f32 %v282, %v537
  %v551 = vmax.f32 %v283, %v538
  %v552 = vmax.f32 %v284, %v539
  %v553 = vmax.f32 %v285, %v540
  %v554 = vmax.f32 %v286, %v541
  %v555 = vmax.f32 %v287, %v542
  %v556 = vmax.f32 %v288, %v543
  %v557 = vmax.f32 %v289, %v544
  %v558 = vmax.f32 %v290, %v545
  %v559 = vmax.f32 %v291, %v546
  %560 = vst [vmem:[%s6] sm:$0xff] %v547
  %561 = vst [vmem:[%s6 + $0x8] sm:$0xff] %v548
  %562 = vst [vmem:[%s6 + $0x10] sm:$0xff] %v549
  %563 = vst [vmem:[%s6 + $0x18] sm:$0xff] %v550
  %564 = vst [vmem:[%s6 + $0x20] sm:$0xff] %v551
  %565 = vst [vmem:[%s6 + $0x28] sm:$0xff] %v552
  %566 = vst [vmem:[%s6 + $0x30] sm:$0xff] %v553
  %567 = vst [vmem:[%s6 + $0x38] sm:$0xff] %v554
  %568 = vst [vmem:[%s6 + $0x40] sm:$0xff] %v555
  %569 = vst [vmem:[%s6 + $0x48] sm:$0xff] %v556
  %570 = vst [vmem:[%s6 + $0x50] sm:$0xff] %v557
  %571 = vst [vmem:[%s6 + $0x58] sm:$0xff] %v558
  %572 = vst [vmem:[%s6 + $0x60] sm:$0xff] %v559
  // Predicated region
  $region26: #{cnn_mnist1_forward.4} parent=0 // pred_check
    _
  $region27: #{cnn_mnist1_forward.4} parent=0 // pred_check_branch
    %574 = sbr.rel (0) target = $region29
  $region28: #{cnn_mnist1_forward.4} parent=0 // pred_region
    _
  $region29: #{cnn_mnist1_forward.4} parent=0 // pred_fallthru
    _
  // Predicated region
  $region30: #{cnn_mnist1_forward.4} parent=0 // pred_check
    _
  $region31: #{cnn_mnist1_forward.4} parent=0 // pred_check_branch
    %576 = sbr.rel (0) target = $region33
  $region32: #{cnn_mnist1_forward.4} parent=0 // pred_region
    _
  $region33: #{cnn_mnist1_forward.4} parent=0 // pred_fallthru
    _

// kernel: cnn_mnist1_forward.5
$region0: #{cnn_mnist1_forward.5}
  #allocation0 [shape = 'u32[]', space=smem, size = 0x4, offset = 0x4, fixed_abs, tag = 'smem constant byte address 0x4 - core index']
  #allocation1 [shape = 'u32[72,128]{1,0:T(1,128)}', space=vmem, size = 0x9000, scoped, tag = 'internal scratch']
  %s0 = inlined_call_operand.vmem [shape: f32[8,784], index: 0, kind: input, shape index: {}]
  %s1 = inlined_call_operand.vmem [shape: f32[784,512], index: 1, kind: input, shape index: {}]
  %s2 = inlined_call_operand.vmem [shape: f32[1,512], index: 2, kind: input, shape index: {}]
  %s3 = inlined_call_operand.vmem [shape: f32[512,128], index: 3, kind: input, shape index: {}]
  %s4 = inlined_call_operand.vmem [shape: f32[1,128], index: 4, kind: input, shape index: {}]
  %s5 = inlined_call_operand.vmem [shape: f32[8,128], index: 5, kind: output, shape index: {}]
  %s6 = sld [smem:[#allocation0]]
  $region30: #{cnn_mnist1_forward.5} parent=0
    _
  %s8 = ssub.s32 1, %s6
  %s9 = scalar_select 0, %s8, %s6
  // Predicated region
  $region2: #{cnn_mnist1_forward.5} parent=0 // pred_check
    _
  $region3: #{cnn_mnist1_forward.5} parent=0 // pred_check_branch
    %11 = sbr.rel (0) target = $region5
  $region4: #{cnn_mnist1_forward.5} parent=0 // pred_region
    _
  $region5: #{cnn_mnist1_forward.5} parent=0 // pred_fallthru
    _
  // Predicated region
  $region6: #{cnn_mnist1_forward.5} parent=0 // pred_check
    _
  $region7: #{cnn_mnist1_forward.5} parent=0 // pred_check_branch
    %13 = sbr.rel (0) target = $region9
  $region8: #{cnn_mnist1_forward.5} parent=0 // pred_region
    _
  $region9: #{cnn_mnist1_forward.5} parent=0 // pred_fallthru
    _
  // Predicated region
  $region10: #{cnn_mnist1_forward.5} parent=0 // pred_check
    _
  $region11: #{cnn_mnist1_forward.5} parent=0 // pred_check_branch
    %15 = sbr.rel (0) target = $region13
  $region12: #{cnn_mnist1_forward.5} parent=0 // pred_region
    _
  $region13: #{cnn_mnist1_forward.5} parent=0 // pred_fallthru
    _
  // Predicated region
  $region14: #{cnn_mnist1_forward.5} parent=0 // pred_check
    _
  $region15: #{cnn_mnist1_forward.5} parent=0 // pred_check_branch
    %17 = sbr.rel (0) target = $region17
  $region16: #{cnn_mnist1_forward.5} parent=0 // pred_region
    _
  $region17: #{cnn_mnist1_forward.5} parent=0 // pred_fallthru
    _
  // Predicated region
  $region18: #{cnn_mnist1_forward.5} parent=0 // pred_check
    _
  $region19: #{cnn_mnist1_forward.5} parent=0 // pred_check_branch
    %19 = sbr.rel (0) target = $region21
  $region20: #{cnn_mnist1_forward.5} parent=0 // pred_region
    _
  $region21: #{cnn_mnist1_forward.5} parent=0 // pred_fallthru
    _
  %v20 = vld [vmem:[%s0] sm:$0xff]
  %v21 = vld [vmem:[%s0 + $0x8] sm:$0xff]
  %v22 = vld [vmem:[%s0 + $0x10] sm:$0xff]
  %v23 = vld [vmem:[%s0 + $0x18] sm:$0xff]
  %v24 = vld [vmem:[%s0 + $0x20] sm:$0xff]
  %v25 = vld [vmem:[%s0 + $0x28] sm:$0xff]
  %v26 = vld [vmem:[%s0 + $0x30] sm:$0xff]
  %v27 = vld [vmem:[%s1] sm:$0xff]
  %v28 = vld [vmem:[%s1 + $0x8] sm:$0xff]
  %v29 = vld [vmem:[%s1 + $0x10] sm:$0xff]
  %v30 = vld [vmem:[%s1 + $0x18] sm:$0xff]
  %v31 = vld [vmem:[%s1 + $0x20] sm:$0xff]
  %v32 = vld [vmem:[%s1 + $0x28] sm:$0xff]
  %v33 = vld [vmem:[%s1 + $0x30] sm:$0xff]
  %v34 = vld [vmem:[%s1 + $0x38] sm:$0xff]
  %v35 = vld [vmem:[%s1 + $0x40] sm:$0xff]
  %v36 = vld [vmem:[%s1 + $0x48] sm:$0xff]
  %v37 = vld [vmem:[%s1 + $0x50] sm:$0xff]
  %v38 = vld [vmem:[%s1 + $0x58] sm:$0xff]
  %v39 = vld [vmem:[%s1 + $0x60] sm:$0xff]
  %v40 = vld [vmem:[%s1 + $0x68] sm:$0xff]
  %v41 = vld [vmem:[%s1 + $0x70] sm:$0xff]
  %v42 = vld [vmem:[%s1 + $0x78] sm:$0xff]
  %v43 = vld [vmem:[%s1 + $0x80] sm:$0xff]
  %v44 = vld [vmem:[%s1 + $0x88] sm:$0xff]
  %v45 = vld [vmem:[%s1 + $0x90] sm:$0xff]
  %v46 = vld [vmem:[%s1 + $0x98] sm:$0xff]
  %v47 = vld [vmem:[%s1 + $0xa0] sm:$0xff]
  %v48 = vld [vmem:[%s1 + $0xa8] sm:$0xff]
  %v49 = vld [vmem:[%s1 + $0xb0] sm:$0xff]
  %v50 = vld [vmem:[%s1 + $0xb8] sm:$0xff]
  %v51 = vld [vmem:[%s1 + $0xc0] sm:$0xff]
  %v52 = vld [vmem:[%s1 + $0xc8] sm:$0xff]
  %v53 = vld [vmem:[%s1 + $0xd0] sm:$0xff]
  %v54 = vld [vmem:[%s1 + $0xd8] sm:$0xff]
  %v55 = vld [vmem:[%s1 + $0xe0] sm:$0xff]
  %v56 = vld [vmem:[%s1 + $0xe8] sm:$0xff]
  %v57 = vld [vmem:[%s1 + $0xf0] sm:$0xff]
  %v58 = vld [vmem:[%s1 + $0xf8] sm:$0xff]
  %v59 = vld [vmem:[%s1 + $0x100] sm:$0xff]
  %v60 = vld [vmem:[%s1 + $0x108] sm:$0xff]
  %v61 = vld [vmem:[%s1 + $0x110] sm:$0xff]
  %v62 = vld [vmem:[%s1 + $0x118] sm:$0xff]
  %v63 = vld [vmem:[%s1 + $0x120] sm:$0xff]
  %v64 = vld [vmem:[%s1 + $0x128] sm:$0xff]
  %v65 = vld [vmem:[%s1 + $0x130] sm:$0xff]
  %v66 = vld [vmem:[%s1 + $0x138] sm:$0xff]
  %v67 = vld [vmem:[%s1 + $0x140] sm:$0xff]
  %v68 = vld [vmem:[%s1 + $0x148] sm:$0xff]
  %v69 = vld [vmem:[%s1 + $0x150] sm:$0xff]
  %v70 = vld [vmem:[%s1 + $0x158] sm:$0xff]
  %v71 = vld [vmem:[%s1 + $0x160] sm:$0xff]
  %v72 = vld [vmem:[%s1 + $0x168] sm:$0xff]
  %v73 = vld [vmem:[%s1 + $0x170] sm:$0xff]
  %v74 = vld [vmem:[%s1 + $0x178] sm:$0xff]
  %v75 = vld [vmem:[%s1 + $0x180] sm:$0xff]
  %v76 = vld [vmem:[%s1 + $0x188] sm:$0xff]
  %v77 = vld [vmem:[%s1 + $0x190] sm:$0xff]
  %v78 = vld [vmem:[%s1 + $0x198] sm:$0xff]
  %v79 = vld [vmem:[%s1 + $0x1a0] sm:$0xff]
  %v80 = vld [vmem:[%s1 + $0x1a8] sm:$0xff]
  %v81 = vld [vmem:[%s1 + $0x1b0] sm:$0xff]
  %v82 = vld [vmem:[%s1 + $0x1b8] sm:$0xff]
  %v83 = vld [vmem:[%s1 + $0x1c0] sm:$0xff]
  %v84 = vld [vmem:[%s1 + $0x1c8] sm:$0xff]
  %v85 = vld [vmem:[%s1 + $0x1d0] sm:$0xff]
  %v86 = vld [vmem:[%s1 + $0x1d8] sm:$0xff]
  %v87 = vld [vmem:[%s1 + $0x1e0] sm:$0xff]
  %v88 = vld [vmem:[%s1 + $0x1e8] sm:$0xff]
  %v89 = vld [vmem:[%s1 + $0x1f0] sm:$0xff]
  %v90 = vld [vmem:[%s1 + $0x1f8] sm:$0xff]
  %v91 = vld [vmem:[%s1 + $0x200] sm:$0xff]
  %v92 = vld [vmem:[%s1 + $0x208] sm:$0xff]
  %v93 = vld [vmem:[%s1 + $0x210] sm:$0xff]
  %v94 = vld [vmem:[%s1 + $0x218] sm:$0xff]
  %v95 = vld [vmem:[%s1 + $0x220] sm:$0xff]
  %v96 = vld [vmem:[%s1 + $0x228] sm:$0xff]
  %v97 = vld [vmem:[%s1 + $0x230] sm:$0xff]
  %v98 = vld [vmem:[%s1 + $0x238] sm:$0xff]
  %v99 = vld [vmem:[%s1 + $0x240] sm:$0xff]
  %v100 = vld [vmem:[%s1 + $0x248] sm:$0xff]
  %v101 = vld [vmem:[%s1 + $0x250] sm:$0xff]
  %v102 = vld [vmem:[%s1 + $0x258] sm:$0xff]
  %v103 = vld [vmem:[%s1 + $0x260] sm:$0xff]
  %v104 = vld [vmem:[%s1 + $0x268] sm:$0xff]
  %v105 = vld [vmem:[%s1 + $0x270] sm:$0xff]
  %v106 = vld [vmem:[%s1 + $0x278] sm:$0xff]
  %v107 = vld [vmem:[%s1 + $0x280] sm:$0xff]
  %v108 = vld [vmem:[%s1 + $0x288] sm:$0xff]
  %v109 = vld [vmem:[%s1 + $0x290] sm:$0xff]
  %v110 = vld [vmem:[%s1 + $0x298] sm:$0xff]
  %v111 = vld [vmem:[%s1 + $0x2a0] sm:$0xff]
  %v112 = vld [vmem:[%s1 + $0x2a8] sm:$0xff]
  %v113 = vld [vmem:[%s1 + $0x2b0] sm:$0xff]
  %v114 = vld [vmem:[%s1 + $0x2b8] sm:$0xff]
  %v115 = vld [vmem:[%s1 + $0x2c0] sm:$0xff]
  %v116 = vld [vmem:[%s1 + $0x2c8] sm:$0xff]
  %v117 = vld [vmem:[%s1 + $0x2d0] sm:$0xff]
  %v118 = vld [vmem:[%s1 + $0x2d8] sm:$0xff]
  %v119 = vld [vmem:[%s1 + $0x2e0] sm:$0xff]
  %v120 = vld [vmem:[%s1 + $0x2e8] sm:$0xff]
  %v121 = vld [vmem:[%s1 + $0x2f0] sm:$0xff]
  %v122 = vld [vmem:[%s1 + $0x2f8] sm:$0xff]
  %v123 = vld [vmem:[%s1 + $0x300] sm:$0xff]
  %v124 = vld [vmem:[%s1 + $0x308] sm:$0xff]
  %v125 = vld [vmem:[%s1 + $0x310] sm:$0xff]
  %v126 = vld [vmem:[%s1 + $0x318] sm:$0xff]
  %v127 = vld [vmem:[%s1 + $0x320] sm:$0xff]
  %v128 = vld [vmem:[%s1 + $0x328] sm:$0xff]
  %v129 = vld [vmem:[%s1 + $0x330] sm:$0xff]
  %v130 = vld [vmem:[%s1 + $0x338] sm:$0xff]
  %v131 = vld [vmem:[%s1 + $0x340] sm:$0xff]
  %v132 = vld [vmem:[%s1 + $0x348] sm:$0xff]
  %v133 = vld [vmem:[%s1 + $0x350] sm:$0xff]
  %v134 = vld [vmem:[%s1 + $0x358] sm:$0xff]
  %v135 = vld [vmem:[%s1 + $0x360] sm:$0xff]
  %v136 = vld [vmem:[%s1 + $0x368] sm:$0xff]
  %v137 = vld [vmem:[%s1 + $0x370] sm:$0xff]
  %v138 = vld [vmem:[%s1 + $0x378] sm:$0xff]
  %v139 = vld [vmem:[%s1 + $0x380] sm:$0xff]
  %v140 = vld [vmem:[%s1 + $0x388] sm:$0xff]
  %v141 = vld [vmem:[%s1 + $0x390] sm:$0xff]
  %v142 = vld [vmem:[%s1 + $0x398] sm:$0xff]
  %v143 = vld [vmem:[%s1 + $0x3a0] sm:$0xff]
  %v144 = vld [vmem:[%s1 + $0x3a8] sm:$0xff]
  %v145 = vld [vmem:[%s1 + $0x3b0] sm:$0xff]
  %v146 = vld [vmem:[%s1 + $0x3b8] sm:$0xff]
  %v147 = vld [vmem:[%s1 + $0x3c0] sm:$0xff]
  %v148 = vld [vmem:[%s1 + $0x3c8] sm:$0xff]
  %v149 = vld [vmem:[%s1 + $0x3d0] sm:$0xff]
  %v150 = vld [vmem:[%s1 + $0x3d8] sm:$0xff]
  %v151 = vld [vmem:[%s1 + $0x3e0] sm:$0xff]
  %v152 = vld [vmem:[%s1 + $0x3e8] sm:$0xff]
  %v153 = vld [vmem:[%s1 + $0x3f0] sm:$0xff]
  %v154 = vld [vmem:[%s1 + $0x3f8] sm:$0xff]
  %v155 = vld [vmem:[%s1 + $0x400] sm:$0xff]
  %v156 = vld [vmem:[%s1 + $0x408] sm:$0xff]
  %v157 = vld [vmem:[%s1 + $0x410] sm:$0xff]
  %v158 = vld [vmem:[%s1 + $0x418] sm:$0xff]
  %v159 = vld [vmem:[%s1 + $0x420] sm:$0xff]
  %v160 = vld [vmem:[%s1 + $0x428] sm:$0xff]
  %v161 = vld [vmem:[%s1 + $0x430] sm:$0xff]
  %v162 = vld [vmem:[%s1 + $0x438] sm:$0xff]
  %v163 = vld [vmem:[%s1 + $0x440] sm:$0xff]
  %v164 = vld [vmem:[%s1 + $0x448] sm:$0xff]
  %v165 = vld [vmem:[%s1 + $0x450] sm:$0xff]
  %v166 = vld [vmem:[%s1 + $0x458] sm:$0xff]
  %v167 = vld [vmem:[%s1 + $0x460] sm:$0xff]
  %v168 = vld [vmem:[%s1 + $0x468] sm:$0xff]
  %v169 = vld [vmem:[%s1 + $0x470] sm:$0xff]
  %v170 = vld [vmem:[%s1 + $0x478] sm:$0xff]
  %v171 = vld [vmem:[%s1 + $0x480] sm:$0xff]
  %v172 = vld [vmem:[%s1 + $0x488] sm:$0xff]
  %v173 = vld [vmem:[%s1 + $0x490] sm:$0xff]
  %v174 = vld [vmem:[%s1 + $0x498] sm:$0xff]
  %v175 = vld [vmem:[%s1 + $0x4a0] sm:$0xff]
  %v176 = vld [vmem:[%s1 + $0x4a8] sm:$0xff]
  %v177 = vld [vmem:[%s1 + $0x4b0] sm:$0xff]
  %v178 = vld [vmem:[%s1 + $0x4b8] sm:$0xff]
  %v179 = vld [vmem:[%s1 + $0x4c0] sm:$0xff]
  %v180 = vld [vmem:[%s1 + $0x4c8] sm:$0xff]
  %v181 = vld [vmem:[%s1 + $0x4d0] sm:$0xff]
  %v182 = vld [vmem:[%s1 + $0x4d8] sm:$0xff]
  %v183 = vld [vmem:[%s1 + $0x4e0] sm:$0xff]
  %v184 = vld [vmem:[%s1 + $0x4e8] sm:$0xff]
  %v185 = vld [vmem:[%s1 + $0x4f0] sm:$0xff]
  %v186 = vld [vmem:[%s1 + $0x4f8] sm:$0xff]
  %v187 = vld [vmem:[%s1 + $0x500] sm:$0xff]
  %v188 = vld [vmem:[%s1 + $0x508] sm:$0xff]
  %v189 = vld [vmem:[%s1 + $0x510] sm:$0xff]
  %v190 = vld [vmem:[%s1 + $0x518] sm:$0xff]
  %v191 = vld [vmem:[%s1 + $0x520] sm:$0xff]
  %v192 = vld [vmem:[%s1 + $0x528] sm:$0xff]
  %v193 = vld [vmem:[%s1 + $0x530] sm:$0xff]
  %v194 = vld [vmem:[%s1 + $0x538] sm:$0xff]
  %v195 = vld [vmem:[%s1 + $0x540] sm:$0xff]
  %v196 = vld [vmem:[%s1 + $0x548] sm:$0xff]
  %v197 = vld [vmem:[%s1 + $0x550] sm:$0xff]
  %v198 = vld [vmem:[%s1 + $0x558] sm:$0xff]
  %v199 = vld [vmem:[%s1 + $0x560] sm:$0xff]
  %v200 = vld [vmem:[%s1 + $0x568] sm:$0xff]
  %v201 = vld [vmem:[%s1 + $0x570] sm:$0xff]
  %v202 = vld [vmem:[%s1 + $0x578] sm:$0xff]
  %v203 = vld [vmem:[%s1 + $0x580] sm:$0xff]
  %v204 = vld [vmem:[%s1 + $0x588] sm:$0xff]
  %v205 = vld [vmem:[%s1 + $0x590] sm:$0xff]
  %v206 = vld [vmem:[%s1 + $0x598] sm:$0xff]
  %v207 = vld [vmem:[%s1 + $0x5a0] sm:$0xff]
  %v208 = vld [vmem:[%s1 + $0x5a8] sm:$0xff]
  %v209 = vld [vmem:[%s1 + $0x5b0] sm:$0xff]
  %v210 = vld [vmem:[%s1 + $0x5b8] sm:$0xff]
  %v211 = vld [vmem:[%s1 + $0x5c0] sm:$0xff]
  %v212 = vld [vmem:[%s1 + $0x5c8] sm:$0xff]
  %v213 = vld [vmem:[%s1 + $0x5d0] sm:$0xff]
  %v214 = vld [vmem:[%s1 + $0x5d8] sm:$0xff]
  %v215 = vld [vmem:[%s1 + $0x5e0] sm:$0xff]
  %v216 = vld [vmem:[%s1 + $0x5e8] sm:$0xff]
  %v217 = vld [vmem:[%s1 + $0x5f0] sm:$0xff]
  %v218 = vld [vmem:[%s1 + $0x5f8] sm:$0xff]
  %v219 = vld [vmem:[%s1 + $0x600] sm:$0xff]
  %v220 = vld [vmem:[%s1 + $0x608] sm:$0xff]
  %v221 = vld [vmem:[%s1 + $0x610] sm:$0xff]
  %v222 = vld [vmem:[%s1 + $0x618] sm:$0xff]
  %v223 = vld [vmem:[%s1 + $0x620] sm:$0xff]
  %v224 = vld [vmem:[%s1 + $0x628] sm:$0xff]
  %v225 = vld [vmem:[%s1 + $0x630] sm:$0xff]
  %v226 = vld [vmem:[%s1 + $0x638] sm:$0xff]
  %v227 = vld [vmem:[%s1 + $0x640] sm:$0xff]
  %v228 = vld [vmem:[%s1 + $0x648] sm:$0xff]
  %v229 = vld [vmem:[%s1 + $0x650] sm:$0xff]
  %v230 = vld [vmem:[%s1 + $0x658] sm:$0xff]
  %v231 = vld [vmem:[%s1 + $0x660] sm:$0xff]
  %v232 = vld [vmem:[%s1 + $0x668] sm:$0xff]
  %v233 = vld [vmem:[%s1 + $0x670] sm:$0xff]
  %v234 = vld [vmem:[%s1 + $0x678] sm:$0xff]
  %v235 = vld [vmem:[%s1 + $0x680] sm:$0xff]
  %v236 = vld [vmem:[%s1 + $0x688] sm:$0xff]
  %v237 = vld [vmem:[%s1 + $0x690] sm:$0xff]
  %v238 = vld [vmem:[%s1 + $0x698] sm:$0xff]
  %v239 = vld [vmem:[%s1 + $0x6a0] sm:$0xff]
  %v240 = vld [vmem:[%s1 + $0x6a8] sm:$0xff]
  %v241 = vld [vmem:[%s1 + $0x6b0] sm:$0xff]
  %v242 = vld [vmem:[%s1 + $0x6b8] sm:$0xff]
  %v243 = vld [vmem:[%s1 + $0x6c0] sm:$0xff]
  %v244 = vld [vmem:[%s1 + $0x6c8] sm:$0xff]
  %v245 = vld [vmem:[%s1 + $0x6d0] sm:$0xff]
  %v246 = vld [vmem:[%s1 + $0x6d8] sm:$0xff]
  %v247 = vld [vmem:[%s1 + $0x6e0] sm:$0xff]
  %v248 = vld [vmem:[%s1 + $0x6e8] sm:$0xff]
  %v249 = vld [vmem:[%s1 + $0x6f0] sm:$0xff]
  %v250 = vld [vmem:[%s1 + $0x6f8] sm:$0xff]
  %v251 = vld [vmem:[%s1 + $0x700] sm:$0xff]
  %v252 = vld [vmem:[%s1 + $0x708] sm:$0xff]
  %v253 = vld [vmem:[%s1 + $0x710] sm:$0xff]
  %v254 = vld [vmem:[%s1 + $0x718] sm:$0xff]
  %v255 = vld [vmem:[%s1 + $0x720] sm:$0xff]
  %v256 = vld [vmem:[%s1 + $0x728] sm:$0xff]
  %v257 = vld [vmem:[%s1 + $0x730] sm:$0xff]
  %v258 = vld [vmem:[%s1 + $0x738] sm:$0xff]
  %v259 = vld [vmem:[%s1 + $0x740] sm:$0xff]
  %v260 = vld [vmem:[%s1 + $0x748] sm:$0xff]
  %v261 = vld [vmem:[%s1 + $0x750] sm:$0xff]
  %v262 = vld [vmem:[%s1 + $0x758] sm:$0xff]
  %v263 = vld [vmem:[%s1 + $0x760] sm:$0xff]
  %v264 = vld [vmem:[%s1 + $0x768] sm:$0xff]
  %v265 = vld [vmem:[%s1 + $0x770] sm:$0xff]
  %v266 = vld [vmem:[%s1 + $0x778] sm:$0xff]
  %v267 = vld [vmem:[%s1 + $0x780] sm:$0xff]
  %v268 = vld [vmem:[%s1 + $0x788] sm:$0xff]
  %v269 = vld [vmem:[%s1 + $0x790] sm:$0xff]
  %v270 = vld [vmem:[%s1 + $0x798] sm:$0xff]
  %v271 = vld [vmem:[%s1 + $0x7a0] sm:$0xff]
  %v272 = vld [vmem:[%s1 + $0x7a8] sm:$0xff]
  %v273 = vld [vmem:[%s1 + $0x7b0] sm:$0xff]
  %v274 = vld [vmem:[%s1 + $0x7b8] sm:$0xff]
  %v275 = vld [vmem:[%s1 + $0x7c0] sm:$0xff]
  %v276 = vld [vmem:[%s1 + $0x7c8] sm:$0xff]
  %v277 = vld [vmem:[%s1 + $0x7d0] sm:$0xff]
  %v278 = vld [vmem:[%s1 + $0x7d8] sm:$0xff]
  %v279 = vld [vmem:[%s1 + $0x7e0] sm:$0xff]
  %v280 = vld [vmem:[%s1 + $0x7e8] sm:$0xff]
  %v281 = vld [vmem:[%s1 + $0x7f0] sm:$0xff]
  %v282 = vld [vmem:[%s1 + $0x7f8] sm:$0xff]
  %v283 = vld [vmem:[%s1 + $0x800] sm:$0xff]
  %v284 = vld [vmem:[%s1 + $0x808] sm:$0xff]
  %v285 = vld [vmem:[%s1 + $0x810] sm:$0xff]
  %v286 = vld [vmem:[%s1 + $0x818] sm:$0xff]
  %v287 = vld [vmem:[%s1 + $0x820] sm:$0xff]
  %v288 = vld [vmem:[%s1 + $0x828] sm:$0xff]
  %v289 = vld [vmem:[%s1 + $0x830] sm:$0xff]
  %v290 = vld [vmem:[%s1 + $0x838] sm:$0xff]
  %v291 = vld [vmem:[%s1 + $0x840] sm:$0xff]
  %v292 = vld [vmem:[%s1 + $0x848] sm:$0xff]
  %v293 = vld [vmem:[%s1 + $0x850] sm:$0xff]
  %v294 = vld [vmem:[%s1 + $0x858] sm:$0xff]
  %v295 = vld [vmem:[%s1 + $0x860] sm:$0xff]
  %v296 = vld [vmem:[%s1 + $0x868] sm:$0xff]
  %v297 = vld [vmem:[%s1 + $0x870] sm:$0xff]
  %v298 = vld [vmem:[%s1 + $0x878] sm:$0xff]
  %v299 = vld [vmem:[%s1 + $0x880] sm:$0xff]
  %v300 = vld [vmem:[%s1 + $0x888] sm:$0xff]
  %v301 = vld [vmem:[%s1 + $0x890] sm:$0xff]
  %v302 = vld [vmem:[%s1 + $0x898] sm:$0xff]
  %v303 = vld [vmem:[%s1 + $0x8a0] sm:$0xff]
  %v304 = vld [vmem:[%s1 + $0x8a8] sm:$0xff]
  %v305 = vld [vmem:[%s1 + $0x8b0] sm:$0xff]
  %v306 = vld [vmem:[%s1 + $0x8b8] sm:$0xff]
  %v307 = vld [vmem:[%s1 + $0x8c0] sm:$0xff]
  %v308 = vld [vmem:[%s1 + $0x8c8] sm:$0xff]
  %v309 = vld [vmem:[%s1 + $0x8d0] sm:$0xff]
  %v310 = vld [vmem:[%s1 + $0x8d8] sm:$0xff]
  %v311 = vld [vmem:[%s1 + $0x8e0] sm:$0xff]
  %v312 = vld [vmem:[%s1 + $0x8e8] sm:$0xff]
  %v313 = vld [vmem:[%s1 + $0x8f0] sm:$0xff]
  %v314 = vld [vmem:[%s1 + $0x8f8] sm:$0xff]
  %v315 = vld [vmem:[%s1 + $0x900] sm:$0xff]
  %v316 = vld [vmem:[%s1 + $0x908] sm:$0xff]
  %v317 = vld [vmem:[%s1 + $0x910] sm:$0xff]
  %v318 = vld [vmem:[%s1 + $0x918] sm:$0xff]
  %v319 = vld [vmem:[%s1 + $0x920] sm:$0xff]
  %v320 = vld [vmem:[%s1 + $0x928] sm:$0xff]
  %v321 = vld [vmem:[%s1 + $0x930] sm:$0xff]
  %v322 = vld [vmem:[%s1 + $0x938] sm:$0xff]
  %v323 = vld [vmem:[%s1 + $0x940] sm:$0xff]
  %v324 = vld [vmem:[%s1 + $0x948] sm:$0xff]
  %v325 = vld [vmem:[%s1 + $0x950] sm:$0xff]
  %v326 = vld [vmem:[%s1 + $0x958] sm:$0xff]
  %v327 = vld [vmem:[%s1 + $0x960] sm:$0xff]
  %v328 = vld [vmem:[%s1 + $0x968] sm:$0xff]
  %v329 = vld [vmem:[%s1 + $0x970] sm:$0xff]
  %v330 = vld [vmem:[%s1 + $0x978] sm:$0xff]
  %v331 = vld [vmem:[%s1 + $0x980] sm:$0xff]
  %v332 = vld [vmem:[%s1 + $0x988] sm:$0xff]
  %v333 = vld [vmem:[%s1 + $0x990] sm:$0xff]
  %v334 = vld [vmem:[%s1 + $0x998] sm:$0xff]
  %v335 = vld [vmem:[%s1 + $0x9a0] sm:$0xff]
  %v336 = vld [vmem:[%s1 + $0x9a8] sm:$0xff]
  %v337 = vld [vmem:[%s1 + $0x9b0] sm:$0xff]
  %v338 = vld [vmem:[%s1 + $0x9b8] sm:$0xff]
  %v339 = vld [vmem:[%s1 + $0x9c0] sm:$0xff]
  %v340 = vld [vmem:[%s1 + $0x9c8] sm:$0xff]
  %v341 = vld [vmem:[%s1 + $0x9d0] sm:$0xff]
  %v342 = vld [vmem:[%s1 + $0x9d8] sm:$0xff]
  %v343 = vld [vmem:[%s1 + $0x9e0] sm:$0xff]
  %v344 = vld [vmem:[%s1 + $0x9e8] sm:$0xff]
  %v345 = vld [vmem:[%s1 + $0x9f0] sm:$0xff]
  %v346 = vld [vmem:[%s1 + $0x9f8] sm:$0xff]
  %v347 = vld [vmem:[%s1 + $0xa00] sm:$0xff]
  %v348 = vld [vmem:[%s1 + $0xa08] sm:$0xff]
  %v349 = vld [vmem:[%s1 + $0xa10] sm:$0xff]
  %v350 = vld [vmem:[%s1 + $0xa18] sm:$0xff]
  %v351 = vld [vmem:[%s1 + $0xa20] sm:$0xff]
  %v352 = vld [vmem:[%s1 + $0xa28] sm:$0xff]
  %v353 = vld [vmem:[%s1 + $0xa30] sm:$0xff]
  %v354 = vld [vmem:[%s1 + $0xa38] sm:$0xff]
  %v355 = vld [vmem:[%s1 + $0xa40] sm:$0xff]
  %v356 = vld [vmem:[%s1 + $0xa48] sm:$0xff]
  %v357 = vld [vmem:[%s1 + $0xa50] sm:$0xff]
  %v358 = vld [vmem:[%s1 + $0xa58] sm:$0xff]
  %v359 = vld [vmem:[%s1 + $0xa60] sm:$0xff]
  %v360 = vld [vmem:[%s1 + $0xa68] sm:$0xff]
  %v361 = vld [vmem:[%s1 + $0xa70] sm:$0xff]
  %v362 = vld [vmem:[%s1 + $0xa78] sm:$0xff]
  %v363 = vld [vmem:[%s1 + $0xa80] sm:$0xff]
  %v364 = vld [vmem:[%s1 + $0xa88] sm:$0xff]
  %v365 = vld [vmem:[%s1 + $0xa90] sm:$0xff]
  %v366 = vld [vmem:[%s1 + $0xa98] sm:$0xff]
  %v367 = vld [vmem:[%s1 + $0xaa0] sm:$0xff]
  %v368 = vld [vmem:[%s1 + $0xaa8] sm:$0xff]
  %v369 = vld [vmem:[%s1 + $0xab0] sm:$0xff]
  %v370 = vld [vmem:[%s1 + $0xab8] sm:$0xff]
  %v371 = vld [vmem:[%s1 + $0xac0] sm:$0xff]
  %v372 = vld [vmem:[%s1 + $0xac8] sm:$0xff]
  %v373 = vld [vmem:[%s1 + $0xad0] sm:$0xff]
  %v374 = vld [vmem:[%s1 + $0xad8] sm:$0xff]
  %v375 = vld [vmem:[%s1 + $0xae0] sm:$0xff]
  %v376 = vld [vmem:[%s1 + $0xae8] sm:$0xff]
  %v377 = vld [vmem:[%s1 + $0xaf0] sm:$0xff]
  %v378 = vld [vmem:[%s1 + $0xaf8] sm:$0xff]
  %v379 = vld [vmem:[%s1 + $0xb00] sm:$0xff]
  %v380 = vld [vmem:[%s1 + $0xb08] sm:$0xff]
  %v381 = vld [vmem:[%s1 + $0xb10] sm:$0xff]
  %v382 = vld [vmem:[%s1 + $0xb18] sm:$0xff]
  %v383 = vld [vmem:[%s1 + $0xb20] sm:$0xff]
  %v384 = vld [vmem:[%s1 + $0xb28] sm:$0xff]
  %v385 = vld [vmem:[%s1 + $0xb30] sm:$0xff]
  %v386 = vld [vmem:[%s1 + $0xb38] sm:$0xff]
  %v387 = vld [vmem:[%s1 + $0xb40] sm:$0xff]
  %v388 = vld [vmem:[%s1 + $0xb48] sm:$0xff]
  %v389 = vld [vmem:[%s1 + $0xb50] sm:$0xff]
  %v390 = vld [vmem:[%s1 + $0xb58] sm:$0xff]
  %v391 = vld [vmem:[%s1 + $0xb60] sm:$0xff]
  %v392 = vld [vmem:[%s1 + $0xb68] sm:$0xff]
  %v393 = vld [vmem:[%s1 + $0xb70] sm:$0xff]
  %v394 = vld [vmem:[%s1 + $0xb78] sm:$0xff]
  %v395 = vld [vmem:[%s1 + $0xb80] sm:$0xff]
  %v396 = vld [vmem:[%s1 + $0xb88] sm:$0xff]
  %v397 = vld [vmem:[%s1 + $0xb90] sm:$0xff]
  %v398 = vld [vmem:[%s1 + $0xb98] sm:$0xff]
  %v399 = vld [vmem:[%s1 + $0xba0] sm:$0xff]
  %v400 = vld [vmem:[%s1 + $0xba8] sm:$0xff]
  %v401 = vld [vmem:[%s1 + $0xbb0] sm:$0xff]
  %v402 = vld [vmem:[%s1 + $0xbb8] sm:$0xff]
  %v403 = vld [vmem:[%s1 + $0xbc0] sm:$0xff]
  %v404 = vld [vmem:[%s1 + $0xbc8] sm:$0xff]
  %v405 = vld [vmem:[%s1 + $0xbd0] sm:$0xff]
  %v406 = vld [vmem:[%s1 + $0xbd8] sm:$0xff]
  %v407 = vld [vmem:[%s1 + $0xbe0] sm:$0xff]
  %v408 = vld [vmem:[%s1 + $0xbe8] sm:$0xff]
  %v409 = vld [vmem:[%s1 + $0xbf0] sm:$0xff]
  %v410 = vld [vmem:[%s1 + $0xbf8] sm:$0xff]
  %v411 = vld [vmem:[%s1 + $0xc00] sm:$0xff]
  %v412 = vld [vmem:[%s1 + $0xc08] sm:$0xff]
  %v413 = vld [vmem:[%s1 + $0xc10] sm:$0xff]
  %v414 = vld [vmem:[%s1 + $0xc18] sm:$0xff]
  %v415 = vld [vmem:[%s1 + $0xc20] sm:$0xff]
  %v416 = vld [vmem:[%s1 + $0xc28] sm:$0xff]
  %v417 = vld [vmem:[%s1 + $0xc30] sm:$0xff]
  %v418 = vld [vmem:[%s1 + $0xc38] sm:$0xff]
  %v419 = vld [vmem:[%s2] sm:$0xf]
  %v421 = vperm.slane %v419, 0
  %v422 = vperm.slane %v419, 1
  %v423 = vperm.slane %v419, 2
  %v424 = vperm.slane %v419, 3
  %vm429 = vcmask 130048
  %v431 = vsel %vm429, %v26, 0
  %433 = vmatpush.msra.mxu0 %v87
  %434 = vmatpush.msra.mxu0 %v83
  %435 = vmatpush.msra.mxu0 %v79
  %436 = vmatpush.msra.mxu0 %v75
  %437 = vmatpush.msra.mxu0 %v71
  %438 = vmatpush.msra.mxu0 %v67
  %439 = vmatpush.msra.mxu0 %v63
  %440 = vmatpush.msra.mxu0 %v59
  %441 = vmatpush.msra.mxu0 %v55
  %442 = vmatpush.msra.mxu0 %v51
  %443 = vmatpush.msra.mxu0 %v47
  %444 = vmatpush.msra.mxu0 %v43
  %445 = vmatpush.msra.mxu0 %v39
  %446 = vmatpush.msra.mxu0 %v35
  %447 = vmatpush.msra.mxu0 %v31
  %448 = vmatpush.msra.mxu0 %v27
  %449 = vmatmul.f32.gmra.mxu0 %v20
  %v450 = vpop.f32.mrf.mxu0
  %v451 = vadd.f32 %v421, %v450
  %452 = vdwg.mxu0
  %453 = vmatpush.msra.mxu0 %v151
  %454 = vmatpush.msra.mxu0 %v147
  %455 = vmatpush.msra.mxu0 %v143
  %456 = vmatpush.msra.mxu0 %v139
  %457 = vmatpush.msra.mxu0 %v135
  %458 = vmatpush.msra.mxu0 %v131
  %459 = vmatpush.msra.mxu0 %v127
  %460 = vmatpush.msra.mxu0 %v123
  %461 = vmatpush.msra.mxu0 %v119
  %462 = vmatpush.msra.mxu0 %v115
  %463 = vmatpush.msra.mxu0 %v111
  %464 = vmatpush.msra.mxu0 %v107
  %465 = vmatpush.msra.mxu0 %v103
  %466 = vmatpush.msra.mxu0 %v99
  %467 = vmatpush.msra.mxu0 %v95
  %468 = vmatpush.msra.mxu0 %v91
  %469 = vmatmul.f32.gmra.mxu0 %v21
  %v470 = vpop.f32.mrf.mxu0
  %v471 = vadd.f32 %v451, %v470
  %472 = vdwg.mxu0
  %473 = vmatpush.msra.mxu0 %v215
  %474 = vmatpush.msra.mxu0 %v211
  %475 = vmatpush.msra.mxu0 %v207
  %476 = vmatpush.msra.mxu0 %v203
  %477 = vmatpush.msra.mxu0 %v199
  %478 = vmatpush.msra.mxu0 %v195
  %479 = vmatpush.msra.mxu0 %v191
  %480 = vmatpush.msra.mxu0 %v187
  %481 = vmatpush.msra.mxu0 %v183
  %482 = vmatpush.msra.mxu0 %v179
  %483 = vmatpush.msra.mxu0 %v175
  %484 = vmatpush.msra.mxu0 %v171
  %485 = vmatpush.msra.mxu0 %v167
  %486 = vmatpush.msra.mxu0 %v163
  %487 = vmatpush.msra.mxu0 %v159
  %488 = vmatpush.msra.mxu0 %v155
  %489 = vmatmul.f32.gmra.mxu0 %v22
  %v490 = vpop.f32.mrf.mxu0
  %v491 = vadd.f32 %v471, %v490
  %492 = vdwg.mxu0
  %493 = vmatpush.msra.mxu0 %v279
  %494 = vmatpush.msra.mxu0 %v275
  %495 = vmatpush.msra.mxu0 %v271
  %496 = vmatpush.msra.mxu0 %v267
  %497 = vmatpush.msra.mxu0 %v263
  %498 = vmatpush.msra.mxu0 %v259
  %499 = vmatpush.msra.mxu0 %v255
  %500 = vmatpush.msra.mxu0 %v251
  %501 = vmatpush.msra.mxu0 %v247
  %502 = vmatpush.msra.mxu0 %v243
  %503 = vmatpush.msra.mxu0 %v239
  %504 = vmatpush.msra.mxu0 %v235
  %505 = vmatpush.msra.mxu0 %v231
  %506 = vmatpush.msra.mxu0 %v227
  %507 = vmatpush.msra.mxu0 %v223
  %508 = vmatpush.msra.mxu0 %v219
  %509 = vmatmul.f32.gmra.mxu0 %v23
  %v510 = vpop.f32.mrf.mxu0
  %v511 = vadd.f32 %v491, %v510
  %512 = vdwg.mxu0
  %513 = vmatpush.msra.mxu0 %v343
  %514 = vmatpush.msra.mxu0 %v339
  %515 = vmatpush.msra.mxu0 %v335
  %516 = vmatpush.msra.mxu0 %v331
  %517 = vmatpush.msra.mxu0 %v327
  %518 = vmatpush.msra.mxu0 %v323
  %519 = vmatpush.msra.mxu0 %v319
  %520 = vmatpush.msra.mxu0 %v315
  %521 = vmatpush.msra.mxu0 %v311
  %522 = vmatpush.msra.mxu0 %v307
  %523 = vmatpush.msra.mxu0 %v303
  %524 = vmatpush.msra.mxu0 %v299
  %525 = vmatpush.msra.mxu0 %v295
  %526 = vmatpush.msra.mxu0 %v291
  %527 = vmatpush.msra.mxu0 %v287
  %528 = vmatpush.msra.mxu0 %v283
  %529 = vmatmul.f32.gmra.mxu0 %v24
  %v530 = vpop.f32.mrf.mxu0
  %v531 = vadd.f32 %v511, %v530
  %532 = vdwg.mxu0
  %533 = vmatpush.msra.mxu0 %v407
  %534 = vmatpush.msra.mxu0 %v403
  %535 = vmatpush.msra.mxu0 %v399
  %536 = vmatpush.msra.mxu0 %v395
  %537 = vmatpush.msra.mxu0 %v391
  %538 = vmatpush.msra.mxu0 %v387
  %539 = vmatpush.msra.mxu0 %v383
  %540 = vmatpush.msra.mxu0 %v379
  %541 = vmatpush.msra.mxu0 %v375
  %542 = vmatpush.msra.mxu0 %v371
  %543 = vmatpush.msra.mxu0 %v367
  %544 = vmatpush.msra.mxu0 %v363
  %545 = vmatpush.msra.mxu0 %v359
  %546 = vmatpush.msra.mxu0 %v355
  %547 = vmatpush.msra.mxu0 %v351
  %548 = vmatpush.msra.mxu0 %v347
  %549 = vmatmul.f32.gmra.mxu0 %v25
  %v550 = vpop.f32.mrf.mxu0
  %v551 = vadd.f32 %v531, %v550
  %552 = vdwg.mxu0
  %553 = vmatpush.msra.mxu0 0.0
  %554 = vmatpush.msra.mxu0 0.0
  %555 = vmatpush.msra.mxu0 0.0
  %556 = vmatpush.msra.mxu0 0.0
  %557 = vmatpush.msra.mxu0 0.0
  %558 = vmatpush.msra.mxu0 0.0
  %559 = vmatpush.msra.mxu0 0.0
  %560 = vmatpush.msra.mxu0 0.0
  %561 = vmatpush.msra.mxu0 0.0
  %562 = vmatpush.msra.mxu0 0.0
  %563 = vmatpush.msra.mxu0 0.0
  %564 = vmatpush.msra.mxu0 0.0
  %565 = vmatpush.msra.mxu0 0.0
  %566 = vmatpush.msra.mxu0 0.0
  %567 = vmatpush.msra.mxu0 %v415
  %568 = vmatpush.msra.mxu0 %v411
  %569 = vmatmul.f32.gmra.mxu0 %v431
  %v570 = vpop.f32.mrf.mxu0
  %v571 = vadd.f32 %v551, %v570
  %572 = vdwg.mxu0
  %573 = vmatpush.msra.mxu0 %v88
  %574 = vmatpush.msra.mxu0 %v84
  %575 = vmatpush.msra.mxu0 %v80
  %576 = vmatpush.msra.mxu0 %v76
  %577 = vmatpush.msra.mxu0 %v72
  %578 = vmatpush.msra.mxu0 %v68
  %579 = vmatpush.msra.mxu0 %v64
  %580 = vmatpush.msra.mxu0 %v60
  %581 = vmatpush.msra.mxu0 %v56
  %582 = vmatpush.msra.mxu0 %v52
  %583 = vmatpush.msra.mxu0 %v48
  %584 = vmatpush.msra.mxu0 %v44
  %585 = vmatpush.msra.mxu0 %v40
  %586 = vmatpush.msra.mxu0 %v36
  %587 = vmatpush.msra.mxu0 %v32
  %588 = vmatpush.msra.mxu0 %v28
  %589 = vmatmul.f32.gmra.mxu0 %v20
  %v590 = vpop.f32.mrf.mxu0
  %v591 = vadd.f32 %v422, %v590
  %592 = vdwg.mxu0
  %593 = vmatpush.msra.mxu0 %v152
  %594 = vmatpush.msra.mxu0 %v148
  %595 = vmatpush.msra.mxu0 %v144
  %596 = vmatpush.msra.mxu0 %v140
  %597 = vmatpush.msra.mxu0 %v136
  %598 = vmatpush.msra.mxu0 %v132
  %599 = vmatpush.msra.mxu0 %v128
  %600 = vmatpush.msra.mxu0 %v124
  %601 = vmatpush.msra.mxu0 %v120
  %602 = vmatpush.msra.mxu0 %v116
  %603 = vmatpush.msra.mxu0 %v112
  %604 = vmatpush.msra.mxu0 %v108
  %605 = vmatpush.msra.mxu0 %v104
  %606 = vmatpush.msra.mxu0 %v100
  %607 = vmatpush.msra.mxu0 %v96
  %608 = vmatpush.msra.mxu0 %v92
  %609 = vmatmul.f32.gmra.mxu0 %v21
  %v610 = vpop.f32.mrf.mxu0
  %v611 = vadd.f32 %v591, %v610
  %612 = vdwg.mxu0
  %613 = vmatpush.msra.mxu0 %v216
  %614 = vmatpush.msra.mxu0 %v212
  %615 = vmatpush.msra.mxu0 %v208
  %616 = vmatpush.msra.mxu0 %v204
  %617 = vmatpush.msra.mxu0 %v200
  %618 = vmatpush.msra.mxu0 %v196
  %619 = vmatpush.msra.mxu0 %v192
  %620 = vmatpush.msra.mxu0 %v188
  %621 = vmatpush.msra.mxu0 %v184
  %622 = vmatpush.msra.mxu0 %v180
  %623 = vmatpush.msra.mxu0 %v176
  %624 = vmatpush.msra.mxu0 %v172
  %625 = vmatpush.msra.mxu0 %v168
  %626 = vmatpush.msra.mxu0 %v164
  %627 = vmatpush.msra.mxu0 %v160
  %628 = vmatpush.msra.mxu0 %v156
  %629 = vmatmul.f32.gmra.mxu0 %v22
  %v630 = vpop.f32.mrf.mxu0
  %v631 = vadd.f32 %v611, %v630
  %632 = vdwg.mxu0
  %633 = vmatpush.msra.mxu0 %v280
  %634 = vmatpush.msra.mxu0 %v276
  %635 = vmatpush.msra.mxu0 %v272
  %636 = vmatpush.msra.mxu0 %v268
  %637 = vmatpush.msra.mxu0 %v264
  %638 = vmatpush.msra.mxu0 %v260
  %639 = vmatpush.msra.mxu0 %v256
  %640 = vmatpush.msra.mxu0 %v252
  %641 = vmatpush.msra.mxu0 %v248
  %642 = vmatpush.msra.mxu0 %v244
  %643 = vmatpush.msra.mxu0 %v240
  %644 = vmatpush.msra.mxu0 %v236
  %645 = vmatpush.msra.mxu0 %v232
  %646 = vmatpush.msra.mxu0 %v228
  %647 = vmatpush.msra.mxu0 %v224
  %648 = vmatpush.msra.mxu0 %v220
  %649 = vmatmul.f32.gmra.mxu0 %v23
  %v650 = vpop.f32.mrf.mxu0
  %v651 = vadd.f32 %v631, %v650
  %652 = vdwg.mxu0
  %653 = vmatpush.msra.mxu0 %v344
  %654 = vmatpush.msra.mxu0 %v340
  %655 = vmatpush.msra.mxu0 %v336
  %656 = vmatpush.msra.mxu0 %v332
  %657 = vmatpush.msra.mxu0 %v328
  %658 = vmatpush.msra.mxu0 %v324
  %659 = vmatpush.msra.mxu0 %v320
  %660 = vmatpush.msra.mxu0 %v316
  %661 = vmatpush.msra.mxu0 %v312
  %662 = vmatpush.msra.mxu0 %v308
  %663 = vmatpush.msra.mxu0 %v304
  %664 = vmatpush.msra.mxu0 %v300
  %665 = vmatpush.msra.mxu0 %v296
  %666 = vmatpush.msra.mxu0 %v292
  %667 = vmatpush.msra.mxu0 %v288
  %668 = vmatpush.msra.mxu0 %v284
  %669 = vmatmul.f32.gmra.mxu0 %v24
  %v670 = vpop.f32.mrf.mxu0
  %v671 = vadd.f32 %v651, %v670
  %672 = vdwg.mxu0
  %673 = vmatpush.msra.mxu0 %v408
  %674 = vmatpush.msra.mxu0 %v404
  %675 = vmatpush.msra.mxu0 %v400
  %676 = vmatpush.msra.mxu0 %v396
  %677 = vmatpush.msra.mxu0 %v392
  %678 = vmatpush.msra.mxu0 %v388
  %679 = vmatpush.msra.mxu0 %v384
  %680 = vmatpush.msra.mxu0 %v380
  %681 = vmatpush.msra.mxu0 %v376
  %682 = vmatpush.msra.mxu0 %v372
  %683 = vmatpush.msra.mxu0 %v368
  %684 = vmatpush.msra.mxu0 %v364
  %685 = vmatpush.msra.mxu0 %v360
  %686 = vmatpush.msra.mxu0 %v356
  %687 = vmatpush.msra.mxu0 %v352
  %688 = vmatpush.msra.mxu0 %v348
  %689 = vmatmul.f32.gmra.mxu0 %v25
  %v690 = vpop.f32.mrf.mxu0
  %v691 = vadd.f32 %v671, %v690
  %692 = vdwg.mxu0
  %693 = vmatpush.msra.mxu0 0.0
  %694 = vmatpush.msra.mxu0 0.0
  %695 = vmatpush.msra.mxu0 0.0
  %696 = vmatpush.msra.mxu0 0.0
  %697 = vmatpush.msra.mxu0 0.0
  %698 = vmatpush.msra.mxu0 0.0
  %699 = vmatpush.msra.mxu0 0.0
  %700 = vmatpush.msra.mxu0 0.0
  %701 = vmatpush.msra.mxu0 0.0
  %702 = vmatpush.msra.mxu0 0.0
  %703 = vmatpush.msra.mxu0 0.0
  %704 = vmatpush.msra.mxu0 0.0
  %705 = vmatpush.msra.mxu0 0.0
  %706 = vmatpush.msra.mxu0 0.0
  %707 = vmatpush.msra.mxu0 %v416
  %708 = vmatpush.msra.mxu0 %v412
  %709 = vmatmul.f32.gmra.mxu0 %v431
  %v710 = vpop.f32.mrf.mxu0
  %v711 = vadd.f32 %v691, %v710
  %712 = vdwg.mxu0
  %713 = vmatpush.msra.mxu0 %v89
  %714 = vmatpush.msra.mxu0 %v85
  %715 = vmatpush.msra.mxu0 %v81
  %716 = vmatpush.msra.mxu0 %v77
  %717 = vmatpush.msra.mxu0 %v73
  %718 = vmatpush.msra.mxu0 %v69
  %719 = vmatpush.msra.mxu0 %v65
  %720 = vmatpush.msra.mxu0 %v61
  %721 = vmatpush.msra.mxu0 %v57
  %722 = vmatpush.msra.mxu0 %v53
  %723 = vmatpush.msra.mxu0 %v49
  %724 = vmatpush.msra.mxu0 %v45
  %725 = vmatpush.msra.mxu0 %v41
  %726 = vmatpush.msra.mxu0 %v37
  %727 = vmatpush.msra.mxu0 %v33
  %728 = vmatpush.msra.mxu0 %v29
  %729 = vmatmul.f32.gmra.mxu0 %v20
  %v730 = vpop.f32.mrf.mxu0
  %v731 = vadd.f32 %v423, %v730
  %732 = vdwg.mxu0
  %733 = vmatpush.msra.mxu0 %v153
  %734 = vmatpush.msra.mxu0 %v149
  %735 = vmatpush.msra.mxu0 %v145
  %736 = vmatpush.msra.mxu0 %v141
  %737 = vmatpush.msra.mxu0 %v137
  %738 = vmatpush.msra.mxu0 %v133
  %739 = vmatpush.msra.mxu0 %v129
  %740 = vmatpush.msra.mxu0 %v125
  %741 = vmatpush.msra.mxu0 %v121
  %742 = vmatpush.msra.mxu0 %v117
  %743 = vmatpush.msra.mxu0 %v113
  %744 = vmatpush.msra.mxu0 %v109
  %745 = vmatpush.msra.mxu0 %v105
  %746 = vmatpush.msra.mxu0 %v101
  %747 = vmatpush.msra.mxu0 %v97
  %748 = vmatpush.msra.mxu0 %v93
  %749 = vmatmul.f32.gmra.mxu0 %v21
  %v750 = vpop.f32.mrf.mxu0
  %v751 = vadd.f32 %v731, %v750
  %752 = vdwg.mxu0
  %753 = vmatpush.msra.mxu0 %v217
  %754 = vmatpush.msra.mxu0 %v213
  %755 = vmatpush.msra.mxu0 %v209
  %756 = vmatpush.msra.mxu0 %v205
  %757 = vmatpush.msra.mxu0 %v201
  %758 = vmatpush.msra.mxu0 %v197
  %759 = vmatpush.msra.mxu0 %v193
  %760 = vmatpush.msra.mxu0 %v189
  %761 = vmatpush.msra.mxu0 %v185
  %762 = vmatpush.msra.mxu0 %v181
  %763 = vmatpush.msra.mxu0 %v177
  %764 = vmatpush.msra.mxu0 %v173
  %765 = vmatpush.msra.mxu0 %v169
  %766 = vmatpush.msra.mxu0 %v165
  %767 = vmatpush.msra.mxu0 %v161
  %768 = vmatpush.msra.mxu0 %v157
  %769 = vmatmul.f32.gmra.mxu0 %v22
  %v770 = vpop.f32.mrf.mxu0
  %v771 = vadd.f32 %v751, %v770
  %772 = vdwg.mxu0
  %773 = vmatpush.msra.mxu0 %v281
  %774 = vmatpush.msra.mxu0 %v277
  %775 = vmatpush.msra.mxu0 %v273
  %776 = vmatpush.msra.mxu0 %v269
  %777 = vmatpush.msra.mxu0 %v265
  %778 = vmatpush.msra.mxu0 %v261
  %779 = vmatpush.msra.mxu0 %v257
  %780 = vmatpush.msra.mxu0 %v253
  %781 = vmatpush.msra.mxu0 %v249
  %782 = vmatpush.msra.mxu0 %v245
  %783 = vmatpush.msra.mxu0 %v241
  %784 = vmatpush.msra.mxu0 %v237
  %785 = vmatpush.msra.mxu0 %v233
  %786 = vmatpush.msra.mxu0 %v229
  %787 = vmatpush.msra.mxu0 %v225
  %788 = vmatpush.msra.mxu0 %v221
  %789 = vmatmul.f32.gmra.mxu0 %v23
  %v790 = vpop.f32.mrf.mxu0
  %v791 = vadd.f32 %v771, %v790
  %792 = vdwg.mxu0
  %793 = vmatpush.msra.mxu0 %v345
  %794 = vmatpush.msra.mxu0 %v341
  %795 = vmatpush.msra.mxu0 %v337
  %796 = vmatpush.msra.mxu0 %v333
  %797 = vmatpush.msra.mxu0 %v329
  %798 = vmatpush.msra.mxu0 %v325
  %799 = vmatpush.msra.mxu0 %v321
  %800 = vmatpush.msra.mxu0 %v317
  %801 = vmatpush.msra.mxu0 %v313
  %802 = vmatpush.msra.mxu0 %v309
  %803 = vmatpush.msra.mxu0 %v305
  %804 = vmatpush.msra.mxu0 %v301
  %805 = vmatpush.msra.mxu0 %v297
  %806 = vmatpush.msra.mxu0 %v293
  %807 = vmatpush.msra.mxu0 %v289
  %808 = vmatpush.msra.mxu0 %v285
  %809 = vmatmul.f32.gmra.mxu0 %v24
  %v810 = vpop.f32.mrf.mxu0
  %v811 = vadd.f32 %v791, %v810
  %812 = vdwg.mxu0
  %813 = vmatpush.msra.mxu0 %v409
  %814 = vmatpush.msra.mxu0 %v405
  %815 = vmatpush.msra.mxu0 %v401
  %816 = vmatpush.msra.mxu0 %v397
  %817 = vmatpush.msra.mxu0 %v393
  %818 = vmatpush.msra.mxu0 %v389
  %819 = vmatpush.msra.mxu0 %v385
  %820 = vmatpush.msra.mxu0 %v381
  %821 = vmatpush.msra.mxu0 %v377
  %822 = vmatpush.msra.mxu0 %v373
  %823 = vmatpush.msra.mxu0 %v369
  %824 = vmatpush.msra.mxu0 %v365
  %825 = vmatpush.msra.mxu0 %v361
  %826 = vmatpush.msra.mxu0 %v357
  %827 = vmatpush.msra.mxu0 %v353
  %828 = vmatpush.msra.mxu0 %v349
  %829 = vmatmul.f32.gmra.mxu0 %v25
  %v830 = vpop.f32.mrf.mxu0
  %v831 = vadd.f32 %v811, %v830
  %832 = vdwg.mxu0
  %833 = vmatpush.msra.mxu0 0.0
  %834 = vmatpush.msra.mxu0 0.0
  %835 = vmatpush.msra.mxu0 0.0
  %836 = vmatpush.msra.mxu0 0.0
  %837 = vmatpush.msra.mxu0 0.0
  %838 = vmatpush.msra.mxu0 0.0
  %839 = vmatpush.msra.mxu0 0.0
  %840 = vmatpush.msra.mxu0 0.0
  %841 = vmatpush.msra.mxu0 0.0
  %842 = vmatpush.msra.mxu0 0.0
  %843 = vmatpush.msra.mxu0 0.0
  %844 = vmatpush.msra.mxu0 0.0
  %845 = vmatpush.msra.mxu0 0.0
  %846 = vmatpush.msra.mxu0 0.0
  %847 = vmatpush.msra.mxu0 %v417
  %848 = vmatpush.msra.mxu0 %v413
  %849 = vmatmul.f32.gmra.mxu0 %v431
  %v850 = vpop.f32.mrf.mxu0
  %v851 = vadd.f32 %v831, %v850
  %852 = vdwg.mxu0
  %853 = vmatpush.msra.mxu0 %v90
  %854 = vmatpush.msra.mxu0 %v86
  %855 = vmatpush.msra.mxu0 %v82
  %856 = vmatpush.msra.mxu0 %v78
  %857 = vmatpush.msra.mxu0 %v74
  %858 = vmatpush.msra.mxu0 %v70
  %859 = vmatpush.msra.mxu0 %v66
  %860 = vmatpush.msra.mxu0 %v62
  %861 = vmatpush.msra.mxu0 %v58
  %862 = vmatpush.msra.mxu0 %v54
  %863 = vmatpush.msra.mxu0 %v50
  %864 = vmatpush.msra.mxu0 %v46
  %865 = vmatpush.msra.mxu0 %v42
  %866 = vmatpush.msra.mxu0 %v38
  %867 = vmatpush.msra.mxu0 %v34
  %868 = vmatpush.msra.mxu0 %v30
  %869 = vmatmul.f32.gmra.mxu0 %v20
  %v870 = vpop.f32.mrf.mxu0
  %v871 = vadd.f32 %v424, %v870
  %872 = vdwg.mxu0
  %873 = vmatpush.msra.mxu0 %v154
  %874 = vmatpush.msra.mxu0 %v150
  %875 = vmatpush.msra.mxu0 %v146
  %876 = vmatpush.msra.mxu0 %v142
  %877 = vmatpush.msra.mxu0 %v138
  %878 = vmatpush.msra.mxu0 %v134
  %879 = vmatpush.msra.mxu0 %v130
  %880 = vmatpush.msra.mxu0 %v126
  %881 = vmatpush.msra.mxu0 %v122
  %882 = vmatpush.msra.mxu0 %v118
  %883 = vmatpush.msra.mxu0 %v114
  %884 = vmatpush.msra.mxu0 %v110
  %885 = vmatpush.msra.mxu0 %v106
  %886 = vmatpush.msra.mxu0 %v102
  %887 = vmatpush.msra.mxu0 %v98
  %888 = vmatpush.msra.mxu0 %v94
  %889 = vmatmul.f32.gmra.mxu0 %v21
  %v890 = vpop.f32.mrf.mxu0
  %v891 = vadd.f32 %v871, %v890
  %892 = vdwg.mxu0
  %893 = vmatpush.msra.mxu0 %v218
  %894 = vmatpush.msra.mxu0 %v214
  %895 = vmatpush.msra.mxu0 %v210
  %896 = vmatpush.msra.mxu0 %v206
  %897 = vmatpush.msra.mxu0 %v202
  %898 = vmatpush.msra.mxu0 %v198
  %899 = vmatpush.msra.mxu0 %v194
  %900 = vmatpush.msra.mxu0 %v190
  %901 = vmatpush.msra.mxu0 %v186
  %902 = vmatpush.msra.mxu0 %v182
  %903 = vmatpush.msra.mxu0 %v178
  %904 = vmatpush.msra.mxu0 %v174
  %905 = vmatpush.msra.mxu0 %v170
  %906 = vmatpush.msra.mxu0 %v166
  %907 = vmatpush.msra.mxu0 %v162
  %908 = vmatpush.msra.mxu0 %v158
  %909 = vmatmul.f32.gmra.mxu0 %v22
  %v910 = vpop.f32.mrf.mxu0
  %v911 = vadd.f32 %v891, %v910
  %912 = vdwg.mxu0
  %913 = vmatpush.msra.mxu0 %v282
  %914 = vmatpush.msra.mxu0 %v278
  %915 = vmatpush.msra.mxu0 %v274
  %916 = vmatpush.msra.mxu0 %v270
  %917 = vmatpush.msra.mxu0 %v266
  %918 = vmatpush.msra.mxu0 %v262
  %919 = vmatpush.msra.mxu0 %v258
  %920 = vmatpush.msra.mxu0 %v254
  %921 = vmatpush.msra.mxu0 %v250
  %922 = vmatpush.msra.mxu0 %v246
  %923 = vmatpush.msra.mxu0 %v242
  %924 = vmatpush.msra.mxu0 %v238
  %925 = vmatpush.msra.mxu0 %v234
  %926 = vmatpush.msra.mxu0 %v230
  %927 = vmatpush.msra.mxu0 %v226
  %928 = vmatpush.msra.mxu0 %v222
  %929 = vmatmul.f32.gmra.mxu0 %v23
  %v930 = vpop.f32.mrf.mxu0
  %v931 = vadd.f32 %v911, %v930
  %932 = vdwg.mxu0
  %933 = vmatpush.msra.mxu0 %v346
  %934 = vmatpush.msra.mxu0 %v342
  %935 = vmatpush.msra.mxu0 %v338
  %936 = vmatpush.msra.mxu0 %v334
  %937 = vmatpush.msra.mxu0 %v330
  %938 = vmatpush.msra.mxu0 %v326
  %939 = vmatpush.msra.mxu0 %v322
  %940 = vmatpush.msra.mxu0 %v318
  %941 = vmatpush.msra.mxu0 %v314
  %942 = vmatpush.msra.mxu0 %v310
  %943 = vmatpush.msra.mxu0 %v306
  %944 = vmatpush.msra.mxu0 %v302
  %945 = vmatpush.msra.mxu0 %v298
  %946 = vmatpush.msra.mxu0 %v294
  %947 = vmatpush.msra.mxu0 %v290
  %948 = vmatpush.msra.mxu0 %v286
  %949 = vmatmul.f32.gmra.mxu0 %v24
  %v950 = vpop.f32.mrf.mxu0
  %v951 = vadd.f32 %v931, %v950
  %952 = vdwg.mxu0
  %953 = vmatpush.msra.mxu0 %v410
  %954 = vmatpush.msra.mxu0 %v406
  %955 = vmatpush.msra.mxu0 %v402
  %956 = vmatpush.msra.mxu0 %v398
  %957 = vmatpush.msra.mxu0 %v394
  %958 = vmatpush.msra.mxu0 %v390
  %959 = vmatpush.msra.mxu0 %v386
  %960 = vmatpush.msra.mxu0 %v382
  %961 = vmatpush.msra.mxu0 %v378
  %962 = vmatpush.msra.mxu0 %v374
  %963 = vmatpush.msra.mxu0 %v370
  %964 = vmatpush.msra.mxu0 %v366
  %965 = vmatpush.msra.mxu0 %v362
  %966 = vmatpush.msra.mxu0 %v358
  %967 = vmatpush.msra.mxu0 %v354
  %968 = vmatpush.msra.mxu0 %v350
  %969 = vmatmul.f32.gmra.mxu0 %v25
  %v970 = vpop.f32.mrf.mxu0
  %v971 = vadd.f32 %v951, %v970
  %972 = vdwg.mxu0
  %973 = vmatpush.msra.mxu0 0.0
  %974 = vmatpush.msra.mxu0 0.0
  %975 = vmatpush.msra.mxu0 0.0
  %976 = vmatpush.msra.mxu0 0.0
  %977 = vmatpush.msra.mxu0 0.0
  %978 = vmatpush.msra.mxu0 0.0
  %979 = vmatpush.msra.mxu0 0.0
  %980 = vmatpush.msra.mxu0 0.0
  %981 = vmatpush.msra.mxu0 0.0
  %982 = vmatpush.msra.mxu0 0.0
  %983 = vmatpush.msra.mxu0 0.0
  %984 = vmatpush.msra.mxu0 0.0
  %985 = vmatpush.msra.mxu0 0.0
  %986 = vmatpush.msra.mxu0 0.0
  %987 = vmatpush.msra.mxu0 %v418
  %988 = vmatpush.msra.mxu0 %v414
  %989 = vmatmul.f32.gmra.mxu0 %v431
  %v990 = vpop.f32.mrf.mxu0
  %v991 = vadd.f32 %v971, %v990
  %992 = vdwg.mxu0
  %v993 = vmax.f32 %v571, 0.0
  %v994 = vmax.f32 %v711, 0.0
  %v995 = vmax.f32 %v851, 0.0
  %v996 = vmax.f32 %v991, 0.0
  %v997 = vld [vmem:[%s3] sm:$0xff]
  %v998 = vld [vmem:[%s3 + $0x8] sm:$0xff]
  %v999 = vld [vmem:[%s3 + $0x10] sm:$0xff]
  %v1000 = vld [vmem:[%s3 + $0x18] sm:$0xff]
  %v1001 = vld [vmem:[%s3 + $0x20] sm:$0xff]
  %v1002 = vld [vmem:[%s3 + $0x28] sm:$0xff]
  %v1003 = vld [vmem:[%s3 + $0x30] sm:$0xff]
  %v1004 = vld [vmem:[%s3 + $0x38] sm:$0xff]
  %v1005 = vld [vmem:[%s3 + $0x40] sm:$0xff]
  %v1006 = vld [vmem:[%s3 + $0x48] sm:$0xff]
  %v1007 = vld [vmem:[%s3 + $0x50] sm:$0xff]
  %v1008 = vld [vmem:[%s3 + $0x58] sm:$0xff]
  %v1009 = vld [vmem:[%s3 + $0x60] sm:$0xff]
  %v1010 = vld [vmem:[%s3 + $0x68] sm:$0xff]
  %v1011 = vld [vmem:[%s3 + $0x70] sm:$0xff]
  %v1012 = vld [vmem:[%s3 + $0x78] sm:$0xff]
  %v1013 = vld [vmem:[%s3 + $0x80] sm:$0xff]
  %v1014 = vld [vmem:[%s3 + $0x88] sm:$0xff]
  %v1015 = vld [vmem:[%s3 + $0x90] sm:$0xff]
  %v1016 = vld [vmem:[%s3 + $0x98] sm:$0xff]
  %v1017 = vld [vmem:[%s3 + $0xa0] sm:$0xff]
  %v1018 = vld [vmem:[%s3 + $0xa8] sm:$0xff]
  %v1019 = vld [vmem:[%s3 + $0xb0] sm:$0xff]
  %v1020 = vld [vmem:[%s3 + $0xb8] sm:$0xff]
  %v1021 = vld [vmem:[%s3 + $0xc0] sm:$0xff]
  %v1022 = vld [vmem:[%s3 + $0xc8] sm:$0xff]
  %v1023 = vld [vmem:[%s3 + $0xd0] sm:$0xff]
  %v1024 = vld [vmem:[%s3 + $0xd8] sm:$0xff]
  %v1025 = vld [vmem:[%s3 + $0xe0] sm:$0xff]
  %v1026 = vld [vmem:[%s3 + $0xe8] sm:$0xff]
  %v1027 = vld [vmem:[%s3 + $0xf0] sm:$0xff]
  %v1028 = vld [vmem:[%s3 + $0xf8] sm:$0xff]
  %v1029 = vld [vmem:[%s3 + $0x100] sm:$0xff]
  %v1030 = vld [vmem:[%s3 + $0x108] sm:$0xff]
  %v1031 = vld [vmem:[%s3 + $0x110] sm:$0xff]
  %v1032 = vld [vmem:[%s3 + $0x118] sm:$0xff]
  %v1033 = vld [vmem:[%s3 + $0x120] sm:$0xff]
  %v1034 = vld [vmem:[%s3 + $0x128] sm:$0xff]
  %v1035 = vld [vmem:[%s3 + $0x130] sm:$0xff]
  %v1036 = vld [vmem:[%s3 + $0x138] sm:$0xff]
  %v1037 = vld [vmem:[%s3 + $0x140] sm:$0xff]
  %v1038 = vld [vmem:[%s3 + $0x148] sm:$0xff]
  %v1039 = vld [vmem:[%s3 + $0x150] sm:$0xff]
  %v1040 = vld [vmem:[%s3 + $0x158] sm:$0xff]
  %v1041 = vld [vmem:[%s3 + $0x160] sm:$0xff]
  %v1042 = vld [vmem:[%s3 + $0x168] sm:$0xff]
  %v1043 = vld [vmem:[%s3 + $0x170] sm:$0xff]
  %v1044 = vld [vmem:[%s3 + $0x178] sm:$0xff]
  %v1045 = vld [vmem:[%s3 + $0x180] sm:$0xff]
  %v1046 = vld [vmem:[%s3 + $0x188] sm:$0xff]
  %v1047 = vld [vmem:[%s3 + $0x190] sm:$0xff]
  %v1048 = vld [vmem:[%s3 + $0x198] sm:$0xff]
  %v1049 = vld [vmem:[%s3 + $0x1a0] sm:$0xff]
  %v1050 = vld [vmem:[%s3 + $0x1a8] sm:$0xff]
  %v1051 = vld [vmem:[%s3 + $0x1b0] sm:$0xff]
  %v1052 = vld [vmem:[%s3 + $0x1b8] sm:$0xff]
  %v1053 = vld [vmem:[%s3 + $0x1c0] sm:$0xff]
  %v1054 = vld [vmem:[%s3 + $0x1c8] sm:$0xff]
  %v1055 = vld [vmem:[%s3 + $0x1d0] sm:$0xff]
  %v1056 = vld [vmem:[%s3 + $0x1d8] sm:$0xff]
  %v1057 = vld [vmem:[%s3 + $0x1e0] sm:$0xff]
  %v1058 = vld [vmem:[%s3 + $0x1e8] sm:$0xff]
  %v1059 = vld [vmem:[%s3 + $0x1f0] sm:$0xff]
  %v1060 = vld [vmem:[%s3 + $0x1f8] sm:$0xff]
  %v1061 = vld [vmem:[%s4] sm:$0x1]
  %v1063 = vperm.slane %v1061, 0
  %1065 = vmatpush.msra.mxu0 %v1012
  %1066 = vmatpush.msra.mxu0 %v1011
  %1067 = vmatpush.msra.mxu0 %v1010
  %1068 = vmatpush.msra.mxu0 %v1009
  %1069 = vmatpush.msra.mxu0 %v1008
  %1070 = vmatpush.msra.mxu0 %v1007
  %1071 = vmatpush.msra.mxu0 %v1006
  %1072 = vmatpush.msra.mxu0 %v1005
  %1073 = vmatpush.msra.mxu0 %v1004
  %1074 = vmatpush.msra.mxu0 %v1003
  %1075 = vmatpush.msra.mxu0 %v1002
  %1076 = vmatpush.msra.mxu0 %v1001
  %1077 = vmatpush.msra.mxu0 %v1000
  %1078 = vmatpush.msra.mxu0 %v999
  %1079 = vmatpush.msra.mxu0 %v998
  %1080 = vmatpush.msra.mxu0 %v997
  %1081 = vmatmul.f32.gmra.mxu0 %v993
  %v1082 = vpop.f32.mrf.mxu0
  %v1083 = vadd.f32 %v1063, %v1082
  %1084 = vdwg.mxu0
  %1085 = vmatpush.msra.mxu0 %v1028
  %1086 = vmatpush.msra.mxu0 %v1027
  %1087 = vmatpush.msra.mxu0 %v1026
  %1088 = vmatpush.msra.mxu0 %v1025
  %1089 = vmatpush.msra.mxu0 %v1024
  %1090 = vmatpush.msra.mxu0 %v1023
  %1091 = vmatpush.msra.mxu0 %v1022
  %1092 = vmatpush.msra.mxu0 %v1021
  %1093 = vmatpush.msra.mxu0 %v1020
  %1094 = vmatpush.msra.mxu0 %v1019
  %1095 = vmatpush.msra.mxu0 %v1018
  %1096 = vmatpush.msra.mxu0 %v1017
  %1097 = vmatpush.msra.mxu0 %v1016
  %1098 = vmatpush.msra.mxu0 %v1015
  %1099 = vmatpush.msra.mxu0 %v1014
  %1100 = vmatpush.msra.mxu0 %v1013
  %1101 = vmatmul.f32.gmra.mxu0 %v994
  %v1102 = vpop.f32.mrf.mxu0
  %v1103 = vadd.f32 %v1083, %v1102
  %1104 = vdwg.mxu0
  %1105 = vmatpush.msra.mxu0 %v1044
  %1106 = vmatpush.msra.mxu0 %v1043
  %1107 = vmatpush.msra.mxu0 %v1042
  %1108 = vmatpush.msra.mxu0 %v1041
  %1109 = vmatpush.msra.mxu0 %v1040
  %1110 = vmatpush.msra.mxu0 %v1039
  %1111 = vmatpush.msra.mxu0 %v1038
  %1112 = vmatpush.msra.mxu0 %v1037
  %1113 = vmatpush.msra.mxu0 %v1036
  %1114 = vmatpush.msra.mxu0 %v1035
  %1115 = vmatpush.msra.mxu0 %v1034
  %1116 = vmatpush.msra.mxu0 %v1033
  %1117 = vmatpush.msra.mxu0 %v1032
  %1118 = vmatpush.msra.mxu0 %v1031
  %1119 = vmatpush.msra.mxu0 %v1030
  %1120 = vmatpush.msra.mxu0 %v1029
  %1121 = vmatmul.f32.gmra.mxu0 %v995
  %v1122 = vpop.f32.mrf.mxu0
  %v1123 = vadd.f32 %v1103, %v1122
  %1124 = vdwg.mxu0
  %1125 = vmatpush.msra.mxu0 %v1060
  %1126 = vmatpush.msra.mxu0 %v1059
  %1127 = vmatpush.msra.mxu0 %v1058
  %1128 = vmatpush.msra.mxu0 %v1057
  %1129 = vmatpush.msra.mxu0 %v1056
  %1130 = vmatpush.msra.mxu0 %v1055
  %1131 = vmatpush.msra.mxu0 %v1054
  %1132 = vmatpush.msra.mxu0 %v1053
  %1133 = vmatpush.msra.mxu0 %v1052
  %1134 = vmatpush.msra.mxu0 %v1051
  %1135 = vmatpush.msra.mxu0 %v1050
  %1136 = vmatpush.msra.mxu0 %v1049
  %1137 = vmatpush.msra.mxu0 %v1048
  %1138 = vmatpush.msra.mxu0 %v1047
  %1139 = vmatpush.msra.mxu0 %v1046
  %1140 = vmatpush.msra.mxu0 %v1045
  %1141 = vmatmul.f32.gmra.mxu0 %v996
  %v1142 = vpop.f32.mrf.mxu0
  %v1143 = vadd.f32 %v1123, %v1142
  %1144 = vdwg.mxu0
  %1145 = vst [vmem:[%s5] sm:$0xff] %v1143
  // Predicated region
  $region22: #{cnn_mnist1_forward.5} parent=0 // pred_check
    _
  $region23: #{cnn_mnist1_forward.5} parent=0 // pred_check_branch
    %1147 = sbr.rel (0) target = $region25
  $region24: #{cnn_mnist1_forward.5} parent=0 // pred_region
    _
  $region25: #{cnn_mnist1_forward.5} parent=0 // pred_fallthru
    _
  // Predicated region
  $region26: #{cnn_mnist1_forward.5} parent=0 // pred_check
    _
  $region27: #{cnn_mnist1_forward.5} parent=0 // pred_check_branch
    %1149 = sbr.rel (0) target = $region29
  $region28: #{cnn_mnist1_forward.5} parent=0 // pred_region
    _
  $region29: #{cnn_mnist1_forward.5} parent=0 // pred_fallthru
    _

</llo_original>
